<compile_context>
chip_gen: v7x
topology: tpu7x:2x2x1
jax: 0.10.0
libtpu: 0.0.40
codegen_flags: <defaults>
</compile_context>

<pallas_src>
import functools

import jax
import jax.numpy as jnp
from jax import lax
from jax.experimental import pallas as pl
from jax.experimental.pallas import tpu as pltpu


def _conv_taps(x_ref, w_ref, *, hw2, wp):
    """3x3 conv for one image as 9 shifted-slice matmuls, f32 accumulation.

    x_ref: (1, Cin, Lpad) bf16 -- zero-padded image, channel-major, spatial flattened
           so that lane index l = hp*(W+2) + wp_col.
    w_ref: (9, Cout*r, Cin) bf16 -- per-tap weight matrices, channel repeat folded in.
    Returns (Cout*r, hw2) f32 with hw2 = H*(W+2); the last 2 columns of every
    (W+2)-wide row are wrap-around junk (masked in pass 1, sliced off in the wrapper).
    """
    acc = None
    for t in range(9):
        ki, kj = divmod(t, 3)
        start = ki * wp + kj                              # static lane offset of this tap
        slab = x_ref[0, :, start:start + hw2]             # (Cin, hw2) bf16, lane-dense
        part = jnp.dot(w_ref[t], slab, preferred_element_type=jnp.float32)
        acc = part if acc is None else acc + part
    return acc


def _stats_kernel(x_ref, w_ref, g_ref, b_ref, m_ref, stat_ref, *, hw2, wp, inv_count, eps):
    """Pass 1: accumulate per-channel sum / sumsq over the batch; finalize scale/shift."""
    i = pl.program_id(0)

    @pl.when(i == 0)
    def _():
        stat_ref[...] = jnp.zeros_like(stat_ref)

    y = _conv_taps(x_ref, w_ref, hw2=hw2, wp=wp)          # (Cout*r, hw2) f32
    ym = y * m_ref[...]                                   # zero the junk columns
    stat_ref[:, 0:1] += jnp.sum(ym, axis=1, keepdims=True)
    stat_ref[:, 1:2] += jnp.sum(ym * y, axis=1, keepdims=True)

    @pl.when(i == pl.num_programs(0) - 1)
    def _():
        mean = stat_ref[:, 0:1] * inv_count
        var = stat_ref[:, 1:2] * inv_count - mean * mean  # biased batch variance
        scale = g_ref[...] * lax.rsqrt(var + eps)         # fused BN affine
        shift = b_ref[...] - mean * scale
        stat_ref[:, 0:1] = scale
        stat_ref[:, 1:2] = shift


def _apply_kernel(x_ref, w_ref, sb_ref, o_ref, *, hw2, wp):
    """Pass 2: recompute conv, apply y*scale + shift, single lane-dense store."""
    y = _conv_taps(x_ref, w_ref, hw2=hw2, wp=wp)          # (Cout*r, hw2) f32
    o_ref[0] = (y * sb_ref[:, 0:1] + sb_ref[:, 1:2]).astype(o_ref.dtype)


def repeat_conv_pallas(x_nchw, w_conv, gamma, beta, *, r, eps=1e-5):
    """x_nchw: (N, Cin, H, W); w_conv: (Cout, Cin, 3, 3) PyTorch OIHW; gamma/beta: (Cout,)."""
    n, c_in, h, w = x_nchw.shape
    c_out = w_conv.shape[0]
    crr = c_out * r                         # channels after the repeat
    wp = w + 2                              # row pitch of the flattened padded image
    hw2 = h * wp                            # lane length of one image's conv output
    l = (h + 2) * wp                        # flattened padded image length
    lpad = ((l + 2 + 127) // 128) * 128     # +2 slack for the (ki=2,kj=2) tap, lane-tile round-up

    # --- layout prep (no 9x im2col expansion): NCHW -> zero-pad -> flatten spatial ------------
    xpad = jnp.pad(x_nchw, ((0, 0), (0, 0), (1, 1), (1, 1)))          # (N, Cin, H+2, W+2)
    xflat = jnp.pad(xpad.reshape(n, c_in, l), ((0, 0), (0, 0), (0, lpad - l)))
    xflat = xflat.astype(jnp.bfloat16)                                # bf16 matmul operand

    # per-tap weights (9, Cout, Cin) with the channel repeat folded in -> (9, Cout*r, Cin)
    w_taps = jnp.transpose(w_conv, (2, 3, 0, 1)).reshape(9, c_out, c_in)
    w_taps = jnp.tile(w_taps, (1, r, 1)).astype(jnp.bfloat16)

    g2 = jnp.tile(gamma.reshape(c_out, 1), (r, 1)).astype(jnp.float32)   # (Cout*r, 1)
    b2 = jnp.tile(beta.reshape(c_out, 1), (r, 1)).astype(jnp.float32)    # (Cout*r, 1)

    # lane-validity mask: of every (W+2)-wide row only the first W columns are real outputs
    valid = ((jnp.arange(hw2) % wp) < w).astype(jnp.float32).reshape(1, hw2)

    inv_count = 1.0 / float(n * h * w)

    x_spec = pl.BlockSpec((1, c_in, lpad), lambda i: (i, 0, 0))
    w_spec = pl.BlockSpec((9, crr, c_in), lambda i: (0, 0, 0))

    # ---- pass 1: batch-global BN statistics -> fused (scale, shift) --------------------------
    stats = pl.pallas_call(
        functools.partial(_stats_kernel, hw2=hw2, wp=wp, inv_count=inv_count, eps=eps),
        grid=(n,),
        in_specs=[
            x_spec,
            w_spec,
            pl.BlockSpec((crr, 1), lambda i: (0, 0)),
            pl.BlockSpec((crr, 1), lambda i: (0, 0)),
            pl.BlockSpec((1, hw2), lambda i: (0, 0)),
        ],
        out_specs=pl.BlockSpec((crr, 2), lambda i: (0, 0)),   # resident accumulator block
        out_shape=jax.ShapeDtypeStruct((crr, 2), jnp.float32),
        compiler_params=pltpu.CompilerParams(dimension_semantics=("arbitrary",)),
    )(xflat, w_taps, g2, b2, valid)

    # ---- pass 2: normalize + channel-repeated write, batch axis parallel (megacore on v7x) ---
    out_flat = pl.pallas_call(
        functools.partial(_apply_kernel, hw2=hw2, wp=wp),
        grid=(n,),
        in_specs=[x_spec, w_spec, pl.BlockSpec((crr, 2), lambda i: (0, 0))],
        out_specs=pl.BlockSpec((1, crr, hw2), lambda i: (i, 0, 0)),
        out_shape=jax.ShapeDtypeStruct((n, crr, hw2), jnp.float32),
        compiler_params=pltpu.CompilerParams(dimension_semantics=("parallel",)),
    )(xflat, w_taps, stats)

    # (N, Cout*r, H*(W+2)) -> (N, Cout*r, H, W+2) -> drop the 2 junk columns -> already NCHW
    return out_flat.reshape(n, crr, h, wp)[:, :, :, :w]


def _reference(x_nchw, w_conv, gamma, beta, *, r, eps=1e-5):
    # pure-JAX (f32) reference for the module forward
    y = lax.conv_general_dilated(
        x_nchw.astype(jnp.float32), w_conv.astype(jnp.float32),
        window_strides=(1, 1), padding=((1, 1), (1, 1)),
        dimension_numbers=("NCHW", "OIHW", "NCHW"),
        precision=lax.Precision.HIGHEST)
    mean = jnp.mean(y, axis=(0, 2, 3), keepdims=True)
    var = jnp.mean((y - mean) ** 2, axis=(0, 2, 3), keepdims=True)
    yn = (y - mean) * lax.rsqrt(var + eps)
    yn = yn * gamma.reshape(1, -1, 1, 1) + beta.reshape(1, -1, 1, 1)
    return jnp.concatenate([yn] * r, axis=1)


if __name__ == "__main__":
    # Repeat_Conv(in_planes=4, planes=16, r=2) -> conv Cout = planes/r = 8
    in_planes, planes, r = 4, 16, 2
    c_out = planes // r
    n, h, w = 2, 16, 16

    key = jax.random.PRNGKey(0)
    kx, kw = jax.random.split(key)
    x = jax.random.normal(kx, (n, in_planes, h, w), dtype=jnp.float32)
    w_conv = 0.1 * jax.random.normal(kw, (c_out, in_planes, 3, 3), dtype=jnp.float32)
    gamma = jnp.ones((c_out,), dtype=jnp.float32)
    beta = jnp.zeros((c_out,), dtype=jnp.float32)

    fn = jax.jit(repeat_conv_pallas, static_argnames=("r", "eps"))
    out = jax.block_until_ready(fn(x, w_conv, gamma, beta, r=r))
    assert out.shape == (n, planes, h, w), out.shape

    # (1) kernel-math check: reference fed the same bf16-rounded operands (f32 accumulation),
    #     so this isolates the Pallas implementation itself -> tight tolerance.
    xq = x.astype(jnp.bfloat16).astype(jnp.float32)
    wq = w_conv.astype(jnp.bfloat16).astype(jnp.float32)
    err_q = float(jnp.max(jnp.abs(out - _reference(xq, wq, gamma, beta, r=r))))
    assert err_q < 1e-3, err_q

    # (2) end-to-end check vs the full-f32 module semantics: the only difference is the
    #     bf16 quantization of the matmul operands (per perf feedback), worst-case ~1e-2 abs.
    err = float(jnp.max(jnp.abs(out - _reference(x, w_conv, gamma, beta, r=r))))
    assert err < 5e-2, err

    print("KERNEL_OK")
</pallas_src>

<mosaic_0001>
module attributes {stable_mosaic.version = 11 : i64} {
  func.func @_apply_kernel(%arg0: i32, %arg1: memref<1x4x384xbf16, #tpu.memory_space<vmem>>, %arg2: memref<9x16x4xbf16, #tpu.memory_space<vmem>>, %arg3: memref<16x2xf32, #tpu.memory_space<vmem>>, %arg4: memref<1x16x288xf32, #tpu.memory_space<vmem>>) attributes {dimension_semantics = [#tpu.dimension_semantics<parallel>], iteration_bounds = array<i64: 2>, scalar_prefetch = 0 : i64, scratch_operands = 0 : i64, tpu.core_type = #tpu.core_type<tc>, window_params = [{transform_indices = @transform_0, window_bounds = array<i64: 1, 4, 384>}, {pipeline_mode = #tpu.pipeline_mode<synchronous>, transform_indices = @transform_1, window_bounds = array<i64: 9, 16, 4>}, {pipeline_mode = #tpu.pipeline_mode<synchronous>, transform_indices = @transform_2, window_bounds = array<i64: 16, 2>}, {transform_indices = @transform_3, window_bounds = array<i64: 1, 16, 288>}]} {
    %c0 = arith.constant 0 : index
    %c0_0 = arith.constant 0 : index
    %c0_1 = arith.constant 0 : index
    %0 = vector.load %arg1[%c0, %c0_0, %c0_1] : memref<1x4x384xbf16, #tpu.memory_space<vmem>>, vector<1x4x288xbf16>
    %1 = vector.shape_cast %0 : vector<1x4x288xbf16> to vector<4x288xbf16>
    %c0_2 = arith.constant 0 : index
    %c0_3 = arith.constant 0 : index
    %c0_4 = arith.constant 0 : index
    %2 = vector.load %arg2[%c0_2, %c0_3, %c0_4] : memref<9x16x4xbf16, #tpu.memory_space<vmem>>, vector<1x16x4xbf16>
    %3 = vector.shape_cast %2 : vector<1x16x4xbf16> to vector<16x4xbf16>
    %cst = arith.constant dense<0.000000e+00> : vector<16x288xf32>
    %4 = tpu.matmul %3, %1, %cst {dimension_numbers = #tpu.dot_dimension_numbers<[1], [0], [0], [1], [0, 0, 1, 1], [], []>} : vector<16x4xbf16>, vector<4x288xbf16>, vector<16x288xf32> -> vector<16x288xf32>
    %c0_5 = arith.constant 0 : index
    %c0_6 = arith.constant 0 : index
    %c1 = arith.constant 1 : index
    %5 = vector.load %arg1[%c0_5, %c0_6, %c1] : memref<1x4x384xbf16, #tpu.memory_space<vmem>>, vector<1x4x288xbf16>
    %6 = vector.shape_cast %5 : vector<1x4x288xbf16> to vector<4x288xbf16>
    %c1_7 = arith.constant 1 : index
    %c0_8 = arith.constant 0 : index
    %c0_9 = arith.constant 0 : index
    %7 = vector.load %arg2[%c1_7, %c0_8, %c0_9] : memref<9x16x4xbf16, #tpu.memory_space<vmem>>, vector<1x16x4xbf16>
    %8 = vector.shape_cast %7 : vector<1x16x4xbf16> to vector<16x4xbf16>
    %cst_10 = arith.constant dense<0.000000e+00> : vector<16x288xf32>
    %9 = tpu.matmul %8, %6, %cst_10 {dimension_numbers = #tpu.dot_dimension_numbers<[1], [0], [0], [1], [0, 0, 1, 1], [], []>} : vector<16x4xbf16>, vector<4x288xbf16>, vector<16x288xf32> -> vector<16x288xf32>
    %10 = arith.addf %4, %9 : vector<16x288xf32>
    %c0_11 = arith.constant 0 : index
    %c0_12 = arith.constant 0 : index
    %c2 = arith.constant 2 : index
    %11 = vector.load %arg1[%c0_11, %c0_12, %c2] : memref<1x4x384xbf16, #tpu.memory_space<vmem>>, vector<1x4x288xbf16>
    %12 = vector.shape_cast %11 : vector<1x4x288xbf16> to vector<4x288xbf16>
    %c2_13 = arith.constant 2 : index
    %c0_14 = arith.constant 0 : index
    %c0_15 = arith.constant 0 : index
    %13 = vector.load %arg2[%c2_13, %c0_14, %c0_15] : memref<9x16x4xbf16, #tpu.memory_space<vmem>>, vector<1x16x4xbf16>
    %14 = vector.shape_cast %13 : vector<1x16x4xbf16> to vector<16x4xbf16>
    %cst_16 = arith.constant dense<0.000000e+00> : vector<16x288xf32>
    %15 = tpu.matmul %14, %12, %cst_16 {dimension_numbers = #tpu.dot_dimension_numbers<[1], [0], [0], [1], [0, 0, 1, 1], [], []>} : vector<16x4xbf16>, vector<4x288xbf16>, vector<16x288xf32> -> vector<16x288xf32>
    %16 = arith.addf %10, %15 : vector<16x288xf32>
    %c0_17 = arith.constant 0 : index
    %c0_18 = arith.constant 0 : index
    %c18 = arith.constant 18 : index
    %17 = vector.load %arg1[%c0_17, %c0_18, %c18] : memref<1x4x384xbf16, #tpu.memory_space<vmem>>, vector<1x4x288xbf16>
    %18 = vector.shape_cast %17 : vector<1x4x288xbf16> to vector<4x288xbf16>
    %c3 = arith.constant 3 : index
    %c0_19 = arith.constant 0 : index
    %c0_20 = arith.constant 0 : index
    %19 = vector.load %arg2[%c3, %c0_19, %c0_20] : memref<9x16x4xbf16, #tpu.memory_space<vmem>>, vector<1x16x4xbf16>
    %20 = vector.shape_cast %19 : vector<1x16x4xbf16> to vector<16x4xbf16>
    %cst_21 = arith.constant dense<0.000000e+00> : vector<16x288xf32>
    %21 = tpu.matmul %20, %18, %cst_21 {dimension_numbers = #tpu.dot_dimension_numbers<[1], [0], [0], [1], [0, 0, 1, 1], [], []>} : vector<16x4xbf16>, vector<4x288xbf16>, vector<16x288xf32> -> vector<16x288xf32>
    %22 = arith.addf %16, %21 : vector<16x288xf32>
    %c0_22 = arith.constant 0 : index
    %c0_23 = arith.constant 0 : index
    %c19 = arith.constant 19 : index
    %23 = vector.load %arg1[%c0_22, %c0_23, %c19] : memref<1x4x384xbf16, #tpu.memory_space<vmem>>, vector<1x4x288xbf16>
    %24 = vector.shape_cast %23 : vector<1x4x288xbf16> to vector<4x288xbf16>
    %c4 = arith.constant 4 : index
    %c0_24 = arith.constant 0 : index
    %c0_25 = arith.constant 0 : index
    %25 = vector.load %arg2[%c4, %c0_24, %c0_25] : memref<9x16x4xbf16, #tpu.memory_space<vmem>>, vector<1x16x4xbf16>
    %26 = vector.shape_cast %25 : vector<1x16x4xbf16> to vector<16x4xbf16>
    %cst_26 = arith.constant dense<0.000000e+00> : vector<16x288xf32>
    %27 = tpu.matmul %26, %24, %cst_26 {dimension_numbers = #tpu.dot_dimension_numbers<[1], [0], [0], [1], [0, 0, 1, 1], [], []>} : vector<16x4xbf16>, vector<4x288xbf16>, vector<16x288xf32> -> vector<16x288xf32>
    %28 = arith.addf %22, %27 : vector<16x288xf32>
    %c0_27 = arith.constant 0 : index
    %c0_28 = arith.constant 0 : index
    %c20 = arith.constant 20 : index
    %29 = vector.load %arg1[%c0_27, %c0_28, %c20] : memref<1x4x384xbf16, #tpu.memory_space<vmem>>, vector<1x4x288xbf16>
    %30 = vector.shape_cast %29 : vector<1x4x288xbf16> to vector<4x288xbf16>
    %c5 = arith.constant 5 : index
    %c0_29 = arith.constant 0 : index
    %c0_30 = arith.constant 0 : index
    %31 = vector.load %arg2[%c5, %c0_29, %c0_30] : memref<9x16x4xbf16, #tpu.memory_space<vmem>>, vector<1x16x4xbf16>
    %32 = vector.shape_cast %31 : vector<1x16x4xbf16> to vector<16x4xbf16>
    %cst_31 = arith.constant dense<0.000000e+00> : vector<16x288xf32>
    %33 = tpu.matmul %32, %30, %cst_31 {dimension_numbers = #tpu.dot_dimension_numbers<[1], [0], [0], [1], [0, 0, 1, 1], [], []>} : vector<16x4xbf16>, vector<4x288xbf16>, vector<16x288xf32> -> vector<16x288xf32>
    %34 = arith.addf %28, %33 : vector<16x288xf32>
    %c0_32 = arith.constant 0 : index
    %c0_33 = arith.constant 0 : index
    %c36 = arith.constant 36 : index
    %35 = vector.load %arg1[%c0_32, %c0_33, %c36] : memref<1x4x384xbf16, #tpu.memory_space<vmem>>, vector<1x4x288xbf16>
    %36 = vector.shape_cast %35 : vector<1x4x288xbf16> to vector<4x288xbf16>
    %c6 = arith.constant 6 : index
    %c0_34 = arith.constant 0 : index
    %c0_35 = arith.constant 0 : index
    %37 = vector.load %arg2[%c6, %c0_34, %c0_35] : memref<9x16x4xbf16, #tpu.memory_space<vmem>>, vector<1x16x4xbf16>
    %38 = vector.shape_cast %37 : vector<1x16x4xbf16> to vector<16x4xbf16>
    %cst_36 = arith.constant dense<0.000000e+00> : vector<16x288xf32>
    %39 = tpu.matmul %38, %36, %cst_36 {dimension_numbers = #tpu.dot_dimension_numbers<[1], [0], [0], [1], [0, 0, 1, 1], [], []>} : vector<16x4xbf16>, vector<4x288xbf16>, vector<16x288xf32> -> vector<16x288xf32>
    %40 = arith.addf %34, %39 : vector<16x288xf32>
    %c0_37 = arith.constant 0 : index
    %c0_38 = arith.constant 0 : index
    %c37 = arith.constant 37 : index
    %41 = vector.load %arg1[%c0_37, %c0_38, %c37] : memref<1x4x384xbf16, #tpu.memory_space<vmem>>, vector<1x4x288xbf16>
    %42 = vector.shape_cast %41 : vector<1x4x288xbf16> to vector<4x288xbf16>
    %c7 = arith.constant 7 : index
    %c0_39 = arith.constant 0 : index
    %c0_40 = arith.constant 0 : index
    %43 = vector.load %arg2[%c7, %c0_39, %c0_40] : memref<9x16x4xbf16, #tpu.memory_space<vmem>>, vector<1x16x4xbf16>
    %44 = vector.shape_cast %43 : vector<1x16x4xbf16> to vector<16x4xbf16>
    %cst_41 = arith.constant dense<0.000000e+00> : vector<16x288xf32>
    %45 = tpu.matmul %44, %42, %cst_41 {dimension_numbers = #tpu.dot_dimension_numbers<[1], [0], [0], [1], [0, 0, 1, 1], [], []>} : vector<16x4xbf16>, vector<4x288xbf16>, vector<16x288xf32> -> vector<16x288xf32>
    %46 = arith.addf %40, %45 : vector<16x288xf32>
    %c0_42 = arith.constant 0 : index
    %c0_43 = arith.constant 0 : index
    %c38 = arith.constant 38 : index
    %47 = vector.load %arg1[%c0_42, %c0_43, %c38] : memref<1x4x384xbf16, #tpu.memory_space<vmem>>, vector<1x4x288xbf16>
    %48 = vector.shape_cast %47 : vector<1x4x288xbf16> to vector<4x288xbf16>
    %c8 = arith.constant 8 : index
    %c0_44 = arith.constant 0 : index
    %c0_45 = arith.constant 0 : index
    %49 = vector.load %arg2[%c8, %c0_44, %c0_45] : memref<9x16x4xbf16, #tpu.memory_space<vmem>>, vector<1x16x4xbf16>
    %50 = vector.shape_cast %49 : vector<1x16x4xbf16> to vector<16x4xbf16>
    %cst_46 = arith.constant dense<0.000000e+00> : vector<16x288xf32>
    %51 = tpu.matmul %50, %48, %cst_46 {dimension_numbers = #tpu.dot_dimension_numbers<[1], [0], [0], [1], [0, 0, 1, 1], [], []>} : vector<16x4xbf16>, vector<4x288xbf16>, vector<16x288xf32> -> vector<16x288xf32>
    %52 = arith.addf %46, %51 : vector<16x288xf32>
    %c0_47 = arith.constant 0 : index
    %c0_48 = arith.constant 0 : index
    %53 = vector.load %arg3[%c0_47, %c0_48] : memref<16x2xf32, #tpu.memory_space<vmem>>, vector<16x1xf32>
    %54 = vector.broadcast %53 : vector<16x1xf32> to vector<16x288xf32>
    %55 = arith.mulf %52, %54 : vector<16x288xf32>
    %c0_49 = arith.constant 0 : index
    %c1_50 = arith.constant 1 : index
    %56 = vector.load %arg3[%c0_49, %c1_50] : memref<16x2xf32, #tpu.memory_space<vmem>>, vector<16x1xf32>
    %57 = vector.broadcast %56 : vector<16x1xf32> to vector<16x288xf32>
    %58 = arith.addf %55, %57 : vector<16x288xf32>
    %c0_51 = arith.constant 0 : index
    %c0_52 = arith.constant 0 : index
    %c0_53 = arith.constant 0 : index
    %59 = vector.load %arg4[%c0_51, %c0_52, %c0_53] : memref<1x16x288xf32, #tpu.memory_space<vmem>>, vector<1x16x288xf32>
    %60 = vector.shape_cast %59 : vector<1x16x288xf32> to vector<16x288xf32>
    %61 = vector.shape_cast %58 : vector<16x288xf32> to vector<1x16x288xf32>
    tpu.vector_store %arg4[%c0_51, %c0_52, %c0_53], %61 {strides = array<i32>} : memref<1x16x288xf32, #tpu.memory_space<vmem>>, vector<1x16x288xf32>,
    return
  }
  func.func @transform_0(%arg0: i32) -> (i32, i32, i32) {
    %c0_i32 = arith.constant 0 : i32
    %c0_i32_0 = arith.constant 0 : i32
    %c0_i32_1 = arith.constant 0 : i32
    return %arg0, %c0_i32, %c0_i32_0 : i32, i32, i32
  }
  func.func @transform_1(%arg0: i32) -> (i32, i32, i32) {
    %c0_i32 = arith.constant 0 : i32
    %c0_i32_0 = arith.constant 0 : i32
    %c0_i32_1 = arith.constant 0 : i32
    %c0_i32_2 = arith.constant 0 : i32
    return %c0_i32, %c0_i32_0, %c0_i32_1 : i32, i32, i32
  }
  func.func @transform_2(%arg0: i32) -> (i32, i32) {
    %c0_i32 = arith.constant 0 : i32
    %c0_i32_0 = arith.constant 0 : i32
    %c0_i32_1 = arith.constant 0 : i32
    return %c0_i32, %c0_i32_0 : i32, i32
  }
  func.func @transform_3(%arg0: i32) -> (i32, i32, i32) {
    %c0_i32 = arith.constant 0 : i32
    %c0_i32_0 = arith.constant 0 : i32
    %c0_i32_1 = arith.constant 0 : i32
    return %arg0, %c0_i32, %c0_i32_0 : i32, i32, i32
  }
}

module attributes {stable_mosaic.version = 11 : i64} {
  func.func @_stats_kernel(%arg0: i32, %arg1: memref<1x4x384xbf16, #tpu.memory_space<vmem>>, %arg2: memref<9x16x4xbf16, #tpu.memory_space<vmem>>, %arg3: memref<16x1xf32, #tpu.memory_space<vmem>>, %arg4: memref<16x1xf32, #tpu.memory_space<vmem>>, %arg5: memref<1x288xf32, #tpu.memory_space<vmem>>, %arg6: memref<16x2xf32, #tpu.memory_space<vmem>>) attributes {dimension_semantics = [#tpu.dimension_semantics<arbitrary>], iteration_bounds = array<i64: 2>, scalar_prefetch = 0 : i64, scratch_operands = 0 : i64, tpu.core_type = #tpu.core_type<tc>, window_params = [{transform_indices = @transform_0, window_bounds = array<i64: 1, 4, 384>}, {pipeline_mode = #tpu.pipeline_mode<synchronous>, transform_indices = @transform_1, window_bounds = array<i64: 9, 16, 4>}, {pipeline_mode = #tpu.pipeline_mode<synchronous>, transform_indices = @transform_2, window_bounds = array<i64: 16, 1>}, {pipeline_mode = #tpu.pipeline_mode<synchronous>, transform_indices = @transform_3, window_bounds = array<i64: 16, 1>}, {pipeline_mode = #tpu.pipeline_mode<synchronous>, transform_indices = @transform_4, window_bounds = array<i64: 1, 288>}, {pipeline_mode = #tpu.pipeline_mode<synchronous>, transform_indices = @transform_5, window_bounds = array<i64: 16, 2>}]} {
    %c0_i32 = arith.constant 0 : i32
    %0 = arith.cmpi eq, %arg0, %c0_i32 : i32
    %1 = arith.extui %0 : i1 to i32
    %c0_i32_0 = arith.constant 0 : i32
    %2 = arith.cmpi ne, %1, %c0_i32_0 : i32
    scf.if %2 {
      %cst_61 = arith.constant 0.000000e+00 : f32
      %73 = vector.broadcast %cst_61 : f32 to vector<16x2xf32>
      %c0_62 = arith.constant 0 : index
      %c0_63 = arith.constant 0 : index
      %74 = vector.load %arg6[%c0_62, %c0_63] : memref<16x2xf32, #tpu.memory_space<vmem>>, vector<16x2xf32>
      tpu.vector_store %arg6[%c0_62, %c0_63], %73 {strides = array<i32>} : memref<16x2xf32, #tpu.memory_space<vmem>>, vector<16x2xf32>,
    } else {
    }
    %c0 = arith.constant 0 : index
    %c0_1 = arith.constant 0 : index
    %c0_2 = arith.constant 0 : index
    %3 = vector.load %arg1[%c0, %c0_1, %c0_2] : memref<1x4x384xbf16, #tpu.memory_space<vmem>>, vector<1x4x288xbf16>
    %4 = vector.shape_cast %3 : vector<1x4x288xbf16> to vector<4x288xbf16>
    %c0_3 = arith.constant 0 : index
    %c0_4 = arith.constant 0 : index
    %c0_5 = arith.constant 0 : index
    %5 = vector.load %arg2[%c0_3, %c0_4, %c0_5] : memref<9x16x4xbf16, #tpu.memory_space<vmem>>, vector<1x16x4xbf16>
    %6 = vector.shape_cast %5 : vector<1x16x4xbf16> to vector<16x4xbf16>
    %cst = arith.constant dense<0.000000e+00> : vector<16x288xf32>
    %7 = tpu.matmul %6, %4, %cst {dimension_numbers = #tpu.dot_dimension_numbers<[1], [0], [0], [1], [0, 0, 1, 1], [], []>} : vector<16x4xbf16>, vector<4x288xbf16>, vector<16x288xf32> -> vector<16x288xf32>
    %c0_6 = arith.constant 0 : index
    %c0_7 = arith.constant 0 : index
    %c1 = arith.constant 1 : index
    %8 = vector.load %arg1[%c0_6, %c0_7, %c1] : memref<1x4x384xbf16, #tpu.memory_space<vmem>>, vector<1x4x288xbf16>
    %9 = vector.shape_cast %8 : vector<1x4x288xbf16> to vector<4x288xbf16>
    %c1_8 = arith.constant 1 : index
    %c0_9 = arith.constant 0 : index
    %c0_10 = arith.constant 0 : index
    %10 = vector.load %arg2[%c1_8, %c0_9, %c0_10] : memref<9x16x4xbf16, #tpu.memory_space<vmem>>, vector<1x16x4xbf16>
    %11 = vector.shape_cast %10 : vector<1x16x4xbf16> to vector<16x4xbf16>
    %cst_11 = arith.constant dense<0.000000e+00> : vector<16x288xf32>
    %12 = tpu.matmul %11, %9, %cst_11 {dimension_numbers = #tpu.dot_dimension_numbers<[1], [0], [0], [1], [0, 0, 1, 1], [], []>} : vector<16x4xbf16>, vector<4x288xbf16>, vector<16x288xf32> -> vector<16x288xf32>
    %13 = arith.addf %7, %12 : vector<16x288xf32>
    %c0_12 = arith.constant 0 : index
    %c0_13 = arith.constant 0 : index
    %c2 = arith.constant 2 : index
    %14 = vector.load %arg1[%c0_12, %c0_13, %c2] : memref<1x4x384xbf16, #tpu.memory_space<vmem>>, vector<1x4x288xbf16>
    %15 = vector.shape_cast %14 : vector<1x4x288xbf16> to vector<4x288xbf16>
    %c2_14 = arith.constant 2 : index
    %c0_15 = arith.constant 0 : index
    %c0_16 = arith.constant 0 : index
    %16 = vector.load %arg2[%c2_14, %c0_15, %c0_16] : memref<9x16x4xbf16, #tpu.memory_space<vmem>>, vector<1x16x4xbf16>
    %17 = vector.shape_cast %16 : vector<1x16x4xbf16> to vector<16x4xbf16>
    %cst_17 = arith.constant dense<0.000000e+00> : vector<16x288xf32>
    %18 = tpu.matmul %17, %15, %cst_17 {dimension_numbers = #tpu.dot_dimension_numbers<[1], [0], [0], [1], [0, 0, 1, 1], [], []>} : vector<16x4xbf16>, vector<4x288xbf16>, vector<16x288xf32> -> vector<16x288xf32>
    %19 = arith.addf %13, %18 : vector<16x288xf32>
    %c0_18 = arith.constant 0 : index
    %c0_19 = arith.constant 0 : index
    %c18 = arith.constant 18 : index
    %20 = vector.load %arg1[%c0_18, %c0_19, %c18] : memref<1x4x384xbf16, #tpu.memory_space<vmem>>, vector<1x4x288xbf16>
    %21 = vector.shape_cast %20 : vector<1x4x288xbf16> to vector<4x288xbf16>
    %c3 = arith.constant 3 : index
    %c0_20 = arith.constant 0 : index
    %c0_21 = arith.constant 0 : index
    %22 = vector.load %arg2[%c3, %c0_20, %c0_21] : memref<9x16x4xbf16, #tpu.memory_space<vmem>>, vector<1x16x4xbf16>
    %23 = vector.shape_cast %22 : vector<1x16x4xbf16> to vector<16x4xbf16>
    %cst_22 = arith.constant dense<0.000000e+00> : vector<16x288xf32>
    %24 = tpu.matmul %23, %21, %cst_22 {dimension_numbers = #tpu.dot_dimension_numbers<[1], [0], [0], [1], [0, 0, 1, 1], [], []>} : vector<16x4xbf16>, vector<4x288xbf16>, vector<16x288xf32> -> vector<16x288xf32>
    %25 = arith.addf %19, %24 : vector<16x288xf32>
    %c0_23 = arith.constant 0 : index
    %c0_24 = arith.constant 0 : index
    %c19 = arith.constant 19 : index
    %26 = vector.load %arg1[%c0_23, %c0_24, %c19] : memref<1x4x384xbf16, #tpu.memory_space<vmem>>, vector<1x4x288xbf16>
    %27 = vector.shape_cast %26 : vector<1x4x288xbf16> to vector<4x288xbf16>
    %c4 = arith.constant 4 : index
    %c0_25 = arith.constant 0 : index
    %c0_26 = arith.constant 0 : index
    %28 = vector.load %arg2[%c4, %c0_25, %c0_26] : memref<9x16x4xbf16, #tpu.memory_space<vmem>>, vector<1x16x4xbf16>
    %29 = vector.shape_cast %28 : vector<1x16x4xbf16> to vector<16x4xbf16>
    %cst_27 = arith.constant dense<0.000000e+00> : vector<16x288xf32>
    %30 = tpu.matmul %29, %27, %cst_27 {dimension_numbers = #tpu.dot_dimension_numbers<[1], [0], [0], [1], [0, 0, 1, 1], [], []>} : vector<16x4xbf16>, vector<4x288xbf16>, vector<16x288xf32> -> vector<16x288xf32>
    %31 = arith.addf %25, %30 : vector<16x288xf32>
    %c0_28 = arith.constant 0 : index
    %c0_29 = arith.constant 0 : index
    %c20 = arith.constant 20 : index
    %32 = vector.load %arg1[%c0_28, %c0_29, %c20] : memref<1x4x384xbf16, #tpu.memory_space<vmem>>, vector<1x4x288xbf16>
    %33 = vector.shape_cast %32 : vector<1x4x288xbf16> to vector<4x288xbf16>
    %c5 = arith.constant 5 : index
    %c0_30 = arith.constant 0 : index
    %c0_31 = arith.constant 0 : index
    %34 = vector.load %arg2[%c5, %c0_30, %c0_31] : memref<9x16x4xbf16, #tpu.memory_space<vmem>>, vector<1x16x4xbf16>
    %35 = vector.shape_cast %34 : vector<1x16x4xbf16> to vector<16x4xbf16>
    %cst_32 = arith.constant dense<0.000000e+00> : vector<16x288xf32>
    %36 = tpu.matmul %35, %33, %cst_32 {dimension_numbers = #tpu.dot_dimension_numbers<[1], [0], [0], [1], [0, 0, 1, 1], [], []>} : vector<16x4xbf16>, vector<4x288xbf16>, vector<16x288xf32> -> vector<16x288xf32>
    %37 = arith.addf %31, %36 : vector<16x288xf32>
    %c0_33 = arith.constant 0 : index
    %c0_34 = arith.constant 0 : index
    %c36 = arith.constant 36 : index
    %38 = vector.load %arg1[%c0_33, %c0_34, %c36] : memref<1x4x384xbf16, #tpu.memory_space<vmem>>, vector<1x4x288xbf16>
    %39 = vector.shape_cast %38 : vector<1x4x288xbf16> to vector<4x288xbf16>
    %c6 = arith.constant 6 : index
    %c0_35 = arith.constant 0 : index
    %c0_36 = arith.constant 0 : index
    %40 = vector.load %arg2[%c6, %c0_35, %c0_36] : memref<9x16x4xbf16, #tpu.memory_space<vmem>>, vector<1x16x4xbf16>
    %41 = vector.shape_cast %40 : vector<1x16x4xbf16> to vector<16x4xbf16>
    %cst_37 = arith.constant dense<0.000000e+00> : vector<16x288xf32>
    %42 = tpu.matmul %41, %39, %cst_37 {dimension_numbers = #tpu.dot_dimension_numbers<[1], [0], [0], [1], [0, 0, 1, 1], [], []>} : vector<16x4xbf16>, vector<4x288xbf16>, vector<16x288xf32> -> vector<16x288xf32>
    %43 = arith.addf %37, %42 : vector<16x288xf32>
    %c0_38 = arith.constant 0 : index
    %c0_39 = arith.constant 0 : index
    %c37 = arith.constant 37 : index
    %44 = vector.load %arg1[%c0_38, %c0_39, %c37] : memref<1x4x384xbf16, #tpu.memory_space<vmem>>, vector<1x4x288xbf16>
    %45 = vector.shape_cast %44 : vector<1x4x288xbf16> to vector<4x288xbf16>
    %c7 = arith.constant 7 : index
    %c0_40 = arith.constant 0 : index
    %c0_41 = arith.constant 0 : index
    %46 = vector.load %arg2[%c7, %c0_40, %c0_41] : memref<9x16x4xbf16, #tpu.memory_space<vmem>>, vector<1x16x4xbf16>
    %47 = vector.shape_cast %46 : vector<1x16x4xbf16> to vector<16x4xbf16>
    %cst_42 = arith.constant dense<0.000000e+00> : vector<16x288xf32>
    %48 = tpu.matmul %47, %45, %cst_42 {dimension_numbers = #tpu.dot_dimension_numbers<[1], [0], [0], [1], [0, 0, 1, 1], [], []>} : vector<16x4xbf16>, vector<4x288xbf16>, vector<16x288xf32> -> vector<16x288xf32>
    %49 = arith.addf %43, %48 : vector<16x288xf32>
    %c0_43 = arith.constant 0 : index
    %c0_44 = arith.constant 0 : index
    %c38 = arith.constant 38 : index
    %50 = vector.load %arg1[%c0_43, %c0_44, %c38] : memref<1x4x384xbf16, #tpu.memory_space<vmem>>, vector<1x4x288xbf16>
    %51 = vector.shape_cast %50 : vector<1x4x288xbf16> to vector<4x288xbf16>
    %c8 = arith.constant 8 : index
    %c0_45 = arith.constant 0 : index
    %c0_46 = arith.constant 0 : index
    %52 = vector.load %arg2[%c8, %c0_45, %c0_46] : memref<9x16x4xbf16, #tpu.memory_space<vmem>>, vector<1x16x4xbf16>
    %53 = vector.shape_cast %52 : vector<1x16x4xbf16> to vector<16x4xbf16>
    %cst_47 = arith.constant dense<0.000000e+00> : vector<16x288xf32>
    %54 = tpu.matmul %53, %51, %cst_47 {dimension_numbers = #tpu.dot_dimension_numbers<[1], [0], [0], [1], [0, 0, 1, 1], [], []>} : vector<16x4xbf16>, vector<4x288xbf16>, vector<16x288xf32> -> vector<16x288xf32>
    %55 = arith.addf %49, %54 : vector<16x288xf32>
    %c0_48 = arith.constant 0 : index
    %c0_49 = arith.constant 0 : index
    %56 = vector.load %arg5[%c0_48, %c0_49] : memref<1x288xf32, #tpu.memory_space<vmem>>, vector<1x288xf32>
    %57 = vector.broadcast %56 : vector<1x288xf32> to vector<16x288xf32>
    %58 = arith.mulf %55, %57 : vector<16x288xf32>
    %c0_50 = arith.constant 0 : index
    %c0_51 = arith.constant 0 : index
    %59 = vector.load %arg6[%c0_50, %c0_51] : memref<16x2xf32, #tpu.memory_space<vmem>>, vector<16x1xf32>
    %cst_52 = arith.constant dense<0.000000e+00> : vector<16xf32>
    %60 = vector.multi_reduction <add>, %58, %cst_52 [1] : vector<16x288xf32> to vector<16xf32>
    %61 = vector.shape_cast %60 : vector<16xf32> to vector<16x1xf32>
    %62 = arith.addf %59, %61 : vector<16x1xf32>
    %c0_53 = arith.constant 0 : index
    %c0_54 = arith.constant 0 : index
    %63 = vector.load %arg6[%c0_53, %c0_54] : memref<16x2xf32, #tpu.memory_space<vmem>>, vector<16x1xf32>
    tpu.vector_store %arg6[%c0_53, %c0_54], %62 {strides = array<i32>} : memref<16x2xf32, #tpu.memory_space<vmem>>, vector<16x1xf32>,
    %c0_55 = arith.constant 0 : index
    %c1_56 = arith.constant 1 : index
    %64 = vector.load %arg6[%c0_55, %c1_56] : memref<16x2xf32, #tpu.memory_space<vmem>>, vector<16x1xf32>
    %65 = arith.mulf %58, %55 : vector<16x288xf32>
    %cst_57 = arith.constant dense<0.000000e+00> : vector<16xf32>
    %66 = vector.multi_reduction <add>, %65, %cst_57 [1] : vector<16x288xf32> to vector<16xf32>
    %67 = vector.shape_cast %66 : vector<16xf32> to vector<16x1xf32>
    %68 = arith.addf %64, %67 : vector<16x1xf32>
    %c0_58 = arith.constant 0 : index
    %c1_59 = arith.constant 1 : index
    %69 = vector.load %arg6[%c0_58, %c1_59] : memref<16x2xf32, #tpu.memory_space<vmem>>, vector<16x1xf32>
    tpu.vector_store %arg6[%c0_58, %c1_59], %68 {strides = array<i32>} : memref<16x2xf32, #tpu.memory_space<vmem>>, vector<16x1xf32>,
    %c1_i32 = arith.constant 1 : i32
    %70 = arith.cmpi eq, %arg0, %c1_i32 : i32
    %71 = arith.extui %70 : i1 to i32
    %c0_i32_60 = arith.constant 0 : i32
    %72 = arith.cmpi ne, %71, %c0_i32_60 : i32
    scf.if %72 {
      %c0_61 = arith.constant 0 : index
      %c0_62 = arith.constant 0 : index
      %73 = vector.load %arg6[%c0_61, %c0_62] : memref<16x2xf32, #tpu.memory_space<vmem>>, vector<16x1xf32>
      %cst_63 = arith.constant 0.001953125 : f32
      %74 = vector.broadcast %cst_63 : f32 to vector<16x1xf32>
      %75 = arith.mulf %73, %74 : vector<16x1xf32>
      %c0_64 = arith.constant 0 : index
      %c1_65 = arith.constant 1 : index
      %76 = vector.load %arg6[%c0_64, %c1_65] : memref<16x2xf32, #tpu.memory_space<vmem>>, vector<16x1xf32>
      %cst_66 = arith.constant 0.001953125 : f32
      %77 = vector.broadcast %cst_66 : f32 to vector<16x1xf32>
      %78 = arith.mulf %76, %77 : vector<16x1xf32>
      %79 = arith.mulf %75, %75 : vector<16x1xf32>
      %80 = arith.subf %78, %79 : vector<16x1xf32>
      %c0_67 = arith.constant 0 : index
      %c0_68 = arith.constant 0 : index
      %81 = vector.load %arg3[%c0_67, %c0_68] : memref<16x1xf32, #tpu.memory_space<vmem>>, vector<16x1xf32>
      %cst_69 = arith.constant 9.99999974E-6 : f32
      %82 = vector.broadcast %cst_69 : f32 to vector<16x1xf32>
      %83 = arith.addf %80, %82 : vector<16x1xf32>
      %84 = math.rsqrt %83 : vector<16x1xf32>
      %85 = arith.mulf %81, %84 : vector<16x1xf32>
      %c0_70 = arith.constant 0 : index
      %c0_71 = arith.constant 0 : index
      %86 = vector.load %arg4[%c0_70, %c0_71] : memref<16x1xf32, #tpu.memory_space<vmem>>, vector<16x1xf32>
      %87 = arith.mulf %75, %85 : vector<16x1xf32>
      %88 = arith.subf %86, %87 : vector<16x1xf32>
      %c0_72 = arith.constant 0 : index
      %c0_73 = arith.constant 0 : index
      %89 = vector.load %arg6[%c0_72, %c0_73] : memref<16x2xf32, #tpu.memory_space<vmem>>, vector<16x1xf32>
      tpu.vector_store %arg6[%c0_72, %c0_73], %85 {strides = array<i32>} : memref<16x2xf32, #tpu.memory_space<vmem>>, vector<16x1xf32>,
      %c0_74 = arith.constant 0 : index
      %c1_75 = arith.constant 1 : index
      %90 = vector.load %arg6[%c0_74, %c1_75] : memref<16x2xf32, #tpu.memory_space<vmem>>, vector<16x1xf32>
      tpu.vector_store %arg6[%c0_74, %c1_75], %88 {strides = array<i32>} : memref<16x2xf32, #tpu.memory_space<vmem>>, vector<16x1xf32>,
    } else {
    }
    return
  }
  func.func @transform_0(%arg0: i32) -> (i32, i32, i32) {
    %c0_i32 = arith.constant 0 : i32
    %c0_i32_0 = arith.constant 0 : i32
    %c0_i32_1 = arith.constant 0 : i32
    return %arg0, %c0_i32, %c0_i32_0 : i32, i32, i32
  }
  func.func @transform_1(%arg0: i32) -> (i32, i32, i32) {
    %c0_i32 = arith.constant 0 : i32
    %c0_i32_0 = arith.constant 0 : i32
    %c0_i32_1 = arith.constant 0 : i32
    %c0_i32_2 = arith.constant 0 : i32
    return %c0_i32, %c0_i32_0, %c0_i32_1 : i32, i32, i32
  }
  func.func @transform_2(%arg0: i32) -> (i32, i32) {
    %c0_i32 = arith.constant 0 : i32
    %c0_i32_0 = arith.constant 0 : i32
    %c0_i32_1 = arith.constant 0 : i32
    return %c0_i32, %c0_i32_0 : i32, i32
  }
  func.func @transform_3(%arg0: i32) -> (i32, i32) {
    %c0_i32 = arith.constant 0 : i32
    %c0_i32_0 = arith.constant 0 : i32
    %c0_i32_1 = arith.constant 0 : i32
    return %c0_i32, %c0_i32_0 : i32, i32
  }
  func.func @transform_4(%arg0: i32) -> (i32, i32) {
    %c0_i32 = arith.constant 0 : i32
    %c0_i32_0 = arith.constant 0 : i32
    %c0_i32_1 = arith.constant 0 : i32
    return %c0_i32, %c0_i32_0 : i32, i32
  }
  func.func @transform_5(%arg0: i32) -> (i32, i32) {
    %c0_i32 = arith.constant 0 : i32
    %c0_i32_0 = arith.constant 0 : i32
    %c0_i32_1 = arith.constant 0 : i32
    return %c0_i32, %c0_i32_0 : i32, i32
  }
}

</mosaic_0001>

<llo_original>
// kernel: repeat_conv_pallas.2
$region0: #{repeat_conv_pallas.2}
  #allocation0 [shape = 'u32[]', space=smem, size = 0x4, offset = 0x4, fixed_abs, tag = 'smem constant byte address 0x4 - core index']
  #allocation1 [shape = 'u32[144,128]{1,0:T(1,128)}', space=vmem, size = 0x12000, scoped, tag = 'internal scratch']
  %s0 = inlined_call_operand.vmem [shape: bf16[2,4,384], index: 0, kind: input, shape index: {}]
  %s1 = inlined_call_operand.vmem [shape: bf16[9,16,4], index: 1, kind: input, shape index: {}]
  %s2 = inlined_call_operand.vmem [shape: f32[16,1], index: 2, kind: input, shape index: {}]
  %s3 = inlined_call_operand.vmem [shape: f32[16,1], index: 3, kind: input, shape index: {}]
  %s4 = inlined_call_operand.vmem [shape: f32[1,288], index: 4, kind: input, shape index: {}]
  %s5 = inlined_call_operand.vmem [shape: f32[16,2], index: 5, kind: output, shape index: {}]
  %s6 = sld [smem:[#allocation0]]
  $region61: #{repeat_conv_pallas.2} parent=0
    _
  %s8 = ssub.s32 1, %s6
  %s9 = scalar_select 0, %s8, %s6
  loop: start=0, step=1, limit=4
  $region2: #{repeat_conv_pallas.2} parent=0 // loop_pre_header
    _
  $region3: #{repeat_conv_pallas.2} parent=0 // loop_header
    %s11 = sphi 0, %s15
    %p12 = scmp.ge.s32.totalorder %s11, 4
    %s21 = sphi 0, %s23
    %s24 = sphi 0, %s21
    %s25 = sphi 0, %s24
    %s41 = sphi 0, %s25
    %s45 = sphi 0, %s45
    %s47 = sphi 0, %s45
    %s48 = sphi 0, %s47
    %s62 = sphi 0, %s48
    %s66 = sphi 0, %s66
    %s68 = sphi 0, %s66
    %s69 = sphi 0, %s68
    %s83 = sphi 0, %s69
    %s87 = sphi 0, %s87
    %s89 = sphi 0, %s87
    %s90 = sphi 0, %s89
    %s104 = sphi 0, %s90
    %s108 = sphi 0, %s108
    %s110 = sphi 0, %s108
    %s111 = sphi 0, %s110
    %s125 = sphi 0, %s111
    %s129 = sphi 0, %s129
    %s131 = sphi 0, %s129
    %s132 = sphi 0, %s131
    %s146 = sphi 0, %s132
  $region4: #{repeat_conv_pallas.2} parent=0 // loop_header_branch
    %14 = sbr.rel (%p12) target = $region8
  $region5: #{repeat_conv_pallas.2} parent=0 // loop_body
    %s16 = ssub.s32 %s11, 1
    %s17 = ssub.s32 %s11, 2
    %s18 = sadd.s32 %s11, 1
    %s19 = ssub.s32 %s11, %s18
    %p20 = scmp.eq.s32.totalorder %s19, 0
    %s22 = sadd.s32 %s21, 1
    %s23 = scalar_select %p20, %s21, %s22
    %p26 = pneg %p20
    %p27 = scmp.eq.s32.totalorder %s11, 1
    %p28 = por %p26, %p27
    %p29 = scmp.ne.s32.totalorder %s21, %s24
    %p30 = scmp.eq.s32.totalorder %s11, 0
    %p31 = por %p29, %p30
    %p32 = scmp.ne.s32.totalorder %s21, %s24
    %p33 = scmp.eq.s32.totalorder %s16, 1
    %p34 = por %p32, %p33
    %p35 = scmp.ne.s32.totalorder %s24, %s25
    %p36 = scmp.eq.s32.totalorder %s16, 0
    %p37 = por %p35, %p36
    %p38 = scmp.ne.s32.totalorder %s24, %s25
    %p39 = scmp.eq.s32.totalorder %s17, 1
    %p40 = por %p38, %p39
    %p42 = scmp.ne.s32.totalorder %s25, %s41
    %p43 = scmp.eq.s32.totalorder %s17, 0
    %p44 = por %p42, %p43
    %s46 = sadd.s32 %s45, 1
    %p49 = scmp.eq.s32.totalorder %s11, 1
    %p50 = scmp.ne.s32.totalorder %s45, %s47
    %p51 = scmp.eq.s32.totalorder %s11, 0
    %p52 = por %p50, %p51
    %p53 = scmp.ne.s32.totalorder %s45, %s47
    %p54 = scmp.eq.s32.totalorder %s16, 1
    %p55 = por %p53, %p54
    %p56 = scmp.ne.s32.totalorder %s47, %s48
    %p57 = scmp.eq.s32.totalorder %s16, 0
    %p58 = por %p56, %p57
    %p59 = scmp.ne.s32.totalorder %s47, %s48
    %p60 = scmp.eq.s32.totalorder %s17, 1
    %p61 = por %p59, %p60
    %p63 = scmp.ne.s32.totalorder %s48, %s62
    %p64 = scmp.eq.s32.totalorder %s17, 0
    %p65 = por %p63, %p64
    %s67 = sadd.s32 %s66, 1
    %p70 = scmp.eq.s32.totalorder %s11, 1
    %p71 = scmp.ne.s32.totalorder %s66, %s68
    %p72 = scmp.eq.s32.totalorder %s11, 0
    %p73 = por %p71, %p72
    %p74 = scmp.ne.s32.totalorder %s66, %s68
    %p75 = scmp.eq.s32.totalorder %s16, 1
    %p76 = por %p74, %p75
    %p77 = scmp.ne.s32.totalorder %s68, %s69
    %p78 = scmp.eq.s32.totalorder %s16, 0
    %p79 = por %p77, %p78
    %p80 = scmp.ne.s32.totalorder %s68, %s69
    %p81 = scmp.eq.s32.totalorder %s17, 1
    %p82 = por %p80, %p81
    %p84 = scmp.ne.s32.totalorder %s69, %s83
    %p85 = scmp.eq.s32.totalorder %s17, 0
    %p86 = por %p84, %p85
    %s88 = sadd.s32 %s87, 1
    %p91 = scmp.eq.s32.totalorder %s11, 1
    %p92 = scmp.ne.s32.totalorder %s87, %s89
    %p93 = scmp.eq.s32.totalorder %s11, 0
    %p94 = por %p92, %p93
    %p95 = scmp.ne.s32.totalorder %s87, %s89
    %p96 = scmp.eq.s32.totalorder %s16, 1
    %p97 = por %p95, %p96
    %p98 = scmp.ne.s32.totalorder %s89, %s90
    %p99 = scmp.eq.s32.totalorder %s16, 0
    %p100 = por %p98, %p99
    %p101 = scmp.ne.s32.totalorder %s89, %s90
    %p102 = scmp.eq.s32.totalorder %s17, 1
    %p103 = por %p101, %p102
    %p105 = scmp.ne.s32.totalorder %s90, %s104
    %p106 = scmp.eq.s32.totalorder %s17, 0
    %p107 = por %p105, %p106
    %s109 = sadd.s32 %s108, 1
    %p112 = scmp.eq.s32.totalorder %s11, 1
    %p113 = scmp.ne.s32.totalorder %s108, %s110
    %p114 = scmp.eq.s32.totalorder %s11, 0
    %p115 = por %p113, %p114
    %p116 = scmp.ne.s32.totalorder %s108, %s110
    %p117 = scmp.eq.s32.totalorder %s16, 1
    %p118 = por %p116, %p117
    %p119 = scmp.ne.s32.totalorder %s110, %s111
    %p120 = scmp.eq.s32.totalorder %s16, 0
    %p121 = por %p119, %p120
    %p122 = scmp.ne.s32.totalorder %s110, %s111
    %p123 = scmp.eq.s32.totalorder %s17, 1
    %p124 = por %p122, %p123
    %p126 = scmp.ne.s32.totalorder %s111, %s125
    %p127 = scmp.eq.s32.totalorder %s17, 0
    %p128 = por %p126, %p127
    %s130 = sadd.s32 %s129, 1
    %p133 = scmp.eq.s32.totalorder %s11, 1
    %p134 = scmp.ne.s32.totalorder %s129, %s131
    %p135 = scmp.eq.s32.totalorder %s11, 0
    %p136 = por %p134, %p135
    %p137 = scmp.ne.s32.totalorder %s129, %s131
    %p138 = scmp.eq.s32.totalorder %s16, 1
    %p139 = por %p137, %p138
    %p140 = scmp.ne.s32.totalorder %s131, %s132
    %p141 = scmp.eq.s32.totalorder %s16, 0
    %p142 = por %p140, %p141
    %p143 = scmp.ne.s32.totalorder %s131, %s132
    %p144 = scmp.eq.s32.totalorder %s17, 1
    %p145 = por %p143, %p144
    %p147 = scmp.ne.s32.totalorder %s132, %s146
    %p148 = scmp.eq.s32.totalorder %s17, 0
    %p149 = por %p147, %p148
    %p150 = scmp.le.s32.totalorder 1, %s11
    %p151 = scmp.lt.s32.totalorder %s11, 3
    %p152 = pnand %p150, %p151
    %p153 = pneg %p152
    // Predicated region
    $region9: #{repeat_conv_pallas.2} parent=5 // pred_check
      _
    $region10: #{repeat_conv_pallas.2} parent=5 // pred_check_branch
      %155 = sbr.rel (%p152) target = $region12
    $region11: #{repeat_conv_pallas.2} parent=5 // pred_region
      %s156 = ssub.s32 %s11, 1
      // Predicated region
      $region13: #{repeat_conv_pallas.2} parent=11 // pred_check
        %p157 = pneg %p58
      $region14: #{repeat_conv_pallas.2} parent=11 // pred_check_branch
        %159 = sbr.rel (%p157) target = $region16
      $region15: #{repeat_conv_pallas.2} parent=11 // pred_region
        _
      $region16: #{repeat_conv_pallas.2} parent=11 // pred_fallthru
        _
      // Predicated region
      $region17: #{repeat_conv_pallas.2} parent=11 // pred_check
        %p160 = pneg %p79
      $region18: #{repeat_conv_pallas.2} parent=11 // pred_check_branch
        %162 = sbr.rel (%p160) target = $region20
      $region19: #{repeat_conv_pallas.2} parent=11 // pred_region
        _
      $region20: #{repeat_conv_pallas.2} parent=11 // pred_fallthru
        _
      // Predicated region
      $region21: #{repeat_conv_pallas.2} parent=11 // pred_check
        %p163 = pneg %p100
      $region22: #{repeat_conv_pallas.2} parent=11 // pred_check_branch
        %165 = sbr.rel (%p163) target = $region24
      $region23: #{repeat_conv_pallas.2} parent=11 // pred_region
        _
      $region24: #{repeat_conv_pallas.2} parent=11 // pred_fallthru
        _
      // Predicated region
      $region25: #{repeat_conv_pallas.2} parent=11 // pred_check
        %p166 = pneg %p121
      $region26: #{repeat_conv_pallas.2} parent=11 // pred_check_branch
        %168 = sbr.rel (%p166) target = $region28
      $region27: #{repeat_conv_pallas.2} parent=11 // pred_region
        _
      $region28: #{repeat_conv_pallas.2} parent=11 // pred_fallthru
        _
    $region12: #{repeat_conv_pallas.2} parent=5 // pred_fallthru
      _
    %p169 = scmp.lt.s32.totalorder %s11, 2
    // Predicated region
    $region29: #{repeat_conv_pallas.2} parent=5 // pred_check
      %p170 = pneg %p169
    $region30: #{repeat_conv_pallas.2} parent=5 // pred_check_branch
      %172 = sbr.rel (%p170) target = $region32
    $region31: #{repeat_conv_pallas.2} parent=5 // pred_region
      // Predicated region
      $region33: #{repeat_conv_pallas.2} parent=31 // pred_check
        %p173 = pneg %p31
      $region34: #{repeat_conv_pallas.2} parent=31 // pred_check_branch
        %175 = sbr.rel (%p173) target = $region36
      $region35: #{repeat_conv_pallas.2} parent=31 // pred_region
        %p176 = scmp.lt.s32.totalorder %s11, 1
        %s177 = scalar_select %p176, %s11, 1
        %s178 = smul.addr %s177, 3
        %s179 = smul.addr %s178, 2
        %s180 = scalar_lea.vmem %s0, %s179
      $region36: #{repeat_conv_pallas.2} parent=31 // pred_fallthru
        _
    $region32: #{repeat_conv_pallas.2} parent=5 // pred_fallthru
      _
    %p181 = scmp.le.s32.totalorder 1, %s11
    %p182 = scmp.lt.s32.totalorder %s11, 3
    %p183 = pnand %p181, %p182
    %p184 = pneg %p183
    // Predicated region
    $region37: #{repeat_conv_pallas.2} parent=5 // pred_check
      _
    $region38: #{repeat_conv_pallas.2} parent=5 // pred_check_branch
      %186 = sbr.rel (%p183) target = $region40
    $region39: #{repeat_conv_pallas.2} parent=5 // pred_region
      %s187 = ssub.s32 %s11, 1
      %p188 = scmp.lt.s32.totalorder %s16, 1
      %s189 = scalar_select %p188, %s16, 1
      %s190 = smul.addr %s189, 3
      %s191 = smul.addr %s190, 2
      %s192 = scalar_lea.vmem %s0, %s191
      %p193 = pneg %p37
      %p194 = pneg %p34
      %p195 = pneg %p58
      %p196 = pneg %p55
      %p197 = pneg %p79
      %p198 = pneg %p76
      %p199 = pneg %p100
      %p200 = pneg %p97
      %p201 = pneg %p121
      %p202 = pneg %p118
      %p203 = pneg %p142
      %p204 = pneg %p139
      %p205 = scmp.lt.s32.totalorder %s16, 1
      %s206 = scalar_select %p205, %s16, 1
      %s207 = smul.addr %s206, 3
      %s208 = smul.addr %s207, 2
      %s209 = scalar_lea.vmem %s0, %s208
      %p211 = scmp.eq.s32.totalorder %s16, 0
      // Predicated region
      $region41: #{repeat_conv_pallas.2} parent=39 // pred_check
        %p212 = pneg %p211
      $region42: #{repeat_conv_pallas.2} parent=39 // pred_check_branch
        %214 = sbr.rel (%p212) target = $region44
      $region43: #{repeat_conv_pallas.2} parent=39 // pred_region
        %vm215 = vcmask 15360
        %216 = vst.msk [vmem:[%s5] sm:$0xff] %vm215, 0.0
        %217 = vst.msk [vmem:[%s5 + $0x8] sm:$0xff] %vm215, 0.0
      $region44: #{repeat_conv_pallas.2} parent=39 // pred_fallthru
        _
      %v218 = vld [vmem:[%s209] sm:$0x3f]
      %v219 = vld [vmem:[%s1] sm:$0xf]
      %v220 = vld [vmem:[%s1 + $0x4] sm:$0xf]
      %s221 = scalar_lea.vmem %s1, 8
      %v222 = vld [vmem:[%s221] sm:$0xf]
      %v223 = vld [vmem:[%s221 + $0x4] sm:$0xf]
      %v226 = vunpack.c.l.b16 %v222
      %v227 = vunpack.c.l.b16 %v223
      %v228 = vpack.c.b16 %v227, %v226
      %v230 = vcombine.high %v218, %v218
      %v232 = vunpack.c.l.s4 1983009808
      %v233 = vunpack.c.0.s8 %v232
      %v234 = vlaneseq
      %v235 = vshrl.u32 %v234, 7
      %v236 = vsub.s32 %v233, %v235
      %v237 = vrot.slane %v218, %v236
      %v239 = vunpack.c.l.s4 1983009808
      %v240 = vunpack.c.0.s8 %v239
      %v241 = vlaneseq
      %v242 = vshrl.u32 %v241, 7
      %v243 = vsub.s32 %v240, %v242
      %v244 = vrot.slane %v230, %v243
      %v245 = vcombine.high %v237, %v237
      %246 = vrot.lane.b32.xlu0 %v237, 127
      %v247 = vpop.permute.xlu0 %246
      %248 = vrot.lane.b32.xlu0 %v245, 127
      %v249 = vpop.permute.xlu0 %248
      %250 = vrot.lane.b32.xlu0 %v244, 127
      %v251 = vpop.permute.xlu0 %250
      %vm252 = vcmask 1039360
      %v253 = vsel %vm252, %v247, %v249
      %v254 = vsel %vm252, %v249, %v251
      %vm255 = vcmask 31744
      %v257 = vsel %vm255, %v228, 0
      %vm259 = vcmask 1041408
      %v261 = vsel %vm259, %v253, 0
      %v264 = vsel %vm259, %v254, 0
      %v267 = vsel %vm259, %v251, 0
      %269 = vmatprep.subr.bf16.mxu0 %v264
      %270 = vmatpush1.bf16.msra.mxu0 %v261
      %271 = vmatprep.subr.bf16.mxu0 0
      %272 = vmatpush1.bf16.msra.mxu0 0
      %273 = vmatprep.subr.bf16.mxu0 0
      %274 = vmatpush1.bf16.msra.mxu0 0
      %275 = vmatprep.subr.bf16.mxu0 0
      %276 = vmatpush1.bf16.msra.mxu0 0
      %277 = vmatprep.subr.bf16.mxu0 0
      %278 = vmatpush1.bf16.msra.mxu0 0
      %279 = vmatprep.subr.bf16.mxu0 0
      %280 = vmatpush1.bf16.msra.mxu0 0
      %281 = vmatprep.subr.bf16.mxu0 0
      %282 = vmatpush1.bf16.msra.mxu0 0
      %283 = vmatprep.subr.bf16.mxu0 0
      %284 = vmatpush1.bf16.msra.mxu0 0
      %285 = vmatprep.subr.bf16.mxu0 0
      %286 = vmatpush1.bf16.msra.mxu0 0
      %287 = vmatprep.subr.bf16.mxu0 0
      %288 = vmatpush1.bf16.msra.mxu0 0
      %289 = vmatprep.subr.bf16.mxu0 0
      %290 = vmatpush1.bf16.msra.mxu0 0
      %291 = vmatprep.subr.bf16.mxu0 0
      %292 = vmatpush1.bf16.msra.mxu0 0
      %293 = vmatprep.subr.bf16.mxu0 0
      %294 = vmatpush1.bf16.msra.mxu0 0
      %295 = vmatprep.subr.bf16.mxu0 0
      %296 = vmatpush1.bf16.msra.mxu0 0
      %297 = vmatprep.subr.bf16.mxu0 0
      %298 = vmatpush1.bf16.msra.mxu0 0
      %299 = vmatprep.subr.bf16.mxu0 0
      %300 = vmatpush1.bf16.msra.mxu0 0
      %301 = vmatprep.mubr.bf16.mxu0 0
      %302 = vmatmul.mubr.bf16.gmra.mrb[0].mxu0 %v257
      %v303 = vpop.f32.mrb[0].mxu0
      %v304 = vadd.f32 0.0, %v303
      %v305 = vpop.f32.mrb[0].mxu0
      %v306 = vadd.f32 0.0, %v305
      %v307 = vpop.f32.mrb[0].mxu0
      %v308 = vadd.f32 0.0, %v307
      %v309 = vpop.f32.mrb[0].mxu0
      %v310 = vadd.f32 0.0, %v309
      %311 = vdwg.mxu0
      %312 = vmatprep.subr.bf16.mxu0 0
      %313 = vmatpush1.bf16.msra.mxu0 %v267
      %314 = vmatprep.subr.bf16.mxu0 0
      %315 = vmatpush1.bf16.msra.mxu0 0
      %316 = vmatprep.subr.bf16.mxu0 0
      %317 = vmatpush1.bf16.msra.mxu0 0
      %318 = vmatprep.subr.bf16.mxu0 0
      %319 = vmatpush1.bf16.msra.mxu0 0
      %320 = vmatprep.subr.bf16.mxu0 0
      %321 = vmatpush1.bf16.msra.mxu0 0
      %322 = vmatprep.subr.bf16.mxu0 0
      %323 = vmatpush1.bf16.msra.mxu0 0
      %324 = vmatprep.subr.bf16.mxu0 0
      %325 = vmatpush1.bf16.msra.mxu0 0
      %326 = vmatprep.subr.bf16.mxu0 0
      %327 = vmatpush1.bf16.msra.mxu0 0
      %328 = vmatprep.subr.bf16.mxu0 0
      %329 = vmatpush1.bf16.msra.mxu0 0
      %330 = vmatprep.subr.bf16.mxu0 0
      %331 = vmatpush1.bf16.msra.mxu0 0
      %332 = vmatprep.subr.bf16.mxu0 0
      %333 = vmatpush1.bf16.msra.mxu0 0
      %334 = vmatprep.subr.bf16.mxu0 0
      %335 = vmatpush1.bf16.msra.mxu0 0
      %336 = vmatprep.subr.bf16.mxu0 0
      %337 = vmatpush1.bf16.msra.mxu0 0
      %338 = vmatprep.subr.bf16.mxu0 0
      %339 = vmatpush1.bf16.msra.mxu0 0
      %340 = vmatprep.subr.bf16.mxu0 0
      %341 = vmatpush1.bf16.msra.mxu0 0
      %342 = vmatprep.subr.bf16.mxu0 0
      %343 = vmatpush1.bf16.msra.mxu0 0
      %344 = vmatprep.mubr.bf16.mxu0 0
      %345 = vmatmul.mubr.bf16.gmra.mrb[0].mxu0 %v257
      %v346 = vpop.f32.mrb[0].mxu0
      %v347 = vadd.f32 0.0, %v346
      %v348 = vpop.f32.mrb[0].mxu0
      %v349 = vpop.f32.mrb[0].mxu0
      %v350 = vadd.f32 0.0, %v349
      %v351 = vpop.f32.mrb[0].mxu0
      %352 = vdwg.mxu0
      %v355 = vunpack.c.l.b16 %v219
      %v356 = vunpack.c.l.b16 %v220
      %v357 = vpack.c.b16 %v356, %v355
      %v359 = vsel %vm255, %v357, 0
      %v362 = vsel %vm259, %v237, 0
      %v365 = vsel %vm259, %v245, 0
      %v368 = vsel %vm259, %v244, 0
      %370 = vmatprep.subr.bf16.mxu0 %v365
      %371 = vmatpush1.bf16.msra.mxu0 %v362
      %372 = vmatprep.subr.bf16.mxu0 0
      %373 = vmatpush1.bf16.msra.mxu0 0
      %374 = vmatprep.subr.bf16.mxu0 0
      %375 = vmatpush1.bf16.msra.mxu0 0
      %376 = vmatprep.subr.bf16.mxu0 0
      %377 = vmatpush1.bf16.msra.mxu0 0
      %378 = vmatprep.subr.bf16.mxu0 0
      %379 = vmatpush1.bf16.msra.mxu0 0
      %380 = vmatprep.subr.bf16.mxu0 0
      %381 = vmatpush1.bf16.msra.mxu0 0
      %382 = vmatprep.subr.bf16.mxu0 0
      %383 = vmatpush1.bf16.msra.mxu0 0
      %384 = vmatprep.subr.bf16.mxu0 0
      %385 = vmatpush1.bf16.msra.mxu0 0
      %386 = vmatprep.subr.bf16.mxu0 0
      %387 = vmatpush1.bf16.msra.mxu0 0
      %388 = vmatprep.subr.bf16.mxu0 0
      %389 = vmatpush1.bf16.msra.mxu0 0
      %390 = vmatprep.subr.bf16.mxu0 0
      %391 = vmatpush1.bf16.msra.mxu0 0
      %392 = vmatprep.subr.bf16.mxu0 0
      %393 = vmatpush1.bf16.msra.mxu0 0
      %394 = vmatprep.subr.bf16.mxu0 0
      %395 = vmatpush1.bf16.msra.mxu0 0
      %396 = vmatprep.subr.bf16.mxu0 0
      %397 = vmatpush1.bf16.msra.mxu0 0
      %398 = vmatprep.subr.bf16.mxu0 0
      %399 = vmatpush1.bf16.msra.mxu0 0
      %400 = vmatprep.subr.bf16.mxu0 0
      %401 = vmatpush1.bf16.msra.mxu0 0
      %402 = vmatprep.mubr.bf16.mxu0 0
      %403 = vmatmul.mubr.bf16.gmra.mrb[0].mxu0 %v359
      %v404 = vpop.f32.mrb[0].mxu0
      %v405 = vadd.f32 %v304, %v404
      %v406 = vpop.f32.mrb[0].mxu0
      %v407 = vadd.f32 %v306, %v406
      %v408 = vpop.f32.mrb[0].mxu0
      %v409 = vadd.f32 %v308, %v408
      %v410 = vpop.f32.mrb[0].mxu0
      %v411 = vadd.f32 %v310, %v410
      %412 = vdwg.mxu0
      %413 = vmatprep.subr.bf16.mxu0 0
      %414 = vmatpush1.bf16.msra.mxu0 %v368
      %415 = vmatprep.subr.bf16.mxu0 0
      %416 = vmatpush1.bf16.msra.mxu0 0
      %417 = vmatprep.subr.bf16.mxu0 0
      %418 = vmatpush1.bf16.msra.mxu0 0
      %419 = vmatprep.subr.bf16.mxu0 0
      %420 = vmatpush1.bf16.msra.mxu0 0
      %421 = vmatprep.subr.bf16.mxu0 0
      %422 = vmatpush1.bf16.msra.mxu0 0
      %423 = vmatprep.subr.bf16.mxu0 0
      %424 = vmatpush1.bf16.msra.mxu0 0
      %425 = vmatprep.subr.bf16.mxu0 0
      %426 = vmatpush1.bf16.msra.mxu0 0
      %427 = vmatprep.subr.bf16.mxu0 0
      %428 = vmatpush1.bf16.msra.mxu0 0
      %429 = vmatprep.subr.bf16.mxu0 0
      %430 = vmatpush1.bf16.msra.mxu0 0
      %431 = vmatprep.subr.bf16.mxu0 0
      %432 = vmatpush1.bf16.msra.mxu0 0
      %433 = vmatprep.subr.bf16.mxu0 0
      %434 = vmatpush1.bf16.msra.mxu0 0
      %435 = vmatprep.subr.bf16.mxu0 0
      %436 = vmatpush1.bf16.msra.mxu0 0
      %437 = vmatprep.subr.bf16.mxu0 0
      %438 = vmatpush1.bf16.msra.mxu0 0
      %439 = vmatprep.subr.bf16.mxu0 0
      %440 = vmatpush1.bf16.msra.mxu0 0
      %441 = vmatprep.subr.bf16.mxu0 0
      %442 = vmatpush1.bf16.msra.mxu0 0
      %443 = vmatprep.subr.bf16.mxu0 0
      %444 = vmatpush1.bf16.msra.mxu0 0
      %445 = vmatprep.mubr.bf16.mxu0 0
      %446 = vmatmul.mubr.bf16.gmra.mrb[0].mxu0 %v359
      %v447 = vpop.f32.mrb[0].mxu0
      %v448 = vadd.f32 %v347, %v447
      %v449 = vpop.f32.mrb[0].mxu0
      %v450 = vpop.f32.mrb[0].mxu0
      %v451 = vadd.f32 %v350, %v450
      %v452 = vpop.f32.mrb[0].mxu0
      %453 = vdwg.mxu0
      %v454 = vld [vmem:[%s209] sm:$0x3f]
      %s455 = scalar_lea.vmem %s1, 16
      %v456 = vld [vmem:[%s455] sm:$0xf]
      %v457 = vld [vmem:[%s455 + $0x4] sm:$0xf]
      %v460 = vunpack.c.l.b16 %v456
      %v461 = vunpack.c.l.b16 %v457
      %v462 = vpack.c.b16 %v461, %v460
      %v464 = vcombine.high %v454, %v454
      %v466 = vunpack.c.l.s4 1983009808
      %v467 = vunpack.c.0.s8 %v466
      %v468 = vlaneseq
      %v469 = vshrl.u32 %v468, 7
      %v470 = vsub.s32 %v467, %v469
      %v471 = vrot.slane %v454, %v470
      %v473 = vunpack.c.l.s4 1983009808
      %v474 = vunpack.c.0.s8 %v473
      %v475 = vlaneseq
      %v476 = vshrl.u32 %v475, 7
      %v477 = vsub.s32 %v474, %v476
      %v478 = vrot.slane %v464, %v477
      %v479 = vcombine.high %v471, %v471
      %480 = vrot.lane.b32.xlu0 %v471, 126
      %v481 = vpop.permute.xlu0 %480
      %482 = vrot.lane.b32.xlu0 %v479, 126
      %v483 = vpop.permute.xlu0 %482
      %484 = vrot.lane.b32.xlu0 %v478, 126
      %v485 = vpop.permute.xlu0 %484
      %vm486 = vcmask 1031168
      %v487 = vsel %vm486, %v481, %v483
      %v488 = vsel %vm486, %v483, %v485
      %v490 = vsel %vm255, %v462, 0
      %v493 = vsel %vm259, %v487, 0
      %v496 = vsel %vm259, %v488, 0
      %v499 = vsel %vm259, %v485, 0
      %501 = vmatprep.subr.bf16.mxu0 %v496
      %502 = vmatpush1.bf16.msra.mxu0 %v493
      %503 = vmatprep.subr.bf16.mxu0 0
      %504 = vmatpush1.bf16.msra.mxu0 0
      %505 = vmatprep.subr.bf16.mxu0 0
      %506 = vmatpush1.bf16.msra.mxu0 0
      %507 = vmatprep.subr.bf16.mxu0 0
      %508 = vmatpush1.bf16.msra.mxu0 0
      %509 = vmatprep.subr.bf16.mxu0 0
      %510 = vmatpush1.bf16.msra.mxu0 0
      %511 = vmatprep.subr.bf16.mxu0 0
      %512 = vmatpush1.bf16.msra.mxu0 0
      %513 = vmatprep.subr.bf16.mxu0 0
      %514 = vmatpush1.bf16.msra.mxu0 0
      %515 = vmatprep.subr.bf16.mxu0 0
      %516 = vmatpush1.bf16.msra.mxu0 0
      %517 = vmatprep.subr.bf16.mxu0 0
      %518 = vmatpush1.bf16.msra.mxu0 0
      %519 = vmatprep.subr.bf16.mxu0 0
      %520 = vmatpush1.bf16.msra.mxu0 0
      %521 = vmatprep.subr.bf16.mxu0 0
      %522 = vmatpush1.bf16.msra.mxu0 0
      %523 = vmatprep.subr.bf16.mxu0 0
      %524 = vmatpush1.bf16.msra.mxu0 0
      %525 = vmatprep.subr.bf16.mxu0 0
      %526 = vmatpush1.bf16.msra.mxu0 0
      %527 = vmatprep.subr.bf16.mxu0 0
      %528 = vmatpush1.bf16.msra.mxu0 0
      %529 = vmatprep.subr.bf16.mxu0 0
      %530 = vmatpush1.bf16.msra.mxu0 0
      %531 = vmatprep.subr.bf16.mxu0 0
      %532 = vmatpush1.bf16.msra.mxu0 0
      %533 = vmatprep.mubr.bf16.mxu0 0
      %534 = vmatmul.mubr.bf16.gmra.mrb[0].mxu0 %v490
      %v535 = vpop.f32.mrb[0].mxu0
      %v536 = vadd.f32 0.0, %v535
      %v537 = vpop.f32.mrb[0].mxu0
      %v538 = vadd.f32 0.0, %v537
      %v539 = vpop.f32.mrb[0].mxu0
      %v540 = vadd.f32 0.0, %v539
      %v541 = vpop.f32.mrb[0].mxu0
      %v542 = vadd.f32 0.0, %v541
      %543 = vdwg.mxu0
      %544 = vmatprep.subr.bf16.mxu0 0
      %545 = vmatpush1.bf16.msra.mxu0 %v499
      %546 = vmatprep.subr.bf16.mxu0 0
      %547 = vmatpush1.bf16.msra.mxu0 0
      %548 = vmatprep.subr.bf16.mxu0 0
      %549 = vmatpush1.bf16.msra.mxu0 0
      %550 = vmatprep.subr.bf16.mxu0 0
      %551 = vmatpush1.bf16.msra.mxu0 0
      %552 = vmatprep.subr.bf16.mxu0 0
      %553 = vmatpush1.bf16.msra.mxu0 0
      %554 = vmatprep.subr.bf16.mxu0 0
      %555 = vmatpush1.bf16.msra.mxu0 0
      %556 = vmatprep.subr.bf16.mxu0 0
      %557 = vmatpush1.bf16.msra.mxu0 0
      %558 = vmatprep.subr.bf16.mxu0 0
      %559 = vmatpush1.bf16.msra.mxu0 0
      %560 = vmatprep.subr.bf16.mxu0 0
      %561 = vmatpush1.bf16.msra.mxu0 0
      %562 = vmatprep.subr.bf16.mxu0 0
      %563 = vmatpush1.bf16.msra.mxu0 0
      %564 = vmatprep.subr.bf16.mxu0 0
      %565 = vmatpush1.bf16.msra.mxu0 0
      %566 = vmatprep.subr.bf16.mxu0 0
      %567 = vmatpush1.bf16.msra.mxu0 0
      %568 = vmatprep.subr.bf16.mxu0 0
      %569 = vmatpush1.bf16.msra.mxu0 0
      %570 = vmatprep.subr.bf16.mxu0 0
      %571 = vmatpush1.bf16.msra.mxu0 0
      %572 = vmatprep.subr.bf16.mxu0 0
      %573 = vmatpush1.bf16.msra.mxu0 0
      %574 = vmatprep.subr.bf16.mxu0 0
      %575 = vmatpush1.bf16.msra.mxu0 0
      %576 = vmatprep.mubr.bf16.mxu0 0
      %577 = vmatmul.mubr.bf16.gmra.mrb[0].mxu0 %v490
      %v578 = vpop.f32.mrb[0].mxu0
      %v579 = vadd.f32 0.0, %v578
      %v580 = vpop.f32.mrb[0].mxu0
      %v581 = vpop.f32.mrb[0].mxu0
      %v582 = vadd.f32 0.0, %v581
      %v583 = vpop.f32.mrb[0].mxu0
      %584 = vdwg.mxu0
      %v585 = vadd.f32 %v405, %v536
      %v586 = vadd.f32 %v407, %v538
      %v587 = vadd.f32 %v448, %v579
      %v588 = vadd.f32 %v409, %v540
      %v589 = vadd.f32 %v411, %v542
      %v590 = vadd.f32 %v451, %v582
      %v591 = vld [vmem:[%s209] sm:$0x3f]
      %s592 = scalar_lea.vmem %s1, 24
      %v593 = vld [vmem:[%s592] sm:$0xf]
      %v594 = vld [vmem:[%s592 + $0x4] sm:$0xf]
      %v597 = vunpack.c.l.b16 %v593
      %v598 = vunpack.c.l.b16 %v594
      %v599 = vpack.c.b16 %v598, %v597
      %v601 = vcombine.high %v591, %v591
      %v603 = vunpack.c.l.s4 1983009808
      %v604 = vunpack.c.0.s8 %v603
      %v605 = vlaneseq
      %v606 = vshrl.u32 %v605, 7
      %v607 = vsub.s32 %v604, %v606
      %v608 = vrot.slane %v591, %v607
      %v610 = vunpack.c.l.s4 1983009808
      %v611 = vunpack.c.0.s8 %v610
      %v612 = vlaneseq
      %v613 = vshrl.u32 %v612, 7
      %v614 = vsub.s32 %v611, %v613
      %v615 = vrot.slane %v601, %v614
      %v616 = vcombine.high %v608, %v608
      %617 = vrot.lane.b32.xlu0 %v608, 110
      %v618 = vpop.permute.xlu0 %617
      %619 = vrot.lane.b32.xlu0 %v616, 110
      %v620 = vpop.permute.xlu0 %619
      %621 = vrot.lane.b32.xlu0 %v615, 110
      %v622 = vpop.permute.xlu0 %621
      %vm623 = vcmask 900096
      %v624 = vsel %vm623, %v618, %v620
      %v625 = vsel %vm623, %v620, %v622
      %v627 = vsel %vm255, %v599, 0
      %v630 = vsel %vm259, %v624, 0
      %v633 = vsel %vm259, %v625, 0
      %v636 = vsel %vm259, %v622, 0
      %638 = vmatprep.subr.bf16.mxu0 %v633
      %639 = vmatpush1.bf16.msra.mxu0 %v630
      %640 = vmatprep.subr.bf16.mxu0 0
      %641 = vmatpush1.bf16.msra.mxu0 0
      %642 = vmatprep.subr.bf16.mxu0 0
      %643 = vmatpush1.bf16.msra.mxu0 0
      %644 = vmatprep.subr.bf16.mxu0 0
      %645 = vmatpush1.bf16.msra.mxu0 0
      %646 = vmatprep.subr.bf16.mxu0 0
      %647 = vmatpush1.bf16.msra.mxu0 0
      %648 = vmatprep.subr.bf16.mxu0 0
      %649 = vmatpush1.bf16.msra.mxu0 0
      %650 = vmatprep.subr.bf16.mxu0 0
      %651 = vmatpush1.bf16.msra.mxu0 0
      %652 = vmatprep.subr.bf16.mxu0 0
      %653 = vmatpush1.bf16.msra.mxu0 0
      %654 = vmatprep.subr.bf16.mxu0 0
      %655 = vmatpush1.bf16.msra.mxu0 0
      %656 = vmatprep.subr.bf16.mxu0 0
      %657 = vmatpush1.bf16.msra.mxu0 0
      %658 = vmatprep.subr.bf16.mxu0 0
      %659 = vmatpush1.bf16.msra.mxu0 0
      %660 = vmatprep.subr.bf16.mxu0 0
      %661 = vmatpush1.bf16.msra.mxu0 0
      %662 = vmatprep.subr.bf16.mxu0 0
      %663 = vmatpush1.bf16.msra.mxu0 0
      %664 = vmatprep.subr.bf16.mxu0 0
      %665 = vmatpush1.bf16.msra.mxu0 0
      %666 = vmatprep.subr.bf16.mxu0 0
      %667 = vmatpush1.bf16.msra.mxu0 0
      %668 = vmatprep.subr.bf16.mxu0 0
      %669 = vmatpush1.bf16.msra.mxu0 0
      %670 = vmatprep.mubr.bf16.mxu0 0
      %671 = vmatmul.mubr.bf16.gmra.mrb[0].mxu0 %v627
      %v672 = vpop.f32.mrb[0].mxu0
      %v673 = vadd.f32 0.0, %v672
      %v674 = vpop.f32.mrb[0].mxu0
      %v675 = vadd.f32 0.0, %v674
      %v676 = vpop.f32.mrb[0].mxu0
      %v677 = vadd.f32 0.0, %v676
      %v678 = vpop.f32.mrb[0].mxu0
      %v679 = vadd.f32 0.0, %v678
      %680 = vdwg.mxu0
      %681 = vmatprep.subr.bf16.mxu0 0
      %682 = vmatpush1.bf16.msra.mxu0 %v636
      %683 = vmatprep.subr.bf16.mxu0 0
      %684 = vmatpush1.bf16.msra.mxu0 0
      %685 = vmatprep.subr.bf16.mxu0 0
      %686 = vmatpush1.bf16.msra.mxu0 0
      %687 = vmatprep.subr.bf16.mxu0 0
      %688 = vmatpush1.bf16.msra.mxu0 0
      %689 = vmatprep.subr.bf16.mxu0 0
      %690 = vmatpush1.bf16.msra.mxu0 0
      %691 = vmatprep.subr.bf16.mxu0 0
      %692 = vmatpush1.bf16.msra.mxu0 0
      %693 = vmatprep.subr.bf16.mxu0 0
      %694 = vmatpush1.bf16.msra.mxu0 0
      %695 = vmatprep.subr.bf16.mxu0 0
      %696 = vmatpush1.bf16.msra.mxu0 0
      %697 = vmatprep.subr.bf16.mxu0 0
      %698 = vmatpush1.bf16.msra.mxu0 0
      %699 = vmatprep.subr.bf16.mxu0 0
      %700 = vmatpush1.bf16.msra.mxu0 0
      %701 = vmatprep.subr.bf16.mxu0 0
      %702 = vmatpush1.bf16.msra.mxu0 0
      %703 = vmatprep.subr.bf16.mxu0 0
      %704 = vmatpush1.bf16.msra.mxu0 0
      %705 = vmatprep.subr.bf16.mxu0 0
      %706 = vmatpush1.bf16.msra.mxu0 0
      %707 = vmatprep.subr.bf16.mxu0 0
      %708 = vmatpush1.bf16.msra.mxu0 0
      %709 = vmatprep.subr.bf16.mxu0 0
      %710 = vmatpush1.bf16.msra.mxu0 0
      %711 = vmatprep.subr.bf16.mxu0 0
      %712 = vmatpush1.bf16.msra.mxu0 0
      %713 = vmatprep.mubr.bf16.mxu0 0
      %714 = vmatmul.mubr.bf16.gmra.mrb[0].mxu0 %v627
      %v715 = vpop.f32.mrb[0].mxu0
      %v716 = vadd.f32 0.0, %v715
      %v717 = vpop.f32.mrb[0].mxu0
      %v718 = vpop.f32.mrb[0].mxu0
      %v719 = vadd.f32 0.0, %v718
      %v720 = vpop.f32.mrb[0].mxu0
      %721 = vdwg.mxu0
      %v722 = vadd.f32 %v585, %v673
      %v723 = vadd.f32 %v586, %v675
      %v724 = vadd.f32 %v587, %v716
      %v725 = vadd.f32 %v588, %v677
      %v726 = vadd.f32 %v589, %v679
      %v727 = vadd.f32 %v590, %v719
      %v728 = vld [vmem:[%s209] sm:$0x3f]
      %s729 = scalar_lea.vmem %s1, 32
      %v730 = vld [vmem:[%s729] sm:$0xf]
      %v731 = vld [vmem:[%s729 + $0x4] sm:$0xf]
      %v734 = vunpack.c.l.b16 %v730
      %v735 = vunpack.c.l.b16 %v731
      %v736 = vpack.c.b16 %v735, %v734
      %v738 = vcombine.high %v728, %v728
      %v740 = vunpack.c.l.s4 1983009808
      %v741 = vunpack.c.0.s8 %v740
      %v742 = vlaneseq
      %v743 = vshrl.u32 %v742, 7
      %v744 = vsub.s32 %v741, %v743
      %v745 = vrot.slane %v728, %v744
      %v747 = vunpack.c.l.s4 1983009808
      %v748 = vunpack.c.0.s8 %v747
      %v749 = vlaneseq
      %v750 = vshrl.u32 %v749, 7
      %v751 = vsub.s32 %v748, %v750
      %v752 = vrot.slane %v738, %v751
      %v753 = vcombine.high %v745, %v745
      %754 = vrot.lane.b32.xlu0 %v745, 109
      %v755 = vpop.permute.xlu0 %754
      %756 = vrot.lane.b32.xlu0 %v753, 109
      %v757 = vpop.permute.xlu0 %756
      %758 = vrot.lane.b32.xlu0 %v752, 109
      %v759 = vpop.permute.xlu0 %758
      %vm760 = vcmask 891904
      %v761 = vsel %vm760, %v755, %v757
      %v762 = vsel %vm760, %v757, %v759
      %v764 = vsel %vm255, %v736, 0
      %v767 = vsel %vm259, %v761, 0
      %v770 = vsel %vm259, %v762, 0
      %v773 = vsel %vm259, %v759, 0
      %775 = vmatprep.subr.bf16.mxu0 %v770
      %776 = vmatpush1.bf16.msra.mxu0 %v767
      %777 = vmatprep.subr.bf16.mxu0 0
      %778 = vmatpush1.bf16.msra.mxu0 0
      %779 = vmatprep.subr.bf16.mxu0 0
      %780 = vmatpush1.bf16.msra.mxu0 0
      %781 = vmatprep.subr.bf16.mxu0 0
      %782 = vmatpush1.bf16.msra.mxu0 0
      %783 = vmatprep.subr.bf16.mxu0 0
      %784 = vmatpush1.bf16.msra.mxu0 0
      %785 = vmatprep.subr.bf16.mxu0 0
      %786 = vmatpush1.bf16.msra.mxu0 0
      %787 = vmatprep.subr.bf16.mxu0 0
      %788 = vmatpush1.bf16.msra.mxu0 0
      %789 = vmatprep.subr.bf16.mxu0 0
      %790 = vmatpush1.bf16.msra.mxu0 0
      %791 = vmatprep.subr.bf16.mxu0 0
      %792 = vmatpush1.bf16.msra.mxu0 0
      %793 = vmatprep.subr.bf16.mxu0 0
      %794 = vmatpush1.bf16.msra.mxu0 0
      %795 = vmatprep.subr.bf16.mxu0 0
      %796 = vmatpush1.bf16.msra.mxu0 0
      %797 = vmatprep.subr.bf16.mxu0 0
      %798 = vmatpush1.bf16.msra.mxu0 0
      %799 = vmatprep.subr.bf16.mxu0 0
      %800 = vmatpush1.bf16.msra.mxu0 0
      %801 = vmatprep.subr.bf16.mxu0 0
      %802 = vmatpush1.bf16.msra.mxu0 0
      %803 = vmatprep.subr.bf16.mxu0 0
      %804 = vmatpush1.bf16.msra.mxu0 0
      %805 = vmatprep.subr.bf16.mxu0 0
      %806 = vmatpush1.bf16.msra.mxu0 0
      %807 = vmatprep.mubr.bf16.mxu0 0
      %808 = vmatmul.mubr.bf16.gmra.mrb[0].mxu0 %v764
      %v809 = vpop.f32.mrb[0].mxu0
      %v810 = vadd.f32 0.0, %v809
      %v811 = vpop.f32.mrb[0].mxu0
      %v812 = vadd.f32 0.0, %v811
      %v813 = vpop.f32.mrb[0].mxu0
      %v814 = vadd.f32 0.0, %v813
      %v815 = vpop.f32.mrb[0].mxu0
      %v816 = vadd.f32 0.0, %v815
      %817 = vdwg.mxu0
      %818 = vmatprep.subr.bf16.mxu0 0
      %819 = vmatpush1.bf16.msra.mxu0 %v773
      %820 = vmatprep.subr.bf16.mxu0 0
      %821 = vmatpush1.bf16.msra.mxu0 0
      %822 = vmatprep.subr.bf16.mxu0 0
      %823 = vmatpush1.bf16.msra.mxu0 0
      %824 = vmatprep.subr.bf16.mxu0 0
      %825 = vmatpush1.bf16.msra.mxu0 0
      %826 = vmatprep.subr.bf16.mxu0 0
      %827 = vmatpush1.bf16.msra.mxu0 0
      %828 = vmatprep.subr.bf16.mxu0 0
      %829 = vmatpush1.bf16.msra.mxu0 0
      %830 = vmatprep.subr.bf16.mxu0 0
      %831 = vmatpush1.bf16.msra.mxu0 0
      %832 = vmatprep.subr.bf16.mxu0 0
      %833 = vmatpush1.bf16.msra.mxu0 0
      %834 = vmatprep.subr.bf16.mxu0 0
      %835 = vmatpush1.bf16.msra.mxu0 0
      %836 = vmatprep.subr.bf16.mxu0 0
      %837 = vmatpush1.bf16.msra.mxu0 0
      %838 = vmatprep.subr.bf16.mxu0 0
      %839 = vmatpush1.bf16.msra.mxu0 0
      %840 = vmatprep.subr.bf16.mxu0 0
      %841 = vmatpush1.bf16.msra.mxu0 0
      %842 = vmatprep.subr.bf16.mxu0 0
      %843 = vmatpush1.bf16.msra.mxu0 0
      %844 = vmatprep.subr.bf16.mxu0 0
      %845 = vmatpush1.bf16.msra.mxu0 0
      %846 = vmatprep.subr.bf16.mxu0 0
      %847 = vmatpush1.bf16.msra.mxu0 0
      %848 = vmatprep.subr.bf16.mxu0 0
      %849 = vmatpush1.bf16.msra.mxu0 0
      %850 = vmatprep.mubr.bf16.mxu0 0
      %851 = vmatmul.mubr.bf16.gmra.mrb[0].mxu0 %v764
      %v852 = vpop.f32.mrb[0].mxu0
      %v853 = vadd.f32 0.0, %v852
      %v854 = vpop.f32.mrb[0].mxu0
      %v855 = vpop.f32.mrb[0].mxu0
      %v856 = vadd.f32 0.0, %v855
      %v857 = vpop.f32.mrb[0].mxu0
      %858 = vdwg.mxu0
      %v859 = vadd.f32 %v722, %v810
      %v860 = vadd.f32 %v723, %v812
      %v861 = vadd.f32 %v724, %v853
      %v862 = vadd.f32 %v725, %v814
      %v863 = vadd.f32 %v726, %v816
      %v864 = vadd.f32 %v727, %v856
      %v865 = vld [vmem:[%s209] sm:$0x3f]
      %s866 = scalar_lea.vmem %s1, 40
      %v867 = vld [vmem:[%s866] sm:$0xf]
      %v868 = vld [vmem:[%s866 + $0x4] sm:$0xf]
      %v871 = vunpack.c.l.b16 %v867
      %v872 = vunpack.c.l.b16 %v868
      %v873 = vpack.c.b16 %v872, %v871
      %v875 = vcombine.high %v865, %v865
      %v877 = vunpack.c.l.s4 1983009808
      %v878 = vunpack.c.0.s8 %v877
      %v879 = vlaneseq
      %v880 = vshrl.u32 %v879, 7
      %v881 = vsub.s32 %v878, %v880
      %v882 = vrot.slane %v865, %v881
      %v884 = vunpack.c.l.s4 1983009808
      %v885 = vunpack.c.0.s8 %v884
      %v886 = vlaneseq
      %v887 = vshrl.u32 %v886, 7
      %v888 = vsub.s32 %v885, %v887
      %v889 = vrot.slane %v875, %v888
      %v890 = vcombine.high %v882, %v882
      %891 = vrot.lane.b32.xlu0 %v882, 108
      %v892 = vpop.permute.xlu0 %891
      %893 = vrot.lane.b32.xlu0 %v890, 108
      %v894 = vpop.permute.xlu0 %893
      %895 = vrot.lane.b32.xlu0 %v889, 108
      %v896 = vpop.permute.xlu0 %895
      %vm897 = vcmask 883712
      %v898 = vsel %vm897, %v892, %v894
      %v899 = vsel %vm897, %v894, %v896
      %v901 = vsel %vm255, %v873, 0
      %v904 = vsel %vm259, %v898, 0
      %v907 = vsel %vm259, %v899, 0
      %v910 = vsel %vm259, %v896, 0
      %912 = vmatprep.subr.bf16.mxu0 %v907
      %913 = vmatpush1.bf16.msra.mxu0 %v904
      %914 = vmatprep.subr.bf16.mxu0 0
      %915 = vmatpush1.bf16.msra.mxu0 0
      %916 = vmatprep.subr.bf16.mxu0 0
      %917 = vmatpush1.bf16.msra.mxu0 0
      %918 = vmatprep.subr.bf16.mxu0 0
      %919 = vmatpush1.bf16.msra.mxu0 0
      %920 = vmatprep.subr.bf16.mxu0 0
      %921 = vmatpush1.bf16.msra.mxu0 0
      %922 = vmatprep.subr.bf16.mxu0 0
      %923 = vmatpush1.bf16.msra.mxu0 0
      %924 = vmatprep.subr.bf16.mxu0 0
      %925 = vmatpush1.bf16.msra.mxu0 0
      %926 = vmatprep.subr.bf16.mxu0 0
      %927 = vmatpush1.bf16.msra.mxu0 0
      %928 = vmatprep.subr.bf16.mxu0 0
      %929 = vmatpush1.bf16.msra.mxu0 0
      %930 = vmatprep.subr.bf16.mxu0 0
      %931 = vmatpush1.bf16.msra.mxu0 0
      %932 = vmatprep.subr.bf16.mxu0 0
      %933 = vmatpush1.bf16.msra.mxu0 0
      %934 = vmatprep.subr.bf16.mxu0 0
      %935 = vmatpush1.bf16.msra.mxu0 0
      %936 = vmatprep.subr.bf16.mxu0 0
      %937 = vmatpush1.bf16.msra.mxu0 0
      %938 = vmatprep.subr.bf16.mxu0 0
      %939 = vmatpush1.bf16.msra.mxu0 0
      %940 = vmatprep.subr.bf16.mxu0 0
      %941 = vmatpush1.bf16.msra.mxu0 0
      %942 = vmatprep.subr.bf16.mxu0 0
      %943 = vmatpush1.bf16.msra.mxu0 0
      %944 = vmatprep.mubr.bf16.mxu0 0
      %945 = vmatmul.mubr.bf16.gmra.mrb[0].mxu0 %v901
      %v946 = vpop.f32.mrb[0].mxu0
      %v947 = vadd.f32 0.0, %v946
      %v948 = vpop.f32.mrb[0].mxu0
      %v949 = vadd.f32 0.0, %v948
      %v950 = vpop.f32.mrb[0].mxu0
      %v951 = vadd.f32 0.0, %v950
      %v952 = vpop.f32.mrb[0].mxu0
      %v953 = vadd.f32 0.0, %v952
      %954 = vdwg.mxu0
      %955 = vmatprep.subr.bf16.mxu0 0
      %956 = vmatpush1.bf16.msra.mxu0 %v910
      %957 = vmatprep.subr.bf16.mxu0 0
      %958 = vmatpush1.bf16.msra.mxu0 0
      %959 = vmatprep.subr.bf16.mxu0 0
      %960 = vmatpush1.bf16.msra.mxu0 0
      %961 = vmatprep.subr.bf16.mxu0 0
      %962 = vmatpush1.bf16.msra.mxu0 0
      %963 = vmatprep.subr.bf16.mxu0 0
      %964 = vmatpush1.bf16.msra.mxu0 0
      %965 = vmatprep.subr.bf16.mxu0 0
      %966 = vmatpush1.bf16.msra.mxu0 0
      %967 = vmatprep.subr.bf16.mxu0 0
      %968 = vmatpush1.bf16.msra.mxu0 0
      %969 = vmatprep.subr.bf16.mxu0 0
      %970 = vmatpush1.bf16.msra.mxu0 0
      %971 = vmatprep.subr.bf16.mxu0 0
      %972 = vmatpush1.bf16.msra.mxu0 0
      %973 = vmatprep.subr.bf16.mxu0 0
      %974 = vmatpush1.bf16.msra.mxu0 0
      %975 = vmatprep.subr.bf16.mxu0 0
      %976 = vmatpush1.bf16.msra.mxu0 0
      %977 = vmatprep.subr.bf16.mxu0 0
      %978 = vmatpush1.bf16.msra.mxu0 0
      %979 = vmatprep.subr.bf16.mxu0 0
      %980 = vmatpush1.bf16.msra.mxu0 0
      %981 = vmatprep.subr.bf16.mxu0 0
      %982 = vmatpush1.bf16.msra.mxu0 0
      %983 = vmatprep.subr.bf16.mxu0 0
      %984 = vmatpush1.bf16.msra.mxu0 0
      %985 = vmatprep.subr.bf16.mxu0 0
      %986 = vmatpush1.bf16.msra.mxu0 0
      %987 = vmatprep.mubr.bf16.mxu0 0
      %988 = vmatmul.mubr.bf16.gmra.mrb[0].mxu0 %v901
      %v989 = vpop.f32.mrb[0].mxu0
      %v990 = vadd.f32 0.0, %v989
      %v991 = vpop.f32.mrb[0].mxu0
      %v992 = vpop.f32.mrb[0].mxu0
      %v993 = vadd.f32 0.0, %v992
      %v994 = vpop.f32.mrb[0].mxu0
      %995 = vdwg.mxu0
      %v996 = vadd.f32 %v859, %v947
      %v997 = vadd.f32 %v860, %v949
      %v998 = vadd.f32 %v861, %v990
      %v999 = vadd.f32 %v862, %v951
      %v1000 = vadd.f32 %v863, %v953
      %v1001 = vadd.f32 %v864, %v993
      %v1002 = vld [vmem:[%s209] sm:$0x3f]
      %s1003 = scalar_lea.vmem %s1, 48
      %v1004 = vld [vmem:[%s1003] sm:$0xf]
      %v1005 = vld [vmem:[%s1003 + $0x4] sm:$0xf]
      %v1008 = vunpack.c.l.b16 %v1004
      %v1009 = vunpack.c.l.b16 %v1005
      %v1010 = vpack.c.b16 %v1009, %v1008
      %v1012 = vcombine.high %v1002, %v1002
      %v1014 = vunpack.c.l.s4 1983009808
      %v1015 = vunpack.c.0.s8 %v1014
      %v1016 = vlaneseq
      %v1017 = vshrl.u32 %v1016, 7
      %v1018 = vsub.s32 %v1015, %v1017
      %v1019 = vrot.slane %v1002, %v1018
      %v1021 = vunpack.c.l.s4 1983009808
      %v1022 = vunpack.c.0.s8 %v1021
      %v1023 = vlaneseq
      %v1024 = vshrl.u32 %v1023, 7
      %v1025 = vsub.s32 %v1022, %v1024
      %v1026 = vrot.slane %v1012, %v1025
      %v1027 = vcombine.high %v1019, %v1019
      %1028 = vrot.lane.b32.xlu0 %v1019, 92
      %v1029 = vpop.permute.xlu0 %1028
      %1030 = vrot.lane.b32.xlu0 %v1027, 92
      %v1031 = vpop.permute.xlu0 %1030
      %1032 = vrot.lane.b32.xlu0 %v1026, 92
      %v1033 = vpop.permute.xlu0 %1032
      %vm1034 = vcmask 752640
      %v1035 = vsel %vm1034, %v1029, %v1031
      %v1036 = vsel %vm1034, %v1031, %v1033
      %v1038 = vsel %vm255, %v1010, 0
      %v1041 = vsel %vm259, %v1035, 0
      %v1044 = vsel %vm259, %v1036, 0
      %v1047 = vsel %vm259, %v1033, 0
      %1049 = vmatprep.subr.bf16.mxu0 %v1044
      %1050 = vmatpush1.bf16.msra.mxu0 %v1041
      %1051 = vmatprep.subr.bf16.mxu0 0
      %1052 = vmatpush1.bf16.msra.mxu0 0
      %1053 = vmatprep.subr.bf16.mxu0 0
      %1054 = vmatpush1.bf16.msra.mxu0 0
      %1055 = vmatprep.subr.bf16.mxu0 0
      %1056 = vmatpush1.bf16.msra.mxu0 0
      %1057 = vmatprep.subr.bf16.mxu0 0
      %1058 = vmatpush1.bf16.msra.mxu0 0
      %1059 = vmatprep.subr.bf16.mxu0 0
      %1060 = vmatpush1.bf16.msra.mxu0 0
      %1061 = vmatprep.subr.bf16.mxu0 0
      %1062 = vmatpush1.bf16.msra.mxu0 0
      %1063 = vmatprep.subr.bf16.mxu0 0
      %1064 = vmatpush1.bf16.msra.mxu0 0
      %1065 = vmatprep.subr.bf16.mxu0 0
      %1066 = vmatpush1.bf16.msra.mxu0 0
      %1067 = vmatprep.subr.bf16.mxu0 0
      %1068 = vmatpush1.bf16.msra.mxu0 0
      %1069 = vmatprep.subr.bf16.mxu0 0
      %1070 = vmatpush1.bf16.msra.mxu0 0
      %1071 = vmatprep.subr.bf16.mxu0 0
      %1072 = vmatpush1.bf16.msra.mxu0 0
      %1073 = vmatprep.subr.bf16.mxu0 0
      %1074 = vmatpush1.bf16.msra.mxu0 0
      %1075 = vmatprep.subr.bf16.mxu0 0
      %1076 = vmatpush1.bf16.msra.mxu0 0
      %1077 = vmatprep.subr.bf16.mxu0 0
      %1078 = vmatpush1.bf16.msra.mxu0 0
      %1079 = vmatprep.subr.bf16.mxu0 0
      %1080 = vmatpush1.bf16.msra.mxu0 0
      %1081 = vmatprep.mubr.bf16.mxu0 0
      %1082 = vmatmul.mubr.bf16.gmra.mrb[0].mxu0 %v1038
      %v1083 = vpop.f32.mrb[0].mxu0
      %v1084 = vadd.f32 0.0, %v1083
      %v1085 = vpop.f32.mrb[0].mxu0
      %v1086 = vadd.f32 0.0, %v1085
      %v1087 = vpop.f32.mrb[0].mxu0
      %v1088 = vadd.f32 0.0, %v1087
      %v1089 = vpop.f32.mrb[0].mxu0
      %v1090 = vadd.f32 0.0, %v1089
      %1091 = vdwg.mxu0
      %1092 = vmatprep.subr.bf16.mxu0 0
      %1093 = vmatpush1.bf16.msra.mxu0 %v1047
      %1094 = vmatprep.subr.bf16.mxu0 0
      %1095 = vmatpush1.bf16.msra.mxu0 0
      %1096 = vmatprep.subr.bf16.mxu0 0
      %1097 = vmatpush1.bf16.msra.mxu0 0
      %1098 = vmatprep.subr.bf16.mxu0 0
      %1099 = vmatpush1.bf16.msra.mxu0 0
      %1100 = vmatprep.subr.bf16.mxu0 0
      %1101 = vmatpush1.bf16.msra.mxu0 0
      %1102 = vmatprep.subr.bf16.mxu0 0
      %1103 = vmatpush1.bf16.msra.mxu0 0
      %1104 = vmatprep.subr.bf16.mxu0 0
      %1105 = vmatpush1.bf16.msra.mxu0 0
      %1106 = vmatprep.subr.bf16.mxu0 0
      %1107 = vmatpush1.bf16.msra.mxu0 0
      %1108 = vmatprep.subr.bf16.mxu0 0
      %1109 = vmatpush1.bf16.msra.mxu0 0
      %1110 = vmatprep.subr.bf16.mxu0 0
      %1111 = vmatpush1.bf16.msra.mxu0 0
      %1112 = vmatprep.subr.bf16.mxu0 0
      %1113 = vmatpush1.bf16.msra.mxu0 0
      %1114 = vmatprep.subr.bf16.mxu0 0
      %1115 = vmatpush1.bf16.msra.mxu0 0
      %1116 = vmatprep.subr.bf16.mxu0 0
      %1117 = vmatpush1.bf16.msra.mxu0 0
      %1118 = vmatprep.subr.bf16.mxu0 0
      %1119 = vmatpush1.bf16.msra.mxu0 0
      %1120 = vmatprep.subr.bf16.mxu0 0
      %1121 = vmatpush1.bf16.msra.mxu0 0
      %1122 = vmatprep.subr.bf16.mxu0 0
      %1123 = vmatpush1.bf16.msra.mxu0 0
      %1124 = vmatprep.mubr.bf16.mxu0 0
      %1125 = vmatmul.mubr.bf16.gmra.mrb[0].mxu0 %v1038
      %v1126 = vpop.f32.mrb[0].mxu0
      %v1127 = vadd.f32 0.0, %v1126
      %v1128 = vpop.f32.mrb[0].mxu0
      %v1129 = vpop.f32.mrb[0].mxu0
      %v1130 = vadd.f32 0.0, %v1129
      %v1131 = vpop.f32.mrb[0].mxu0
      %1132 = vdwg.mxu0
      %v1133 = vadd.f32 %v996, %v1084
      %v1134 = vadd.f32 %v997, %v1086
      %v1135 = vadd.f32 %v998, %v1127
      %v1136 = vadd.f32 %v999, %v1088
      %v1137 = vadd.f32 %v1000, %v1090
      %v1138 = vadd.f32 %v1001, %v1130
      %v1139 = vld [vmem:[%s209] sm:$0x3f]
      %s1140 = scalar_lea.vmem %s1, 56
      %v1141 = vld [vmem:[%s1140] sm:$0xf]
      %v1142 = vld [vmem:[%s1140 + $0x4] sm:$0xf]
      %v1145 = vunpack.c.l.b16 %v1141
      %v1146 = vunpack.c.l.b16 %v1142
      %v1147 = vpack.c.b16 %v1146, %v1145
      %v1149 = vcombine.high %v1139, %v1139
      %v1151 = vunpack.c.l.s4 1983009808
      %v1152 = vunpack.c.0.s8 %v1151
      %v1153 = vlaneseq
      %v1154 = vshrl.u32 %v1153, 7
      %v1155 = vsub.s32 %v1152, %v1154
      %v1156 = vrot.slane %v1139, %v1155
      %v1158 = vunpack.c.l.s4 1983009808
      %v1159 = vunpack.c.0.s8 %v1158
      %v1160 = vlaneseq
      %v1161 = vshrl.u32 %v1160, 7
      %v1162 = vsub.s32 %v1159, %v1161
      %v1163 = vrot.slane %v1149, %v1162
      %v1164 = vcombine.high %v1156, %v1156
      %1165 = vrot.lane.b32.xlu0 %v1156, 91
      %v1166 = vpop.permute.xlu0 %1165
      %1167 = vrot.lane.b32.xlu0 %v1164, 91
      %v1168 = vpop.permute.xlu0 %1167
      %1169 = vrot.lane.b32.xlu0 %v1163, 91
      %v1170 = vpop.permute.xlu0 %1169
      %vm1171 = vcmask 744448
      %v1172 = vsel %vm1171, %v1166, %v1168
      %v1173 = vsel %vm1171, %v1168, %v1170
      %v1175 = vsel %vm255, %v1147, 0
      %v1178 = vsel %vm259, %v1172, 0
      %v1181 = vsel %vm259, %v1173, 0
      %v1184 = vsel %vm259, %v1170, 0
      %1186 = vmatprep.subr.bf16.mxu0 %v1181
      %1187 = vmatpush1.bf16.msra.mxu0 %v1178
      %1188 = vmatprep.subr.bf16.mxu0 0
      %1189 = vmatpush1.bf16.msra.mxu0 0
      %1190 = vmatprep.subr.bf16.mxu0 0
      %1191 = vmatpush1.bf16.msra.mxu0 0
      %1192 = vmatprep.subr.bf16.mxu0 0
      %1193 = vmatpush1.bf16.msra.mxu0 0
      %1194 = vmatprep.subr.bf16.mxu0 0
      %1195 = vmatpush1.bf16.msra.mxu0 0
      %1196 = vmatprep.subr.bf16.mxu0 0
      %1197 = vmatpush1.bf16.msra.mxu0 0
      %1198 = vmatprep.subr.bf16.mxu0 0
      %1199 = vmatpush1.bf16.msra.mxu0 0
      %1200 = vmatprep.subr.bf16.mxu0 0
      %1201 = vmatpush1.bf16.msra.mxu0 0
      %1202 = vmatprep.subr.bf16.mxu0 0
      %1203 = vmatpush1.bf16.msra.mxu0 0
      %1204 = vmatprep.subr.bf16.mxu0 0
      %1205 = vmatpush1.bf16.msra.mxu0 0
      %1206 = vmatprep.subr.bf16.mxu0 0
      %1207 = vmatpush1.bf16.msra.mxu0 0
      %1208 = vmatprep.subr.bf16.mxu0 0
      %1209 = vmatpush1.bf16.msra.mxu0 0
      %1210 = vmatprep.subr.bf16.mxu0 0
      %1211 = vmatpush1.bf16.msra.mxu0 0
      %1212 = vmatprep.subr.bf16.mxu0 0
      %1213 = vmatpush1.bf16.msra.mxu0 0
      %1214 = vmatprep.subr.bf16.mxu0 0
      %1215 = vmatpush1.bf16.msra.mxu0 0
      %1216 = vmatprep.subr.bf16.mxu0 0
      %1217 = vmatpush1.bf16.msra.mxu0 0
      %1218 = vmatprep.mubr.bf16.mxu0 0
      %1219 = vmatmul.mubr.bf16.gmra.mrb[0].mxu0 %v1175
      %v1220 = vpop.f32.mrb[0].mxu0
      %v1221 = vadd.f32 0.0, %v1220
      %v1222 = vpop.f32.mrb[0].mxu0
      %v1223 = vadd.f32 0.0, %v1222
      %v1224 = vpop.f32.mrb[0].mxu0
      %v1225 = vadd.f32 0.0, %v1224
      %v1226 = vpop.f32.mrb[0].mxu0
      %v1227 = vadd.f32 0.0, %v1226
      %1228 = vdwg.mxu0
      %1229 = vmatprep.subr.bf16.mxu0 0
      %1230 = vmatpush1.bf16.msra.mxu0 %v1184
      %1231 = vmatprep.subr.bf16.mxu0 0
      %1232 = vmatpush1.bf16.msra.mxu0 0
      %1233 = vmatprep.subr.bf16.mxu0 0
      %1234 = vmatpush1.bf16.msra.mxu0 0
      %1235 = vmatprep.subr.bf16.mxu0 0
      %1236 = vmatpush1.bf16.msra.mxu0 0
      %1237 = vmatprep.subr.bf16.mxu0 0
      %1238 = vmatpush1.bf16.msra.mxu0 0
      %1239 = vmatprep.subr.bf16.mxu0 0
      %1240 = vmatpush1.bf16.msra.mxu0 0
      %1241 = vmatprep.subr.bf16.mxu0 0
      %1242 = vmatpush1.bf16.msra.mxu0 0
      %1243 = vmatprep.subr.bf16.mxu0 0
      %1244 = vmatpush1.bf16.msra.mxu0 0
      %1245 = vmatprep.subr.bf16.mxu0 0
      %1246 = vmatpush1.bf16.msra.mxu0 0
      %1247 = vmatprep.subr.bf16.mxu0 0
      %1248 = vmatpush1.bf16.msra.mxu0 0
      %1249 = vmatprep.subr.bf16.mxu0 0
      %1250 = vmatpush1.bf16.msra.mxu0 0
      %1251 = vmatprep.subr.bf16.mxu0 0
      %1252 = vmatpush1.bf16.msra.mxu0 0
      %1253 = vmatprep.subr.bf16.mxu0 0
      %1254 = vmatpush1.bf16.msra.mxu0 0
      %1255 = vmatprep.subr.bf16.mxu0 0
      %1256 = vmatpush1.bf16.msra.mxu0 0
      %1257 = vmatprep.subr.bf16.mxu0 0
      %1258 = vmatpush1.bf16.msra.mxu0 0
      %1259 = vmatprep.subr.bf16.mxu0 0
      %1260 = vmatpush1.bf16.msra.mxu0 0
      %1261 = vmatprep.mubr.bf16.mxu0 0
      %1262 = vmatmul.mubr.bf16.gmra.mrb[0].mxu0 %v1175
      %v1263 = vpop.f32.mrb[0].mxu0
      %v1264 = vadd.f32 0.0, %v1263
      %v1265 = vpop.f32.mrb[0].mxu0
      %v1266 = vpop.f32.mrb[0].mxu0
      %v1267 = vadd.f32 0.0, %v1266
      %v1268 = vpop.f32.mrb[0].mxu0
      %1269 = vdwg.mxu0
      %v1270 = vadd.f32 %v1133, %v1221
      %v1271 = vadd.f32 %v1134, %v1223
      %v1272 = vadd.f32 %v1135, %v1264
      %v1273 = vadd.f32 %v1136, %v1225
      %v1274 = vadd.f32 %v1137, %v1227
      %v1275 = vadd.f32 %v1138, %v1267
      %v1276 = vld [vmem:[%s209] sm:$0x3f]
      %s1277 = scalar_lea.vmem %s1, 64
      %v1278 = vld [vmem:[%s1277] sm:$0xf]
      %v1279 = vld [vmem:[%s1277 + $0x4] sm:$0xf]
      %v1282 = vunpack.c.l.b16 %v1278
      %v1283 = vunpack.c.l.b16 %v1279
      %v1284 = vpack.c.b16 %v1283, %v1282
      %v1286 = vcombine.high %v1276, %v1276
      %v1288 = vunpack.c.l.s4 1983009808
      %v1289 = vunpack.c.0.s8 %v1288
      %v1290 = vlaneseq
      %v1291 = vshrl.u32 %v1290, 7
      %v1292 = vsub.s32 %v1289, %v1291
      %v1293 = vrot.slane %v1276, %v1292
      %v1295 = vunpack.c.l.s4 1983009808
      %v1296 = vunpack.c.0.s8 %v1295
      %v1297 = vlaneseq
      %v1298 = vshrl.u32 %v1297, 7
      %v1299 = vsub.s32 %v1296, %v1298
      %v1300 = vrot.slane %v1286, %v1299
      %v1301 = vcombine.high %v1293, %v1293
      %1302 = vrot.lane.b32.xlu0 %v1293, 90
      %v1303 = vpop.permute.xlu0 %1302
      %1304 = vrot.lane.b32.xlu0 %v1301, 90
      %v1305 = vpop.permute.xlu0 %1304
      %1306 = vrot.lane.b32.xlu0 %v1300, 90
      %v1307 = vpop.permute.xlu0 %1306
      %vm1308 = vcmask 736256
      %v1309 = vsel %vm1308, %v1303, %v1305
      %v1310 = vsel %vm1308, %v1305, %v1307
      %v1312 = vsel %vm255, %v1284, 0
      %v1315 = vsel %vm259, %v1309, 0
      %v1318 = vsel %vm259, %v1310, 0
      %v1321 = vsel %vm259, %v1307, 0
      %1323 = vmatprep.subr.bf16.mxu0 %v1318
      %1324 = vmatpush1.bf16.msra.mxu0 %v1315
      %1325 = vmatprep.subr.bf16.mxu0 0
      %1326 = vmatpush1.bf16.msra.mxu0 0
      %1327 = vmatprep.subr.bf16.mxu0 0
      %1328 = vmatpush1.bf16.msra.mxu0 0
      %1329 = vmatprep.subr.bf16.mxu0 0
      %1330 = vmatpush1.bf16.msra.mxu0 0
      %1331 = vmatprep.subr.bf16.mxu0 0
      %1332 = vmatpush1.bf16.msra.mxu0 0
      %1333 = vmatprep.subr.bf16.mxu0 0
      %1334 = vmatpush1.bf16.msra.mxu0 0
      %1335 = vmatprep.subr.bf16.mxu0 0
      %1336 = vmatpush1.bf16.msra.mxu0 0
      %1337 = vmatprep.subr.bf16.mxu0 0
      %1338 = vmatpush1.bf16.msra.mxu0 0
      %1339 = vmatprep.subr.bf16.mxu0 0
      %1340 = vmatpush1.bf16.msra.mxu0 0
      %1341 = vmatprep.subr.bf16.mxu0 0
      %1342 = vmatpush1.bf16.msra.mxu0 0
      %1343 = vmatprep.subr.bf16.mxu0 0
      %1344 = vmatpush1.bf16.msra.mxu0 0
      %1345 = vmatprep.subr.bf16.mxu0 0
      %1346 = vmatpush1.bf16.msra.mxu0 0
      %1347 = vmatprep.subr.bf16.mxu0 0
      %1348 = vmatpush1.bf16.msra.mxu0 0
      %1349 = vmatprep.subr.bf16.mxu0 0
      %1350 = vmatpush1.bf16.msra.mxu0 0
      %1351 = vmatprep.subr.bf16.mxu0 0
      %1352 = vmatpush1.bf16.msra.mxu0 0
      %1353 = vmatprep.subr.bf16.mxu0 0
      %1354 = vmatpush1.bf16.msra.mxu0 0
      %1355 = vmatprep.mubr.bf16.mxu0 0
      %1356 = vmatmul.mubr.bf16.gmra.mrb[0].mxu0 %v1312
      %v1357 = vpop.f32.mrb[0].mxu0
      %v1358 = vadd.f32 0.0, %v1357
      %v1359 = vpop.f32.mrb[0].mxu0
      %v1360 = vadd.f32 0.0, %v1359
      %v1361 = vpop.f32.mrb[0].mxu0
      %v1362 = vadd.f32 0.0, %v1361
      %v1363 = vpop.f32.mrb[0].mxu0
      %v1364 = vadd.f32 0.0, %v1363
      %1365 = vdwg.mxu0
      %1366 = vmatprep.subr.bf16.mxu0 0
      %1367 = vmatpush1.bf16.msra.mxu0 %v1321
      %1368 = vmatprep.subr.bf16.mxu0 0
      %1369 = vmatpush1.bf16.msra.mxu0 0
      %1370 = vmatprep.subr.bf16.mxu0 0
      %1371 = vmatpush1.bf16.msra.mxu0 0
      %1372 = vmatprep.subr.bf16.mxu0 0
      %1373 = vmatpush1.bf16.msra.mxu0 0
      %1374 = vmatprep.subr.bf16.mxu0 0
      %1375 = vmatpush1.bf16.msra.mxu0 0
      %1376 = vmatprep.subr.bf16.mxu0 0
      %1377 = vmatpush1.bf16.msra.mxu0 0
      %1378 = vmatprep.subr.bf16.mxu0 0
      %1379 = vmatpush1.bf16.msra.mxu0 0
      %1380 = vmatprep.subr.bf16.mxu0 0
      %1381 = vmatpush1.bf16.msra.mxu0 0
      %1382 = vmatprep.subr.bf16.mxu0 0
      %1383 = vmatpush1.bf16.msra.mxu0 0
      %1384 = vmatprep.subr.bf16.mxu0 0
      %1385 = vmatpush1.bf16.msra.mxu0 0
      %1386 = vmatprep.subr.bf16.mxu0 0
      %1387 = vmatpush1.bf16.msra.mxu0 0
      %1388 = vmatprep.subr.bf16.mxu0 0
      %1389 = vmatpush1.bf16.msra.mxu0 0
      %1390 = vmatprep.subr.bf16.mxu0 0
      %1391 = vmatpush1.bf16.msra.mxu0 0
      %1392 = vmatprep.subr.bf16.mxu0 0
      %1393 = vmatpush1.bf16.msra.mxu0 0
      %1394 = vmatprep.subr.bf16.mxu0 0
      %1395 = vmatpush1.bf16.msra.mxu0 0
      %1396 = vmatprep.subr.bf16.mxu0 0
      %1397 = vmatpush1.bf16.msra.mxu0 0
      %1398 = vmatprep.mubr.bf16.mxu0 0
      %1399 = vmatmul.mubr.bf16.gmra.mrb[0].mxu0 %v1312
      %v1400 = vpop.f32.mrb[0].mxu0
      %v1401 = vadd.f32 0.0, %v1400
      %v1402 = vpop.f32.mrb[0].mxu0
      %v1403 = vpop.f32.mrb[0].mxu0
      %v1404 = vadd.f32 0.0, %v1403
      %v1405 = vpop.f32.mrb[0].mxu0
      %1406 = vdwg.mxu0
      %v1407 = vadd.f32 %v1270, %v1358
      %v1408 = vadd.f32 %v1271, %v1360
      %v1409 = vadd.f32 %v1272, %v1401
      %v1410 = vadd.f32 %v1273, %v1362
      %v1411 = vadd.f32 %v1274, %v1364
      %v1412 = vadd.f32 %v1275, %v1404
      %v1413 = vld [vmem:[%s4] sm:$0x7]
      %v1415 = vlaneseq
      %v1416 = vshrl.u32 %v1415, 7
      %v1417 = vsub.s32 0, %v1416
      %v1418 = vrot.slane %v1413, %v1417
      %v1419 = vlaneseq
      %v1420 = vshrl.u32 %v1419, 7
      %v1421 = vsub.s32 1, %v1420
      %v1422 = vrot.slane %v1413, %v1421
      %v1423 = vlaneseq
      %v1424 = vshrl.u32 %v1423, 7
      %v1425 = vsub.s32 2, %v1424
      %v1426 = vrot.slane %v1413, %v1425
      %v1430 = vmul.f32 %v1407, %v1418
      %v1431 = vmul.f32 %v1408, %v1422
      %v1432 = vmul.f32 %v1409, %v1426
      %v1433 = vmul.f32 %v1410, %v1418
      %v1434 = vmul.f32 %v1411, %v1422
      %v1435 = vmul.f32 %v1412, %v1426
      %v1436 = vld [vmem:[%s5] sm:$0xff]
      %v1437 = vld [vmem:[%s5 + $0x8] sm:$0xff]
      %v1438 = vadd.f32 %v1430, %v1431
      %vm1439 = vcmask 261120
      %v1440 = vsel %vm1439, %v1432, 0.0
      %v1441 = vadd.f32 %v1438, %v1440
      %1442 = vadd.xlane.f32.xlu0 %v1441
      %v1443 = vpop.xlane.xlu0 %1442
      %v1444 = vadd.f32 %v1433, %v1434
      %v1445 = vsel %vm1439, %v1435, 0.0
      %v1446 = vadd.f32 %v1444, %v1445
      %1447 = vadd.xlane.f32.xlu0 %v1446
      %v1448 = vpop.xlane.xlu0 %1447
      %v1449 = vadd.f32 %v1436, %v1443
      %v1450 = vadd.f32 %v1437, %v1448
      %vm1451 = vcmask 7168
      %1452 = vst.msk [vmem:[%s5] sm:$0xff] %vm1451, %v1449
      %1453 = vst.msk [vmem:[%s5 + $0x8] sm:$0xff] %vm1451, %v1450
      %v1454 = vld [vmem:[%s5] sm:$0xff]
      %v1455 = vld [vmem:[%s5 + $0x8] sm:$0xff]
      %v1456 = vmul.f32 %v1430, %v1407
      %v1457 = vmul.f32 %v1431, %v1408
      %v1458 = vmul.f32 %v1432, %v1409
      %v1459 = vmul.f32 %v1433, %v1410
      %v1460 = vmul.f32 %v1434, %v1411
      %v1461 = vmul.f32 %v1435, %v1412
      %v1462 = vadd.f32 %v1456, %v1457
      %v1463 = vsel %vm1439, %v1458, 0.0
      %v1464 = vadd.f32 %v1462, %v1463
      %1465 = vadd.xlane.f32.xlu0 %v1464
      %v1466 = vpop.xlane.xlu0 %1465
      %v1467 = vadd.f32 %v1459, %v1460
      %v1468 = vsel %vm1439, %v1461, 0.0
      %v1469 = vadd.f32 %v1467, %v1468
      %1470 = vadd.xlane.f32.xlu0 %v1469
      %v1471 = vpop.xlane.xlu0 %1470
      %v1472 = vadd.f32 %v1454, %v1466
      %v1473 = vadd.f32 %v1455, %v1471
      %vm1474 = vcmask 15368
      %1475 = vst.msk [vmem:[%s5] sm:$0xff] %vm1474, %v1472
      %1476 = vst.msk [vmem:[%s5 + $0x8] sm:$0xff] %vm1474, %v1473
      %p1477 = scmp.eq.s32.totalorder %s16, 1
      // Predicated region
      $region45: #{repeat_conv_pallas.2} parent=39 // pred_check
        %p1478 = pneg %p1477
      $region46: #{repeat_conv_pallas.2} parent=39 // pred_check_branch
        %1480 = sbr.rel (%p1478) target = $region48
      $region47: #{repeat_conv_pallas.2} parent=39 // pred_region
        %v1481 = vld [vmem:[%s5] sm:$0xff]
        %v1482 = vld [vmem:[%s5 + $0x8] sm:$0xff]
        %v1483 = vmul.f32 %v1481, 0.001953125
        %v1484 = vmul.f32 %v1482, 0.001953125
        %v1485 = vmul.f32 %v1483, %v1483
        %v1486 = vmul.f32 %v1484, %v1484
        %1489 = vrot.lane.b32.xlu0 %v1485, 1
        %v1490 = vpop.permute.xlu0 %1489
        %1491 = vrot.lane.b32.xlu0 %v1486, 1
        %v1492 = vpop.permute.xlu0 %1491
        %v1495 = vsub.f32 %v1483, %v1490
        %v1496 = vsub.f32 %v1484, %v1492
        %v1497 = vld [vmem:[%s2] sm:$0xff]
        %v1498 = vld [vmem:[%s2 + $0x8] sm:$0xff]
        %v1499 = vadd.f32 %v1495, 1e-05
        %v1500 = vadd.f32 %v1496, 1e-05
        %v1501 = vrsqrt.pop %v1499
        %v1502 = vrsqrt.pop %v1500
        %1505 = vrot.lane.b32.xlu0 %v1501, 127
        %v1506 = vpop.permute.xlu0 %1505
        %1507 = vrot.lane.b32.xlu0 %v1502, 127
        %v1508 = vpop.permute.xlu0 %1507
        %v1511 = vmul.f32 %v1497, %v1506
        %v1512 = vmul.f32 %v1498, %v1508
        %v1513 = vld [vmem:[%s3] sm:$0xff]
        %v1514 = vld [vmem:[%s3 + $0x8] sm:$0xff]
        %v1515 = vmul.f32 %v1483, %v1511
        %v1516 = vmul.f32 %v1484, %v1512
        %v1517 = vsub.f32 %v1513, %v1515
        %v1518 = vsub.f32 %v1514, %v1516
        %1519 = vst.msk [vmem:[%s5] sm:$0xff] %vm1451, %v1511
        %1520 = vst.msk [vmem:[%s5 + $0x8] sm:$0xff] %vm1451, %v1512
        %1523 = vrot.lane.b32.xlu0 %v1517, 1
        %v1524 = vpop.permute.xlu0 %1523
        %1525 = vrot.lane.b32.xlu0 %v1518, 1
        %v1526 = vpop.permute.xlu0 %1525
        %1529 = vst.msk [vmem:[%s5] sm:$0xff] %vm1474, %v1524
        %1530 = vst.msk [vmem:[%s5 + $0x8] sm:$0xff] %vm1474, %v1526
      $region48: #{repeat_conv_pallas.2} parent=39 // pred_fallthru
        _
      // Predicated region
      $region49: #{repeat_conv_pallas.2} parent=39 // pred_check
        %p1531 = pneg %p139
      $region50: #{repeat_conv_pallas.2} parent=39 // pred_check_branch
        %1533 = sbr.rel (%p1531) target = $region52
      $region51: #{repeat_conv_pallas.2} parent=39 // pred_region
        _
      $region52: #{repeat_conv_pallas.2} parent=39 // pred_fallthru
        _
      // Predicated region
      $region53: #{repeat_conv_pallas.2} parent=39 // pred_check
        %p1534 = pneg %p139
      $region54: #{repeat_conv_pallas.2} parent=39 // pred_check_branch
        %1536 = sbr.rel (%p1534) target = $region56
      $region55: #{repeat_conv_pallas.2} parent=39 // pred_region
        _
      $region56: #{repeat_conv_pallas.2} parent=39 // pred_fallthru
        _
    $region40: #{repeat_conv_pallas.2} parent=5 // pred_fallthru
      _
    %p1537 = scmp.le.s32.totalorder 2, %s11
    // Predicated region
    $region57: #{repeat_conv_pallas.2} parent=5 // pred_check
      %p1538 = pneg %p1537
    $region58: #{repeat_conv_pallas.2} parent=5 // pred_check_branch
      %1540 = sbr.rel (%p1538) target = $region60
    $region59: #{repeat_conv_pallas.2} parent=5 // pred_region
      %s1541 = ssub.s32 %s11, 2
    $region60: #{repeat_conv_pallas.2} parent=5 // pred_fallthru
      _
  $region6: #{repeat_conv_pallas.2} parent=0 // loop_footer
    %s15 = sadd.s32 1, %s11
  $region7: #{repeat_conv_pallas.2} parent=0 // loop_footer_branch
    %10 = sbr.rel target = $region3
  $region8: #{repeat_conv_pallas.2} parent=0 // loop_exit
    _

// kernel: repeat_conv_pallas.3
$region0: #{repeat_conv_pallas.3}
  #allocation0 [shape = 'u32[]', space=smem, size = 0x4, offset = 0x4, fixed_abs, tag = 'smem constant byte address 0x4 - core index']
  #allocation1 [shape = 'u32[144,128]{1,0:T(1,128)}', space=vmem, size = 0x12000, scoped, tag = 'internal scratch']
  %s0 = inlined_call_operand.vmem [shape: bf16[2,4,384], index: 0, kind: input, shape index: {}]
  %s1 = inlined_call_operand.vmem [shape: bf16[9,16,4], index: 1, kind: input, shape index: {}]
  %s2 = inlined_call_operand.vmem [shape: f32[16,2], index: 2, kind: input, shape index: {}]
  %s3 = inlined_call_operand.vmem [shape: f32[2,16,288], index: 3, kind: output, shape index: {}]
  %s4 = sld [smem:[#allocation0]]
  $region45: #{repeat_conv_pallas.3} parent=0
    _
  %s6 = ssub.s32 1, %s4
  %s7 = scalar_select 0, %s6, %s4
  loop: start=0, step=1, limit=4
  $region2: #{repeat_conv_pallas.3} parent=0 // loop_pre_header
    _
  $region3: #{repeat_conv_pallas.3} parent=0 // loop_header
    %s9 = sphi 0, %s13
    %p10 = scmp.ge.s32.totalorder %s9, 4
    %s19 = sphi 0, %s21
    %s22 = sphi 0, %s19
    %s23 = sphi 0, %s22
    %s39 = sphi 0, %s23
    %s43 = sphi 0, %s43
    %s45 = sphi 0, %s43
    %s46 = sphi 0, %s45
    %s60 = sphi 0, %s46
    %s64 = sphi 0, %s64
    %s66 = sphi 0, %s64
    %s67 = sphi 0, %s66
    %s81 = sphi 0, %s67
    %s87 = sphi 0, %s89
    %s90 = sphi 0, %s87
    %s91 = sphi 0, %s90
    %s107 = sphi 0, %s91
  $region4: #{repeat_conv_pallas.3} parent=0 // loop_header_branch
    %12 = sbr.rel (%p10) target = $region8
  $region5: #{repeat_conv_pallas.3} parent=0 // loop_body
    %s14 = ssub.s32 %s9, 1
    %s15 = ssub.s32 %s9, 2
    %s16 = sadd.s32 %s9, 1
    %s17 = ssub.s32 %s9, %s16
    %p18 = scmp.eq.s32.totalorder %s17, 0
    %s20 = sadd.s32 %s19, 1
    %s21 = scalar_select %p18, %s19, %s20
    %p24 = pneg %p18
    %p25 = scmp.eq.s32.totalorder %s9, 1
    %p26 = por %p24, %p25
    %p27 = scmp.ne.s32.totalorder %s19, %s22
    %p28 = scmp.eq.s32.totalorder %s9, 0
    %p29 = por %p27, %p28
    %p30 = scmp.ne.s32.totalorder %s19, %s22
    %p31 = scmp.eq.s32.totalorder %s14, 1
    %p32 = por %p30, %p31
    %p33 = scmp.ne.s32.totalorder %s22, %s23
    %p34 = scmp.eq.s32.totalorder %s14, 0
    %p35 = por %p33, %p34
    %p36 = scmp.ne.s32.totalorder %s22, %s23
    %p37 = scmp.eq.s32.totalorder %s15, 1
    %p38 = por %p36, %p37
    %p40 = scmp.ne.s32.totalorder %s23, %s39
    %p41 = scmp.eq.s32.totalorder %s15, 0
    %p42 = por %p40, %p41
    %s44 = sadd.s32 %s43, 1
    %p47 = scmp.eq.s32.totalorder %s9, 1
    %p48 = scmp.ne.s32.totalorder %s43, %s45
    %p49 = scmp.eq.s32.totalorder %s9, 0
    %p50 = por %p48, %p49
    %p51 = scmp.ne.s32.totalorder %s43, %s45
    %p52 = scmp.eq.s32.totalorder %s14, 1
    %p53 = por %p51, %p52
    %p54 = scmp.ne.s32.totalorder %s45, %s46
    %p55 = scmp.eq.s32.totalorder %s14, 0
    %p56 = por %p54, %p55
    %p57 = scmp.ne.s32.totalorder %s45, %s46
    %p58 = scmp.eq.s32.totalorder %s15, 1
    %p59 = por %p57, %p58
    %p61 = scmp.ne.s32.totalorder %s46, %s60
    %p62 = scmp.eq.s32.totalorder %s15, 0
    %p63 = por %p61, %p62
    %s65 = sadd.s32 %s64, 1
    %p68 = scmp.eq.s32.totalorder %s9, 1
    %p69 = scmp.ne.s32.totalorder %s64, %s66
    %p70 = scmp.eq.s32.totalorder %s9, 0
    %p71 = por %p69, %p70
    %p72 = scmp.ne.s32.totalorder %s64, %s66
    %p73 = scmp.eq.s32.totalorder %s14, 1
    %p74 = por %p72, %p73
    %p75 = scmp.ne.s32.totalorder %s66, %s67
    %p76 = scmp.eq.s32.totalorder %s14, 0
    %p77 = por %p75, %p76
    %p78 = scmp.ne.s32.totalorder %s66, %s67
    %p79 = scmp.eq.s32.totalorder %s15, 1
    %p80 = por %p78, %p79
    %p82 = scmp.ne.s32.totalorder %s67, %s81
    %p83 = scmp.eq.s32.totalorder %s15, 0
    %p84 = por %p82, %p83
    %s85 = ssub.s32 %s9, %s16
    %p86 = scmp.eq.s32.totalorder %s85, 0
    %s88 = sadd.s32 %s87, 1
    %s89 = scalar_select %p86, %s87, %s88
    %p92 = pneg %p86
    %p93 = scmp.eq.s32.totalorder %s9, 1
    %p94 = por %p92, %p93
    %p95 = scmp.ne.s32.totalorder %s87, %s90
    %p96 = scmp.eq.s32.totalorder %s9, 0
    %p97 = por %p95, %p96
    %p98 = scmp.ne.s32.totalorder %s87, %s90
    %p99 = scmp.eq.s32.totalorder %s14, 1
    %p100 = por %p98, %p99
    %p101 = scmp.ne.s32.totalorder %s90, %s91
    %p102 = scmp.eq.s32.totalorder %s14, 0
    %p103 = por %p101, %p102
    %p104 = scmp.ne.s32.totalorder %s90, %s91
    %p105 = scmp.eq.s32.totalorder %s15, 1
    %p106 = por %p104, %p105
    %p108 = scmp.ne.s32.totalorder %s91, %s107
    %p109 = scmp.eq.s32.totalorder %s15, 0
    %p110 = por %p108, %p109
    %p111 = scmp.le.s32.totalorder 1, %s9
    %p112 = scmp.lt.s32.totalorder %s9, 3
    %p113 = pnand %p111, %p112
    %p114 = pneg %p113
    // Predicated region
    $region9: #{repeat_conv_pallas.3} parent=5 // pred_check
      _
    $region10: #{repeat_conv_pallas.3} parent=5 // pred_check_branch
      %116 = sbr.rel (%p113) target = $region12
    $region11: #{repeat_conv_pallas.3} parent=5 // pred_region
      %s117 = ssub.s32 %s9, 1
      // Predicated region
      $region13: #{repeat_conv_pallas.3} parent=11 // pred_check
        %p118 = pneg %p56
      $region14: #{repeat_conv_pallas.3} parent=11 // pred_check_branch
        %120 = sbr.rel (%p118) target = $region16
      $region15: #{repeat_conv_pallas.3} parent=11 // pred_region
        _
      $region16: #{repeat_conv_pallas.3} parent=11 // pred_fallthru
        _
      // Predicated region
      $region17: #{repeat_conv_pallas.3} parent=11 // pred_check
        %p121 = pneg %p77
      $region18: #{repeat_conv_pallas.3} parent=11 // pred_check_branch
        %123 = sbr.rel (%p121) target = $region20
      $region19: #{repeat_conv_pallas.3} parent=11 // pred_region
        _
      $region20: #{repeat_conv_pallas.3} parent=11 // pred_fallthru
        _
    $region12: #{repeat_conv_pallas.3} parent=5 // pred_fallthru
      _
    %p124 = scmp.lt.s32.totalorder %s9, 2
    // Predicated region
    $region21: #{repeat_conv_pallas.3} parent=5 // pred_check
      %p125 = pneg %p124
    $region22: #{repeat_conv_pallas.3} parent=5 // pred_check_branch
      %127 = sbr.rel (%p125) target = $region24
    $region23: #{repeat_conv_pallas.3} parent=5 // pred_region
      // Predicated region
      $region25: #{repeat_conv_pallas.3} parent=23 // pred_check
        %p128 = pneg %p29
      $region26: #{repeat_conv_pallas.3} parent=23 // pred_check_branch
        %130 = sbr.rel (%p128) target = $region28
      $region27: #{repeat_conv_pallas.3} parent=23 // pred_region
        %p131 = scmp.lt.s32.totalorder %s9, 1
        %s132 = scalar_select %p131, %s9, 1
        %s133 = smul.addr %s132, 3
        %s134 = smul.addr %s133, 2
        %s135 = scalar_lea.vmem %s0, %s134
      $region28: #{repeat_conv_pallas.3} parent=23 // pred_fallthru
        _
    $region24: #{repeat_conv_pallas.3} parent=5 // pred_fallthru
      _
    %p136 = scmp.le.s32.totalorder 1, %s9
    %p137 = scmp.lt.s32.totalorder %s9, 3
    %p138 = pnand %p136, %p137
    %p139 = pneg %p138
    // Predicated region
    $region29: #{repeat_conv_pallas.3} parent=5 // pred_check
      _
    $region30: #{repeat_conv_pallas.3} parent=5 // pred_check_branch
      %141 = sbr.rel (%p138) target = $region32
    $region31: #{repeat_conv_pallas.3} parent=5 // pred_region
      %s142 = ssub.s32 %s9, 1
      %p143 = scmp.lt.s32.totalorder %s14, 1
      %s144 = scalar_select %p143, %s14, 1
      %s145 = smul.addr %s144, 3
      %s146 = smul.addr %s145, 2
      %s147 = scalar_lea.vmem %s0, %s146
      %p148 = pneg %p35
      %p149 = pneg %p32
      %p150 = pneg %p56
      %p151 = pneg %p53
      %p152 = pneg %p77
      %p153 = pneg %p74
      %p154 = pneg %p103
      %p155 = pneg %p100
      %p156 = scmp.lt.s32.totalorder %s14, 1
      %s157 = scalar_select %p156, %s14, 1
      %s158 = smul.addr %s157, 6
      %s159 = smul.addr %s158, 8
      %s160 = scalar_lea.vmem %s3, %s159
      %p161 = scmp.lt.s32.totalorder %s14, 1
      %s162 = scalar_select %p161, %s14, 1
      %s163 = smul.addr %s162, 3
      %s164 = smul.addr %s163, 2
      %s165 = scalar_lea.vmem %s0, %s164
      %p166 = scmp.lt.s32.totalorder %s14, 1
      %s167 = scalar_select %p166, %s14, 1
      %s168 = smul.addr %s167, 6
      %s169 = smul.addr %s168, 8
      %s170 = scalar_lea.vmem %s3, %s169
      %v172 = vld [vmem:[%s165] sm:$0x3f]
      %v173 = vld [vmem:[%s1] sm:$0xf]
      %v174 = vld [vmem:[%s1 + $0x4] sm:$0xf]
      %s175 = scalar_lea.vmem %s1, 8
      %v176 = vld [vmem:[%s175] sm:$0xf]
      %v177 = vld [vmem:[%s175 + $0x4] sm:$0xf]
      %v180 = vunpack.c.l.b16 %v176
      %v181 = vunpack.c.l.b16 %v177
      %v182 = vpack.c.b16 %v181, %v180
      %v184 = vcombine.high %v172, %v172
      %v186 = vunpack.c.l.s4 1983009808
      %v187 = vunpack.c.0.s8 %v186
      %v188 = vlaneseq
      %v189 = vshrl.u32 %v188, 7
      %v190 = vsub.s32 %v187, %v189
      %v191 = vrot.slane %v172, %v190
      %v193 = vunpack.c.l.s4 1983009808
      %v194 = vunpack.c.0.s8 %v193
      %v195 = vlaneseq
      %v196 = vshrl.u32 %v195, 7
      %v197 = vsub.s32 %v194, %v196
      %v198 = vrot.slane %v184, %v197
      %v199 = vcombine.high %v191, %v191
      %200 = vrot.lane.b32.xlu0 %v191, 127
      %v201 = vpop.permute.xlu0 %200
      %202 = vrot.lane.b32.xlu0 %v199, 127
      %v203 = vpop.permute.xlu0 %202
      %204 = vrot.lane.b32.xlu0 %v198, 127
      %v205 = vpop.permute.xlu0 %204
      %vm206 = vcmask 1039360
      %v207 = vsel %vm206, %v201, %v203
      %v208 = vsel %vm206, %v203, %v205
      %vm209 = vcmask 31744
      %v211 = vsel %vm209, %v182, 0
      %vm213 = vcmask 1041408
      %v215 = vsel %vm213, %v207, 0
      %v218 = vsel %vm213, %v208, 0
      %v221 = vsel %vm213, %v205, 0
      %223 = vmatprep.subr.bf16.mxu0 %v218
      %224 = vmatpush1.bf16.msra.mxu0 %v215
      %225 = vmatprep.subr.bf16.mxu0 0
      %226 = vmatpush1.bf16.msra.mxu0 0
      %227 = vmatprep.subr.bf16.mxu0 0
      %228 = vmatpush1.bf16.msra.mxu0 0
      %229 = vmatprep.subr.bf16.mxu0 0
      %230 = vmatpush1.bf16.msra.mxu0 0
      %231 = vmatprep.subr.bf16.mxu0 0
      %232 = vmatpush1.bf16.msra.mxu0 0
      %233 = vmatprep.subr.bf16.mxu0 0
      %234 = vmatpush1.bf16.msra.mxu0 0
      %235 = vmatprep.subr.bf16.mxu0 0
      %236 = vmatpush1.bf16.msra.mxu0 0
      %237 = vmatprep.subr.bf16.mxu0 0
      %238 = vmatpush1.bf16.msra.mxu0 0
      %239 = vmatprep.subr.bf16.mxu0 0
      %240 = vmatpush1.bf16.msra.mxu0 0
      %241 = vmatprep.subr.bf16.mxu0 0
      %242 = vmatpush1.bf16.msra.mxu0 0
      %243 = vmatprep.subr.bf16.mxu0 0
      %244 = vmatpush1.bf16.msra.mxu0 0
      %245 = vmatprep.subr.bf16.mxu0 0
      %246 = vmatpush1.bf16.msra.mxu0 0
      %247 = vmatprep.subr.bf16.mxu0 0
      %248 = vmatpush1.bf16.msra.mxu0 0
      %249 = vmatprep.subr.bf16.mxu0 0
      %250 = vmatpush1.bf16.msra.mxu0 0
      %251 = vmatprep.subr.bf16.mxu0 0
      %252 = vmatpush1.bf16.msra.mxu0 0
      %253 = vmatprep.subr.bf16.mxu0 0
      %254 = vmatpush1.bf16.msra.mxu0 0
      %255 = vmatprep.mubr.bf16.mxu0 0
      %256 = vmatmul.mubr.bf16.gmra.mrb[0].mxu0 %v211
      %v257 = vpop.f32.mrb[0].mxu0
      %v258 = vadd.f32 0.0, %v257
      %v259 = vpop.f32.mrb[0].mxu0
      %v260 = vadd.f32 0.0, %v259
      %v261 = vpop.f32.mrb[0].mxu0
      %v262 = vadd.f32 0.0, %v261
      %v263 = vpop.f32.mrb[0].mxu0
      %v264 = vadd.f32 0.0, %v263
      %265 = vdwg.mxu0
      %266 = vmatprep.subr.bf16.mxu0 0
      %267 = vmatpush1.bf16.msra.mxu0 %v221
      %268 = vmatprep.subr.bf16.mxu0 0
      %269 = vmatpush1.bf16.msra.mxu0 0
      %270 = vmatprep.subr.bf16.mxu0 0
      %271 = vmatpush1.bf16.msra.mxu0 0
      %272 = vmatprep.subr.bf16.mxu0 0
      %273 = vmatpush1.bf16.msra.mxu0 0
      %274 = vmatprep.subr.bf16.mxu0 0
      %275 = vmatpush1.bf16.msra.mxu0 0
      %276 = vmatprep.subr.bf16.mxu0 0
      %277 = vmatpush1.bf16.msra.mxu0 0
      %278 = vmatprep.subr.bf16.mxu0 0
      %279 = vmatpush1.bf16.msra.mxu0 0
      %280 = vmatprep.subr.bf16.mxu0 0
      %281 = vmatpush1.bf16.msra.mxu0 0
      %282 = vmatprep.subr.bf16.mxu0 0
      %283 = vmatpush1.bf16.msra.mxu0 0
      %284 = vmatprep.subr.bf16.mxu0 0
      %285 = vmatpush1.bf16.msra.mxu0 0
      %286 = vmatprep.subr.bf16.mxu0 0
      %287 = vmatpush1.bf16.msra.mxu0 0
      %288 = vmatprep.subr.bf16.mxu0 0
      %289 = vmatpush1.bf16.msra.mxu0 0
      %290 = vmatprep.subr.bf16.mxu0 0
      %291 = vmatpush1.bf16.msra.mxu0 0
      %292 = vmatprep.subr.bf16.mxu0 0
      %293 = vmatpush1.bf16.msra.mxu0 0
      %294 = vmatprep.subr.bf16.mxu0 0
      %295 = vmatpush1.bf16.msra.mxu0 0
      %296 = vmatprep.subr.bf16.mxu0 0
      %297 = vmatpush1.bf16.msra.mxu0 0
      %298 = vmatprep.mubr.bf16.mxu0 0
      %299 = vmatmul.mubr.bf16.gmra.mrb[0].mxu0 %v211
      %v300 = vpop.f32.mrb[0].mxu0
      %v301 = vadd.f32 0.0, %v300
      %v302 = vpop.f32.mrb[0].mxu0
      %v303 = vpop.f32.mrb[0].mxu0
      %v304 = vadd.f32 0.0, %v303
      %v305 = vpop.f32.mrb[0].mxu0
      %306 = vdwg.mxu0
      %v309 = vunpack.c.l.b16 %v173
      %v310 = vunpack.c.l.b16 %v174
      %v311 = vpack.c.b16 %v310, %v309
      %v313 = vsel %vm209, %v311, 0
      %v316 = vsel %vm213, %v191, 0
      %v319 = vsel %vm213, %v199, 0
      %v322 = vsel %vm213, %v198, 0
      %324 = vmatprep.subr.bf16.mxu0 %v319
      %325 = vmatpush1.bf16.msra.mxu0 %v316
      %326 = vmatprep.subr.bf16.mxu0 0
      %327 = vmatpush1.bf16.msra.mxu0 0
      %328 = vmatprep.subr.bf16.mxu0 0
      %329 = vmatpush1.bf16.msra.mxu0 0
      %330 = vmatprep.subr.bf16.mxu0 0
      %331 = vmatpush1.bf16.msra.mxu0 0
      %332 = vmatprep.subr.bf16.mxu0 0
      %333 = vmatpush1.bf16.msra.mxu0 0
      %334 = vmatprep.subr.bf16.mxu0 0
      %335 = vmatpush1.bf16.msra.mxu0 0
      %336 = vmatprep.subr.bf16.mxu0 0
      %337 = vmatpush1.bf16.msra.mxu0 0
      %338 = vmatprep.subr.bf16.mxu0 0
      %339 = vmatpush1.bf16.msra.mxu0 0
      %340 = vmatprep.subr.bf16.mxu0 0
      %341 = vmatpush1.bf16.msra.mxu0 0
      %342 = vmatprep.subr.bf16.mxu0 0
      %343 = vmatpush1.bf16.msra.mxu0 0
      %344 = vmatprep.subr.bf16.mxu0 0
      %345 = vmatpush1.bf16.msra.mxu0 0
      %346 = vmatprep.subr.bf16.mxu0 0
      %347 = vmatpush1.bf16.msra.mxu0 0
      %348 = vmatprep.subr.bf16.mxu0 0
      %349 = vmatpush1.bf16.msra.mxu0 0
      %350 = vmatprep.subr.bf16.mxu0 0
      %351 = vmatpush1.bf16.msra.mxu0 0
      %352 = vmatprep.subr.bf16.mxu0 0
      %353 = vmatpush1.bf16.msra.mxu0 0
      %354 = vmatprep.subr.bf16.mxu0 0
      %355 = vmatpush1.bf16.msra.mxu0 0
      %356 = vmatprep.mubr.bf16.mxu0 0
      %357 = vmatmul.mubr.bf16.gmra.mrb[0].mxu0 %v313
      %v358 = vpop.f32.mrb[0].mxu0
      %v359 = vadd.f32 %v258, %v358
      %v360 = vpop.f32.mrb[0].mxu0
      %v361 = vadd.f32 %v260, %v360
      %v362 = vpop.f32.mrb[0].mxu0
      %v363 = vadd.f32 %v262, %v362
      %v364 = vpop.f32.mrb[0].mxu0
      %v365 = vadd.f32 %v264, %v364
      %366 = vdwg.mxu0
      %367 = vmatprep.subr.bf16.mxu0 0
      %368 = vmatpush1.bf16.msra.mxu0 %v322
      %369 = vmatprep.subr.bf16.mxu0 0
      %370 = vmatpush1.bf16.msra.mxu0 0
      %371 = vmatprep.subr.bf16.mxu0 0
      %372 = vmatpush1.bf16.msra.mxu0 0
      %373 = vmatprep.subr.bf16.mxu0 0
      %374 = vmatpush1.bf16.msra.mxu0 0
      %375 = vmatprep.subr.bf16.mxu0 0
      %376 = vmatpush1.bf16.msra.mxu0 0
      %377 = vmatprep.subr.bf16.mxu0 0
      %378 = vmatpush1.bf16.msra.mxu0 0
      %379 = vmatprep.subr.bf16.mxu0 0
      %380 = vmatpush1.bf16.msra.mxu0 0
      %381 = vmatprep.subr.bf16.mxu0 0
      %382 = vmatpush1.bf16.msra.mxu0 0
      %383 = vmatprep.subr.bf16.mxu0 0
      %384 = vmatpush1.bf16.msra.mxu0 0
      %385 = vmatprep.subr.bf16.mxu0 0
      %386 = vmatpush1.bf16.msra.mxu0 0
      %387 = vmatprep.subr.bf16.mxu0 0
      %388 = vmatpush1.bf16.msra.mxu0 0
      %389 = vmatprep.subr.bf16.mxu0 0
      %390 = vmatpush1.bf16.msra.mxu0 0
      %391 = vmatprep.subr.bf16.mxu0 0
      %392 = vmatpush1.bf16.msra.mxu0 0
      %393 = vmatprep.subr.bf16.mxu0 0
      %394 = vmatpush1.bf16.msra.mxu0 0
      %395 = vmatprep.subr.bf16.mxu0 0
      %396 = vmatpush1.bf16.msra.mxu0 0
      %397 = vmatprep.subr.bf16.mxu0 0
      %398 = vmatpush1.bf16.msra.mxu0 0
      %399 = vmatprep.mubr.bf16.mxu0 0
      %400 = vmatmul.mubr.bf16.gmra.mrb[0].mxu0 %v313
      %v401 = vpop.f32.mrb[0].mxu0
      %v402 = vadd.f32 %v301, %v401
      %v403 = vpop.f32.mrb[0].mxu0
      %v404 = vpop.f32.mrb[0].mxu0
      %v405 = vadd.f32 %v304, %v404
      %v406 = vpop.f32.mrb[0].mxu0
      %407 = vdwg.mxu0
      %v408 = vld [vmem:[%s165] sm:$0x3f]
      %s409 = scalar_lea.vmem %s1, 16
      %v410 = vld [vmem:[%s409] sm:$0xf]
      %v411 = vld [vmem:[%s409 + $0x4] sm:$0xf]
      %v414 = vunpack.c.l.b16 %v410
      %v415 = vunpack.c.l.b16 %v411
      %v416 = vpack.c.b16 %v415, %v414
      %v418 = vcombine.high %v408, %v408
      %v420 = vunpack.c.l.s4 1983009808
      %v421 = vunpack.c.0.s8 %v420
      %v422 = vlaneseq
      %v423 = vshrl.u32 %v422, 7
      %v424 = vsub.s32 %v421, %v423
      %v425 = vrot.slane %v408, %v424
      %v427 = vunpack.c.l.s4 1983009808
      %v428 = vunpack.c.0.s8 %v427
      %v429 = vlaneseq
      %v430 = vshrl.u32 %v429, 7
      %v431 = vsub.s32 %v428, %v430
      %v432 = vrot.slane %v418, %v431
      %v433 = vcombine.high %v425, %v425
      %434 = vrot.lane.b32.xlu0 %v425, 126
      %v435 = vpop.permute.xlu0 %434
      %436 = vrot.lane.b32.xlu0 %v433, 126
      %v437 = vpop.permute.xlu0 %436
      %438 = vrot.lane.b32.xlu0 %v432, 126
      %v439 = vpop.permute.xlu0 %438
      %vm440 = vcmask 1031168
      %v441 = vsel %vm440, %v435, %v437
      %v442 = vsel %vm440, %v437, %v439
      %v444 = vsel %vm209, %v416, 0
      %v447 = vsel %vm213, %v441, 0
      %v450 = vsel %vm213, %v442, 0
      %v453 = vsel %vm213, %v439, 0
      %455 = vmatprep.subr.bf16.mxu0 %v450
      %456 = vmatpush1.bf16.msra.mxu0 %v447
      %457 = vmatprep.subr.bf16.mxu0 0
      %458 = vmatpush1.bf16.msra.mxu0 0
      %459 = vmatprep.subr.bf16.mxu0 0
      %460 = vmatpush1.bf16.msra.mxu0 0
      %461 = vmatprep.subr.bf16.mxu0 0
      %462 = vmatpush1.bf16.msra.mxu0 0
      %463 = vmatprep.subr.bf16.mxu0 0
      %464 = vmatpush1.bf16.msra.mxu0 0
      %465 = vmatprep.subr.bf16.mxu0 0
      %466 = vmatpush1.bf16.msra.mxu0 0
      %467 = vmatprep.subr.bf16.mxu0 0
      %468 = vmatpush1.bf16.msra.mxu0 0
      %469 = vmatprep.subr.bf16.mxu0 0
      %470 = vmatpush1.bf16.msra.mxu0 0
      %471 = vmatprep.subr.bf16.mxu0 0
      %472 = vmatpush1.bf16.msra.mxu0 0
      %473 = vmatprep.subr.bf16.mxu0 0
      %474 = vmatpush1.bf16.msra.mxu0 0
      %475 = vmatprep.subr.bf16.mxu0 0
      %476 = vmatpush1.bf16.msra.mxu0 0
      %477 = vmatprep.subr.bf16.mxu0 0
      %478 = vmatpush1.bf16.msra.mxu0 0
      %479 = vmatprep.subr.bf16.mxu0 0
      %480 = vmatpush1.bf16.msra.mxu0 0
      %481 = vmatprep.subr.bf16.mxu0 0
      %482 = vmatpush1.bf16.msra.mxu0 0
      %483 = vmatprep.subr.bf16.mxu0 0
      %484 = vmatpush1.bf16.msra.mxu0 0
      %485 = vmatprep.subr.bf16.mxu0 0
      %486 = vmatpush1.bf16.msra.mxu0 0
      %487 = vmatprep.mubr.bf16.mxu0 0
      %488 = vmatmul.mubr.bf16.gmra.mrb[0].mxu0 %v444
      %v489 = vpop.f32.mrb[0].mxu0
      %v490 = vadd.f32 0.0, %v489
      %v491 = vpop.f32.mrb[0].mxu0
      %v492 = vadd.f32 0.0, %v491
      %v493 = vpop.f32.mrb[0].mxu0
      %v494 = vadd.f32 0.0, %v493
      %v495 = vpop.f32.mrb[0].mxu0
      %v496 = vadd.f32 0.0, %v495
      %497 = vdwg.mxu0
      %498 = vmatprep.subr.bf16.mxu0 0
      %499 = vmatpush1.bf16.msra.mxu0 %v453
      %500 = vmatprep.subr.bf16.mxu0 0
      %501 = vmatpush1.bf16.msra.mxu0 0
      %502 = vmatprep.subr.bf16.mxu0 0
      %503 = vmatpush1.bf16.msra.mxu0 0
      %504 = vmatprep.subr.bf16.mxu0 0
      %505 = vmatpush1.bf16.msra.mxu0 0
      %506 = vmatprep.subr.bf16.mxu0 0
      %507 = vmatpush1.bf16.msra.mxu0 0
      %508 = vmatprep.subr.bf16.mxu0 0
      %509 = vmatpush1.bf16.msra.mxu0 0
      %510 = vmatprep.subr.bf16.mxu0 0
      %511 = vmatpush1.bf16.msra.mxu0 0
      %512 = vmatprep.subr.bf16.mxu0 0
      %513 = vmatpush1.bf16.msra.mxu0 0
      %514 = vmatprep.subr.bf16.mxu0 0
      %515 = vmatpush1.bf16.msra.mxu0 0
      %516 = vmatprep.subr.bf16.mxu0 0
      %517 = vmatpush1.bf16.msra.mxu0 0
      %518 = vmatprep.subr.bf16.mxu0 0
      %519 = vmatpush1.bf16.msra.mxu0 0
      %520 = vmatprep.subr.bf16.mxu0 0
      %521 = vmatpush1.bf16.msra.mxu0 0
      %522 = vmatprep.subr.bf16.mxu0 0
      %523 = vmatpush1.bf16.msra.mxu0 0
      %524 = vmatprep.subr.bf16.mxu0 0
      %525 = vmatpush1.bf16.msra.mxu0 0
      %526 = vmatprep.subr.bf16.mxu0 0
      %527 = vmatpush1.bf16.msra.mxu0 0
      %528 = vmatprep.subr.bf16.mxu0 0
      %529 = vmatpush1.bf16.msra.mxu0 0
      %530 = vmatprep.mubr.bf16.mxu0 0
      %531 = vmatmul.mubr.bf16.gmra.mrb[0].mxu0 %v444
      %v532 = vpop.f32.mrb[0].mxu0
      %v533 = vadd.f32 0.0, %v532
      %v534 = vpop.f32.mrb[0].mxu0
      %v535 = vpop.f32.mrb[0].mxu0
      %v536 = vadd.f32 0.0, %v535
      %v537 = vpop.f32.mrb[0].mxu0
      %538 = vdwg.mxu0
      %v539 = vadd.f32 %v359, %v490
      %v540 = vadd.f32 %v361, %v492
      %v541 = vadd.f32 %v402, %v533
      %v542 = vadd.f32 %v363, %v494
      %v543 = vadd.f32 %v365, %v496
      %v544 = vadd.f32 %v405, %v536
      %v545 = vld [vmem:[%s165] sm:$0x3f]
      %s546 = scalar_lea.vmem %s1, 24
      %v547 = vld [vmem:[%s546] sm:$0xf]
      %v548 = vld [vmem:[%s546 + $0x4] sm:$0xf]
      %v551 = vunpack.c.l.b16 %v547
      %v552 = vunpack.c.l.b16 %v548
      %v553 = vpack.c.b16 %v552, %v551
      %v555 = vcombine.high %v545, %v545
      %v557 = vunpack.c.l.s4 1983009808
      %v558 = vunpack.c.0.s8 %v557
      %v559 = vlaneseq
      %v560 = vshrl.u32 %v559, 7
      %v561 = vsub.s32 %v558, %v560
      %v562 = vrot.slane %v545, %v561
      %v564 = vunpack.c.l.s4 1983009808
      %v565 = vunpack.c.0.s8 %v564
      %v566 = vlaneseq
      %v567 = vshrl.u32 %v566, 7
      %v568 = vsub.s32 %v565, %v567
      %v569 = vrot.slane %v555, %v568
      %v570 = vcombine.high %v562, %v562
      %571 = vrot.lane.b32.xlu0 %v562, 110
      %v572 = vpop.permute.xlu0 %571
      %573 = vrot.lane.b32.xlu0 %v570, 110
      %v574 = vpop.permute.xlu0 %573
      %575 = vrot.lane.b32.xlu0 %v569, 110
      %v576 = vpop.permute.xlu0 %575
      %vm577 = vcmask 900096
      %v578 = vsel %vm577, %v572, %v574
      %v579 = vsel %vm577, %v574, %v576
      %v581 = vsel %vm209, %v553, 0
      %v584 = vsel %vm213, %v578, 0
      %v587 = vsel %vm213, %v579, 0
      %v590 = vsel %vm213, %v576, 0
      %592 = vmatprep.subr.bf16.mxu0 %v587
      %593 = vmatpush1.bf16.msra.mxu0 %v584
      %594 = vmatprep.subr.bf16.mxu0 0
      %595 = vmatpush1.bf16.msra.mxu0 0
      %596 = vmatprep.subr.bf16.mxu0 0
      %597 = vmatpush1.bf16.msra.mxu0 0
      %598 = vmatprep.subr.bf16.mxu0 0
      %599 = vmatpush1.bf16.msra.mxu0 0
      %600 = vmatprep.subr.bf16.mxu0 0
      %601 = vmatpush1.bf16.msra.mxu0 0
      %602 = vmatprep.subr.bf16.mxu0 0
      %603 = vmatpush1.bf16.msra.mxu0 0
      %604 = vmatprep.subr.bf16.mxu0 0
      %605 = vmatpush1.bf16.msra.mxu0 0
      %606 = vmatprep.subr.bf16.mxu0 0
      %607 = vmatpush1.bf16.msra.mxu0 0
      %608 = vmatprep.subr.bf16.mxu0 0
      %609 = vmatpush1.bf16.msra.mxu0 0
      %610 = vmatprep.subr.bf16.mxu0 0
      %611 = vmatpush1.bf16.msra.mxu0 0
      %612 = vmatprep.subr.bf16.mxu0 0
      %613 = vmatpush1.bf16.msra.mxu0 0
      %614 = vmatprep.subr.bf16.mxu0 0
      %615 = vmatpush1.bf16.msra.mxu0 0
      %616 = vmatprep.subr.bf16.mxu0 0
      %617 = vmatpush1.bf16.msra.mxu0 0
      %618 = vmatprep.subr.bf16.mxu0 0
      %619 = vmatpush1.bf16.msra.mxu0 0
      %620 = vmatprep.subr.bf16.mxu0 0
      %621 = vmatpush1.bf16.msra.mxu0 0
      %622 = vmatprep.subr.bf16.mxu0 0
      %623 = vmatpush1.bf16.msra.mxu0 0
      %624 = vmatprep.mubr.bf16.mxu0 0
      %625 = vmatmul.mubr.bf16.gmra.mrb[0].mxu0 %v581
      %v626 = vpop.f32.mrb[0].mxu0
      %v627 = vadd.f32 0.0, %v626
      %v628 = vpop.f32.mrb[0].mxu0
      %v629 = vadd.f32 0.0, %v628
      %v630 = vpop.f32.mrb[0].mxu0
      %v631 = vadd.f32 0.0, %v630
      %v632 = vpop.f32.mrb[0].mxu0
      %v633 = vadd.f32 0.0, %v632
      %634 = vdwg.mxu0
      %635 = vmatprep.subr.bf16.mxu0 0
      %636 = vmatpush1.bf16.msra.mxu0 %v590
      %637 = vmatprep.subr.bf16.mxu0 0
      %638 = vmatpush1.bf16.msra.mxu0 0
      %639 = vmatprep.subr.bf16.mxu0 0
      %640 = vmatpush1.bf16.msra.mxu0 0
      %641 = vmatprep.subr.bf16.mxu0 0
      %642 = vmatpush1.bf16.msra.mxu0 0
      %643 = vmatprep.subr.bf16.mxu0 0
      %644 = vmatpush1.bf16.msra.mxu0 0
      %645 = vmatprep.subr.bf16.mxu0 0
      %646 = vmatpush1.bf16.msra.mxu0 0
      %647 = vmatprep.subr.bf16.mxu0 0
      %648 = vmatpush1.bf16.msra.mxu0 0
      %649 = vmatprep.subr.bf16.mxu0 0
      %650 = vmatpush1.bf16.msra.mxu0 0
      %651 = vmatprep.subr.bf16.mxu0 0
      %652 = vmatpush1.bf16.msra.mxu0 0
      %653 = vmatprep.subr.bf16.mxu0 0
      %654 = vmatpush1.bf16.msra.mxu0 0
      %655 = vmatprep.subr.bf16.mxu0 0
      %656 = vmatpush1.bf16.msra.mxu0 0
      %657 = vmatprep.subr.bf16.mxu0 0
      %658 = vmatpush1.bf16.msra.mxu0 0
      %659 = vmatprep.subr.bf16.mxu0 0
      %660 = vmatpush1.bf16.msra.mxu0 0
      %661 = vmatprep.subr.bf16.mxu0 0
      %662 = vmatpush1.bf16.msra.mxu0 0
      %663 = vmatprep.subr.bf16.mxu0 0
      %664 = vmatpush1.bf16.msra.mxu0 0
      %665 = vmatprep.subr.bf16.mxu0 0
      %666 = vmatpush1.bf16.msra.mxu0 0
      %667 = vmatprep.mubr.bf16.mxu0 0
      %668 = vmatmul.mubr.bf16.gmra.mrb[0].mxu0 %v581
      %v669 = vpop.f32.mrb[0].mxu0
      %v670 = vadd.f32 0.0, %v669
      %v671 = vpop.f32.mrb[0].mxu0
      %v672 = vpop.f32.mrb[0].mxu0
      %v673 = vadd.f32 0.0, %v672
      %v674 = vpop.f32.mrb[0].mxu0
      %675 = vdwg.mxu0
      %v676 = vadd.f32 %v539, %v627
      %v677 = vadd.f32 %v540, %v629
      %v678 = vadd.f32 %v541, %v670
      %v679 = vadd.f32 %v542, %v631
      %v680 = vadd.f32 %v543, %v633
      %v681 = vadd.f32 %v544, %v673
      %v682 = vld [vmem:[%s165] sm:$0x3f]
      %s683 = scalar_lea.vmem %s1, 32
      %v684 = vld [vmem:[%s683] sm:$0xf]
      %v685 = vld [vmem:[%s683 + $0x4] sm:$0xf]
      %v688 = vunpack.c.l.b16 %v684
      %v689 = vunpack.c.l.b16 %v685
      %v690 = vpack.c.b16 %v689, %v688
      %v692 = vcombine.high %v682, %v682
      %v694 = vunpack.c.l.s4 1983009808
      %v695 = vunpack.c.0.s8 %v694
      %v696 = vlaneseq
      %v697 = vshrl.u32 %v696, 7
      %v698 = vsub.s32 %v695, %v697
      %v699 = vrot.slane %v682, %v698
      %v701 = vunpack.c.l.s4 1983009808
      %v702 = vunpack.c.0.s8 %v701
      %v703 = vlaneseq
      %v704 = vshrl.u32 %v703, 7
      %v705 = vsub.s32 %v702, %v704
      %v706 = vrot.slane %v692, %v705
      %v707 = vcombine.high %v699, %v699
      %708 = vrot.lane.b32.xlu0 %v699, 109
      %v709 = vpop.permute.xlu0 %708
      %710 = vrot.lane.b32.xlu0 %v707, 109
      %v711 = vpop.permute.xlu0 %710
      %712 = vrot.lane.b32.xlu0 %v706, 109
      %v713 = vpop.permute.xlu0 %712
      %vm714 = vcmask 891904
      %v715 = vsel %vm714, %v709, %v711
      %v716 = vsel %vm714, %v711, %v713
      %v718 = vsel %vm209, %v690, 0
      %v721 = vsel %vm213, %v715, 0
      %v724 = vsel %vm213, %v716, 0
      %v727 = vsel %vm213, %v713, 0
      %729 = vmatprep.subr.bf16.mxu0 %v724
      %730 = vmatpush1.bf16.msra.mxu0 %v721
      %731 = vmatprep.subr.bf16.mxu0 0
      %732 = vmatpush1.bf16.msra.mxu0 0
      %733 = vmatprep.subr.bf16.mxu0 0
      %734 = vmatpush1.bf16.msra.mxu0 0
      %735 = vmatprep.subr.bf16.mxu0 0
      %736 = vmatpush1.bf16.msra.mxu0 0
      %737 = vmatprep.subr.bf16.mxu0 0
      %738 = vmatpush1.bf16.msra.mxu0 0
      %739 = vmatprep.subr.bf16.mxu0 0
      %740 = vmatpush1.bf16.msra.mxu0 0
      %741 = vmatprep.subr.bf16.mxu0 0
      %742 = vmatpush1.bf16.msra.mxu0 0
      %743 = vmatprep.subr.bf16.mxu0 0
      %744 = vmatpush1.bf16.msra.mxu0 0
      %745 = vmatprep.subr.bf16.mxu0 0
      %746 = vmatpush1.bf16.msra.mxu0 0
      %747 = vmatprep.subr.bf16.mxu0 0
      %748 = vmatpush1.bf16.msra.mxu0 0
      %749 = vmatprep.subr.bf16.mxu0 0
      %750 = vmatpush1.bf16.msra.mxu0 0
      %751 = vmatprep.subr.bf16.mxu0 0
      %752 = vmatpush1.bf16.msra.mxu0 0
      %753 = vmatprep.subr.bf16.mxu0 0
      %754 = vmatpush1.bf16.msra.mxu0 0
      %755 = vmatprep.subr.bf16.mxu0 0
      %756 = vmatpush1.bf16.msra.mxu0 0
      %757 = vmatprep.subr.bf16.mxu0 0
      %758 = vmatpush1.bf16.msra.mxu0 0
      %759 = vmatprep.subr.bf16.mxu0 0
      %760 = vmatpush1.bf16.msra.mxu0 0
      %761 = vmatprep.mubr.bf16.mxu0 0
      %762 = vmatmul.mubr.bf16.gmra.mrb[0].mxu0 %v718
      %v763 = vpop.f32.mrb[0].mxu0
      %v764 = vadd.f32 0.0, %v763
      %v765 = vpop.f32.mrb[0].mxu0
      %v766 = vadd.f32 0.0, %v765
      %v767 = vpop.f32.mrb[0].mxu0
      %v768 = vadd.f32 0.0, %v767
      %v769 = vpop.f32.mrb[0].mxu0
      %v770 = vadd.f32 0.0, %v769
      %771 = vdwg.mxu0
      %772 = vmatprep.subr.bf16.mxu0 0
      %773 = vmatpush1.bf16.msra.mxu0 %v727
      %774 = vmatprep.subr.bf16.mxu0 0
      %775 = vmatpush1.bf16.msra.mxu0 0
      %776 = vmatprep.subr.bf16.mxu0 0
      %777 = vmatpush1.bf16.msra.mxu0 0
      %778 = vmatprep.subr.bf16.mxu0 0
      %779 = vmatpush1.bf16.msra.mxu0 0
      %780 = vmatprep.subr.bf16.mxu0 0
      %781 = vmatpush1.bf16.msra.mxu0 0
      %782 = vmatprep.subr.bf16.mxu0 0
      %783 = vmatpush1.bf16.msra.mxu0 0
      %784 = vmatprep.subr.bf16.mxu0 0
      %785 = vmatpush1.bf16.msra.mxu0 0
      %786 = vmatprep.subr.bf16.mxu0 0
      %787 = vmatpush1.bf16.msra.mxu0 0
      %788 = vmatprep.subr.bf16.mxu0 0
      %789 = vmatpush1.bf16.msra.mxu0 0
      %790 = vmatprep.subr.bf16.mxu0 0
      %791 = vmatpush1.bf16.msra.mxu0 0
      %792 = vmatprep.subr.bf16.mxu0 0
      %793 = vmatpush1.bf16.msra.mxu0 0
      %794 = vmatprep.subr.bf16.mxu0 0
      %795 = vmatpush1.bf16.msra.mxu0 0
      %796 = vmatprep.subr.bf16.mxu0 0
      %797 = vmatpush1.bf16.msra.mxu0 0
      %798 = vmatprep.subr.bf16.mxu0 0
      %799 = vmatpush1.bf16.msra.mxu0 0
      %800 = vmatprep.subr.bf16.mxu0 0
      %801 = vmatpush1.bf16.msra.mxu0 0
      %802 = vmatprep.subr.bf16.mxu0 0
      %803 = vmatpush1.bf16.msra.mxu0 0
      %804 = vmatprep.mubr.bf16.mxu0 0
      %805 = vmatmul.mubr.bf16.gmra.mrb[0].mxu0 %v718
      %v806 = vpop.f32.mrb[0].mxu0
      %v807 = vadd.f32 0.0, %v806
      %v808 = vpop.f32.mrb[0].mxu0
      %v809 = vpop.f32.mrb[0].mxu0
      %v810 = vadd.f32 0.0, %v809
      %v811 = vpop.f32.mrb[0].mxu0
      %812 = vdwg.mxu0
      %v813 = vadd.f32 %v676, %v764
      %v814 = vadd.f32 %v677, %v766
      %v815 = vadd.f32 %v678, %v807
      %v816 = vadd.f32 %v679, %v768
      %v817 = vadd.f32 %v680, %v770
      %v818 = vadd.f32 %v681, %v810
      %v819 = vld [vmem:[%s165] sm:$0x3f]
      %s820 = scalar_lea.vmem %s1, 40
      %v821 = vld [vmem:[%s820] sm:$0xf]
      %v822 = vld [vmem:[%s820 + $0x4] sm:$0xf]
      %v825 = vunpack.c.l.b16 %v821
      %v826 = vunpack.c.l.b16 %v822
      %v827 = vpack.c.b16 %v826, %v825
      %v829 = vcombine.high %v819, %v819
      %v831 = vunpack.c.l.s4 1983009808
      %v832 = vunpack.c.0.s8 %v831
      %v833 = vlaneseq
      %v834 = vshrl.u32 %v833, 7
      %v835 = vsub.s32 %v832, %v834
      %v836 = vrot.slane %v819, %v835
      %v838 = vunpack.c.l.s4 1983009808
      %v839 = vunpack.c.0.s8 %v838
      %v840 = vlaneseq
      %v841 = vshrl.u32 %v840, 7
      %v842 = vsub.s32 %v839, %v841
      %v843 = vrot.slane %v829, %v842
      %v844 = vcombine.high %v836, %v836
      %845 = vrot.lane.b32.xlu0 %v836, 108
      %v846 = vpop.permute.xlu0 %845
      %847 = vrot.lane.b32.xlu0 %v844, 108
      %v848 = vpop.permute.xlu0 %847
      %849 = vrot.lane.b32.xlu0 %v843, 108
      %v850 = vpop.permute.xlu0 %849
      %vm851 = vcmask 883712
      %v852 = vsel %vm851, %v846, %v848
      %v853 = vsel %vm851, %v848, %v850
      %v855 = vsel %vm209, %v827, 0
      %v858 = vsel %vm213, %v852, 0
      %v861 = vsel %vm213, %v853, 0
      %v864 = vsel %vm213, %v850, 0
      %866 = vmatprep.subr.bf16.mxu0 %v861
      %867 = vmatpush1.bf16.msra.mxu0 %v858
      %868 = vmatprep.subr.bf16.mxu0 0
      %869 = vmatpush1.bf16.msra.mxu0 0
      %870 = vmatprep.subr.bf16.mxu0 0
      %871 = vmatpush1.bf16.msra.mxu0 0
      %872 = vmatprep.subr.bf16.mxu0 0
      %873 = vmatpush1.bf16.msra.mxu0 0
      %874 = vmatprep.subr.bf16.mxu0 0
      %875 = vmatpush1.bf16.msra.mxu0 0
      %876 = vmatprep.subr.bf16.mxu0 0
      %877 = vmatpush1.bf16.msra.mxu0 0
      %878 = vmatprep.subr.bf16.mxu0 0
      %879 = vmatpush1.bf16.msra.mxu0 0
      %880 = vmatprep.subr.bf16.mxu0 0
      %881 = vmatpush1.bf16.msra.mxu0 0
      %882 = vmatprep.subr.bf16.mxu0 0
      %883 = vmatpush1.bf16.msra.mxu0 0
      %884 = vmatprep.subr.bf16.mxu0 0
      %885 = vmatpush1.bf16.msra.mxu0 0
      %886 = vmatprep.subr.bf16.mxu0 0
      %887 = vmatpush1.bf16.msra.mxu0 0
      %888 = vmatprep.subr.bf16.mxu0 0
      %889 = vmatpush1.bf16.msra.mxu0 0
      %890 = vmatprep.subr.bf16.mxu0 0
      %891 = vmatpush1.bf16.msra.mxu0 0
      %892 = vmatprep.subr.bf16.mxu0 0
      %893 = vmatpush1.bf16.msra.mxu0 0
      %894 = vmatprep.subr.bf16.mxu0 0
      %895 = vmatpush1.bf16.msra.mxu0 0
      %896 = vmatprep.subr.bf16.mxu0 0
      %897 = vmatpush1.bf16.msra.mxu0 0
      %898 = vmatprep.mubr.bf16.mxu0 0
      %899 = vmatmul.mubr.bf16.gmra.mrb[0].mxu0 %v855
      %v900 = vpop.f32.mrb[0].mxu0
      %v901 = vadd.f32 0.0, %v900
      %v902 = vpop.f32.mrb[0].mxu0
      %v903 = vadd.f32 0.0, %v902
      %v904 = vpop.f32.mrb[0].mxu0
      %v905 = vadd.f32 0.0, %v904
      %v906 = vpop.f32.mrb[0].mxu0
      %v907 = vadd.f32 0.0, %v906
      %908 = vdwg.mxu0
      %909 = vmatprep.subr.bf16.mxu0 0
      %910 = vmatpush1.bf16.msra.mxu0 %v864
      %911 = vmatprep.subr.bf16.mxu0 0
      %912 = vmatpush1.bf16.msra.mxu0 0
      %913 = vmatprep.subr.bf16.mxu0 0
      %914 = vmatpush1.bf16.msra.mxu0 0
      %915 = vmatprep.subr.bf16.mxu0 0
      %916 = vmatpush1.bf16.msra.mxu0 0
      %917 = vmatprep.subr.bf16.mxu0 0
      %918 = vmatpush1.bf16.msra.mxu0 0
      %919 = vmatprep.subr.bf16.mxu0 0
      %920 = vmatpush1.bf16.msra.mxu0 0
      %921 = vmatprep.subr.bf16.mxu0 0
      %922 = vmatpush1.bf16.msra.mxu0 0
      %923 = vmatprep.subr.bf16.mxu0 0
      %924 = vmatpush1.bf16.msra.mxu0 0
      %925 = vmatprep.subr.bf16.mxu0 0
      %926 = vmatpush1.bf16.msra.mxu0 0
      %927 = vmatprep.subr.bf16.mxu0 0
      %928 = vmatpush1.bf16.msra.mxu0 0
      %929 = vmatprep.subr.bf16.mxu0 0
      %930 = vmatpush1.bf16.msra.mxu0 0
      %931 = vmatprep.subr.bf16.mxu0 0
      %932 = vmatpush1.bf16.msra.mxu0 0
      %933 = vmatprep.subr.bf16.mxu0 0
      %934 = vmatpush1.bf16.msra.mxu0 0
      %935 = vmatprep.subr.bf16.mxu0 0
      %936 = vmatpush1.bf16.msra.mxu0 0
      %937 = vmatprep.subr.bf16.mxu0 0
      %938 = vmatpush1.bf16.msra.mxu0 0
      %939 = vmatprep.subr.bf16.mxu0 0
      %940 = vmatpush1.bf16.msra.mxu0 0
      %941 = vmatprep.mubr.bf16.mxu0 0
      %942 = vmatmul.mubr.bf16.gmra.mrb[0].mxu0 %v855
      %v943 = vpop.f32.mrb[0].mxu0
      %v944 = vadd.f32 0.0, %v943
      %v945 = vpop.f32.mrb[0].mxu0
      %v946 = vpop.f32.mrb[0].mxu0
      %v947 = vadd.f32 0.0, %v946
      %v948 = vpop.f32.mrb[0].mxu0
      %949 = vdwg.mxu0
      %v950 = vadd.f32 %v813, %v901
      %v951 = vadd.f32 %v814, %v903
      %v952 = vadd.f32 %v815, %v944
      %v953 = vadd.f32 %v816, %v905
      %v954 = vadd.f32 %v817, %v907
      %v955 = vadd.f32 %v818, %v947
      %v956 = vld [vmem:[%s165] sm:$0x3f]
      %s957 = scalar_lea.vmem %s1, 48
      %v958 = vld [vmem:[%s957] sm:$0xf]
      %v959 = vld [vmem:[%s957 + $0x4] sm:$0xf]
      %v962 = vunpack.c.l.b16 %v958
      %v963 = vunpack.c.l.b16 %v959
      %v964 = vpack.c.b16 %v963, %v962
      %v966 = vcombine.high %v956, %v956
      %v968 = vunpack.c.l.s4 1983009808
      %v969 = vunpack.c.0.s8 %v968
      %v970 = vlaneseq
      %v971 = vshrl.u32 %v970, 7
      %v972 = vsub.s32 %v969, %v971
      %v973 = vrot.slane %v956, %v972
      %v975 = vunpack.c.l.s4 1983009808
      %v976 = vunpack.c.0.s8 %v975
      %v977 = vlaneseq
      %v978 = vshrl.u32 %v977, 7
      %v979 = vsub.s32 %v976, %v978
      %v980 = vrot.slane %v966, %v979
      %v981 = vcombine.high %v973, %v973
      %982 = vrot.lane.b32.xlu0 %v973, 92
      %v983 = vpop.permute.xlu0 %982
      %984 = vrot.lane.b32.xlu0 %v981, 92
      %v985 = vpop.permute.xlu0 %984
      %986 = vrot.lane.b32.xlu0 %v980, 92
      %v987 = vpop.permute.xlu0 %986
      %vm988 = vcmask 752640
      %v989 = vsel %vm988, %v983, %v985
      %v990 = vsel %vm988, %v985, %v987
      %v992 = vsel %vm209, %v964, 0
      %v995 = vsel %vm213, %v989, 0
      %v998 = vsel %vm213, %v990, 0
      %v1001 = vsel %vm213, %v987, 0
      %1003 = vmatprep.subr.bf16.mxu0 %v998
      %1004 = vmatpush1.bf16.msra.mxu0 %v995
      %1005 = vmatprep.subr.bf16.mxu0 0
      %1006 = vmatpush1.bf16.msra.mxu0 0
      %1007 = vmatprep.subr.bf16.mxu0 0
      %1008 = vmatpush1.bf16.msra.mxu0 0
      %1009 = vmatprep.subr.bf16.mxu0 0
      %1010 = vmatpush1.bf16.msra.mxu0 0
      %1011 = vmatprep.subr.bf16.mxu0 0
      %1012 = vmatpush1.bf16.msra.mxu0 0
      %1013 = vmatprep.subr.bf16.mxu0 0
      %1014 = vmatpush1.bf16.msra.mxu0 0
      %1015 = vmatprep.subr.bf16.mxu0 0
      %1016 = vmatpush1.bf16.msra.mxu0 0
      %1017 = vmatprep.subr.bf16.mxu0 0
      %1018 = vmatpush1.bf16.msra.mxu0 0
      %1019 = vmatprep.subr.bf16.mxu0 0
      %1020 = vmatpush1.bf16.msra.mxu0 0
      %1021 = vmatprep.subr.bf16.mxu0 0
      %1022 = vmatpush1.bf16.msra.mxu0 0
      %1023 = vmatprep.subr.bf16.mxu0 0
      %1024 = vmatpush1.bf16.msra.mxu0 0
      %1025 = vmatprep.subr.bf16.mxu0 0
      %1026 = vmatpush1.bf16.msra.mxu0 0
      %1027 = vmatprep.subr.bf16.mxu0 0
      %1028 = vmatpush1.bf16.msra.mxu0 0
      %1029 = vmatprep.subr.bf16.mxu0 0
      %1030 = vmatpush1.bf16.msra.mxu0 0
      %1031 = vmatprep.subr.bf16.mxu0 0
      %1032 = vmatpush1.bf16.msra.mxu0 0
      %1033 = vmatprep.subr.bf16.mxu0 0
      %1034 = vmatpush1.bf16.msra.mxu0 0
      %1035 = vmatprep.mubr.bf16.mxu0 0
      %1036 = vmatmul.mubr.bf16.gmra.mrb[0].mxu0 %v992
      %v1037 = vpop.f32.mrb[0].mxu0
      %v1038 = vadd.f32 0.0, %v1037
      %v1039 = vpop.f32.mrb[0].mxu0
      %v1040 = vadd.f32 0.0, %v1039
      %v1041 = vpop.f32.mrb[0].mxu0
      %v1042 = vadd.f32 0.0, %v1041
      %v1043 = vpop.f32.mrb[0].mxu0
      %v1044 = vadd.f32 0.0, %v1043
      %1045 = vdwg.mxu0
      %1046 = vmatprep.subr.bf16.mxu0 0
      %1047 = vmatpush1.bf16.msra.mxu0 %v1001
      %1048 = vmatprep.subr.bf16.mxu0 0
      %1049 = vmatpush1.bf16.msra.mxu0 0
      %1050 = vmatprep.subr.bf16.mxu0 0
      %1051 = vmatpush1.bf16.msra.mxu0 0
      %1052 = vmatprep.subr.bf16.mxu0 0
      %1053 = vmatpush1.bf16.msra.mxu0 0
      %1054 = vmatprep.subr.bf16.mxu0 0
      %1055 = vmatpush1.bf16.msra.mxu0 0
      %1056 = vmatprep.subr.bf16.mxu0 0
      %1057 = vmatpush1.bf16.msra.mxu0 0
      %1058 = vmatprep.subr.bf16.mxu0 0
      %1059 = vmatpush1.bf16.msra.mxu0 0
      %1060 = vmatprep.subr.bf16.mxu0 0
      %1061 = vmatpush1.bf16.msra.mxu0 0
      %1062 = vmatprep.subr.bf16.mxu0 0
      %1063 = vmatpush1.bf16.msra.mxu0 0
      %1064 = vmatprep.subr.bf16.mxu0 0
      %1065 = vmatpush1.bf16.msra.mxu0 0
      %1066 = vmatprep.subr.bf16.mxu0 0
      %1067 = vmatpush1.bf16.msra.mxu0 0
      %1068 = vmatprep.subr.bf16.mxu0 0
      %1069 = vmatpush1.bf16.msra.mxu0 0
      %1070 = vmatprep.subr.bf16.mxu0 0
      %1071 = vmatpush1.bf16.msra.mxu0 0
      %1072 = vmatprep.subr.bf16.mxu0 0
      %1073 = vmatpush1.bf16.msra.mxu0 0
      %1074 = vmatprep.subr.bf16.mxu0 0
      %1075 = vmatpush1.bf16.msra.mxu0 0
      %1076 = vmatprep.subr.bf16.mxu0 0
      %1077 = vmatpush1.bf16.msra.mxu0 0
      %1078 = vmatprep.mubr.bf16.mxu0 0
      %1079 = vmatmul.mubr.bf16.gmra.mrb[0].mxu0 %v992
      %v1080 = vpop.f32.mrb[0].mxu0
      %v1081 = vadd.f32 0.0, %v1080
      %v1082 = vpop.f32.mrb[0].mxu0
      %v1083 = vpop.f32.mrb[0].mxu0
      %v1084 = vadd.f32 0.0, %v1083
      %v1085 = vpop.f32.mrb[0].mxu0
      %1086 = vdwg.mxu0
      %v1087 = vadd.f32 %v950, %v1038
      %v1088 = vadd.f32 %v951, %v1040
      %v1089 = vadd.f32 %v952, %v1081
      %v1090 = vadd.f32 %v953, %v1042
      %v1091 = vadd.f32 %v954, %v1044
      %v1092 = vadd.f32 %v955, %v1084
      %v1093 = vld [vmem:[%s165] sm:$0x3f]
      %s1094 = scalar_lea.vmem %s1, 56
      %v1095 = vld [vmem:[%s1094] sm:$0xf]
      %v1096 = vld [vmem:[%s1094 + $0x4] sm:$0xf]
      %v1099 = vunpack.c.l.b16 %v1095
      %v1100 = vunpack.c.l.b16 %v1096
      %v1101 = vpack.c.b16 %v1100, %v1099
      %v1103 = vcombine.high %v1093, %v1093
      %v1105 = vunpack.c.l.s4 1983009808
      %v1106 = vunpack.c.0.s8 %v1105
      %v1107 = vlaneseq
      %v1108 = vshrl.u32 %v1107, 7
      %v1109 = vsub.s32 %v1106, %v1108
      %v1110 = vrot.slane %v1093, %v1109
      %v1112 = vunpack.c.l.s4 1983009808
      %v1113 = vunpack.c.0.s8 %v1112
      %v1114 = vlaneseq
      %v1115 = vshrl.u32 %v1114, 7
      %v1116 = vsub.s32 %v1113, %v1115
      %v1117 = vrot.slane %v1103, %v1116
      %v1118 = vcombine.high %v1110, %v1110
      %1119 = vrot.lane.b32.xlu0 %v1110, 91
      %v1120 = vpop.permute.xlu0 %1119
      %1121 = vrot.lane.b32.xlu0 %v1118, 91
      %v1122 = vpop.permute.xlu0 %1121
      %1123 = vrot.lane.b32.xlu0 %v1117, 91
      %v1124 = vpop.permute.xlu0 %1123
      %vm1125 = vcmask 744448
      %v1126 = vsel %vm1125, %v1120, %v1122
      %v1127 = vsel %vm1125, %v1122, %v1124
      %v1129 = vsel %vm209, %v1101, 0
      %v1132 = vsel %vm213, %v1126, 0
      %v1135 = vsel %vm213, %v1127, 0
      %v1138 = vsel %vm213, %v1124, 0
      %1140 = vmatprep.subr.bf16.mxu0 %v1135
      %1141 = vmatpush1.bf16.msra.mxu0 %v1132
      %1142 = vmatprep.subr.bf16.mxu0 0
      %1143 = vmatpush1.bf16.msra.mxu0 0
      %1144 = vmatprep.subr.bf16.mxu0 0
      %1145 = vmatpush1.bf16.msra.mxu0 0
      %1146 = vmatprep.subr.bf16.mxu0 0
      %1147 = vmatpush1.bf16.msra.mxu0 0
      %1148 = vmatprep.subr.bf16.mxu0 0
      %1149 = vmatpush1.bf16.msra.mxu0 0
      %1150 = vmatprep.subr.bf16.mxu0 0
      %1151 = vmatpush1.bf16.msra.mxu0 0
      %1152 = vmatprep.subr.bf16.mxu0 0
      %1153 = vmatpush1.bf16.msra.mxu0 0
      %1154 = vmatprep.subr.bf16.mxu0 0
      %1155 = vmatpush1.bf16.msra.mxu0 0
      %1156 = vmatprep.subr.bf16.mxu0 0
      %1157 = vmatpush1.bf16.msra.mxu0 0
      %1158 = vmatprep.subr.bf16.mxu0 0
      %1159 = vmatpush1.bf16.msra.mxu0 0
      %1160 = vmatprep.subr.bf16.mxu0 0
      %1161 = vmatpush1.bf16.msra.mxu0 0
      %1162 = vmatprep.subr.bf16.mxu0 0
      %1163 = vmatpush1.bf16.msra.mxu0 0
      %1164 = vmatprep.subr.bf16.mxu0 0
      %1165 = vmatpush1.bf16.msra.mxu0 0
      %1166 = vmatprep.subr.bf16.mxu0 0
      %1167 = vmatpush1.bf16.msra.mxu0 0
      %1168 = vmatprep.subr.bf16.mxu0 0
      %1169 = vmatpush1.bf16.msra.mxu0 0
      %1170 = vmatprep.subr.bf16.mxu0 0
      %1171 = vmatpush1.bf16.msra.mxu0 0
      %1172 = vmatprep.mubr.bf16.mxu0 0
      %1173 = vmatmul.mubr.bf16.gmra.mrb[0].mxu0 %v1129
      %v1174 = vpop.f32.mrb[0].mxu0
      %v1175 = vadd.f32 0.0, %v1174
      %v1176 = vpop.f32.mrb[0].mxu0
      %v1177 = vadd.f32 0.0, %v1176
      %v1178 = vpop.f32.mrb[0].mxu0
      %v1179 = vadd.f32 0.0, %v1178
      %v1180 = vpop.f32.mrb[0].mxu0
      %v1181 = vadd.f32 0.0, %v1180
      %1182 = vdwg.mxu0
      %1183 = vmatprep.subr.bf16.mxu0 0
      %1184 = vmatpush1.bf16.msra.mxu0 %v1138
      %1185 = vmatprep.subr.bf16.mxu0 0
      %1186 = vmatpush1.bf16.msra.mxu0 0
      %1187 = vmatprep.subr.bf16.mxu0 0
      %1188 = vmatpush1.bf16.msra.mxu0 0
      %1189 = vmatprep.subr.bf16.mxu0 0
      %1190 = vmatpush1.bf16.msra.mxu0 0
      %1191 = vmatprep.subr.bf16.mxu0 0
      %1192 = vmatpush1.bf16.msra.mxu0 0
      %1193 = vmatprep.subr.bf16.mxu0 0
      %1194 = vmatpush1.bf16.msra.mxu0 0
      %1195 = vmatprep.subr.bf16.mxu0 0
      %1196 = vmatpush1.bf16.msra.mxu0 0
      %1197 = vmatprep.subr.bf16.mxu0 0
      %1198 = vmatpush1.bf16.msra.mxu0 0
      %1199 = vmatprep.subr.bf16.mxu0 0
      %1200 = vmatpush1.bf16.msra.mxu0 0
      %1201 = vmatprep.subr.bf16.mxu0 0
      %1202 = vmatpush1.bf16.msra.mxu0 0
      %1203 = vmatprep.subr.bf16.mxu0 0
      %1204 = vmatpush1.bf16.msra.mxu0 0
      %1205 = vmatprep.subr.bf16.mxu0 0
      %1206 = vmatpush1.bf16.msra.mxu0 0
      %1207 = vmatprep.subr.bf16.mxu0 0
      %1208 = vmatpush1.bf16.msra.mxu0 0
      %1209 = vmatprep.subr.bf16.mxu0 0
      %1210 = vmatpush1.bf16.msra.mxu0 0
      %1211 = vmatprep.subr.bf16.mxu0 0
      %1212 = vmatpush1.bf16.msra.mxu0 0
      %1213 = vmatprep.subr.bf16.mxu0 0
      %1214 = vmatpush1.bf16.msra.mxu0 0
      %1215 = vmatprep.mubr.bf16.mxu0 0
      %1216 = vmatmul.mubr.bf16.gmra.mrb[0].mxu0 %v1129
      %v1217 = vpop.f32.mrb[0].mxu0
      %v1218 = vadd.f32 0.0, %v1217
      %v1219 = vpop.f32.mrb[0].mxu0
      %v1220 = vpop.f32.mrb[0].mxu0
      %v1221 = vadd.f32 0.0, %v1220
      %v1222 = vpop.f32.mrb[0].mxu0
      %1223 = vdwg.mxu0
      %v1224 = vadd.f32 %v1087, %v1175
      %v1225 = vadd.f32 %v1088, %v1177
      %v1226 = vadd.f32 %v1089, %v1218
      %v1227 = vadd.f32 %v1090, %v1179
      %v1228 = vadd.f32 %v1091, %v1181
      %v1229 = vadd.f32 %v1092, %v1221
      %v1230 = vld [vmem:[%s165] sm:$0x3f]
      %s1231 = scalar_lea.vmem %s1, 64
      %v1232 = vld [vmem:[%s1231] sm:$0xf]
      %v1233 = vld [vmem:[%s1231 + $0x4] sm:$0xf]
      %v1236 = vunpack.c.l.b16 %v1232
      %v1237 = vunpack.c.l.b16 %v1233
      %v1238 = vpack.c.b16 %v1237, %v1236
      %v1240 = vcombine.high %v1230, %v1230
      %v1242 = vunpack.c.l.s4 1983009808
      %v1243 = vunpack.c.0.s8 %v1242
      %v1244 = vlaneseq
      %v1245 = vshrl.u32 %v1244, 7
      %v1246 = vsub.s32 %v1243, %v1245
      %v1247 = vrot.slane %v1230, %v1246
      %v1249 = vunpack.c.l.s4 1983009808
      %v1250 = vunpack.c.0.s8 %v1249
      %v1251 = vlaneseq
      %v1252 = vshrl.u32 %v1251, 7
      %v1253 = vsub.s32 %v1250, %v1252
      %v1254 = vrot.slane %v1240, %v1253
      %v1255 = vcombine.high %v1247, %v1247
      %1256 = vrot.lane.b32.xlu0 %v1247, 90
      %v1257 = vpop.permute.xlu0 %1256
      %1258 = vrot.lane.b32.xlu0 %v1255, 90
      %v1259 = vpop.permute.xlu0 %1258
      %1260 = vrot.lane.b32.xlu0 %v1254, 90
      %v1261 = vpop.permute.xlu0 %1260
      %vm1262 = vcmask 736256
      %v1263 = vsel %vm1262, %v1257, %v1259
      %v1264 = vsel %vm1262, %v1259, %v1261
      %v1266 = vsel %vm209, %v1238, 0
      %v1269 = vsel %vm213, %v1263, 0
      %v1272 = vsel %vm213, %v1264, 0
      %v1275 = vsel %vm213, %v1261, 0
      %1277 = vmatprep.subr.bf16.mxu0 %v1272
      %1278 = vmatpush1.bf16.msra.mxu0 %v1269
      %1279 = vmatprep.subr.bf16.mxu0 0
      %1280 = vmatpush1.bf16.msra.mxu0 0
      %1281 = vmatprep.subr.bf16.mxu0 0
      %1282 = vmatpush1.bf16.msra.mxu0 0
      %1283 = vmatprep.subr.bf16.mxu0 0
      %1284 = vmatpush1.bf16.msra.mxu0 0
      %1285 = vmatprep.subr.bf16.mxu0 0
      %1286 = vmatpush1.bf16.msra.mxu0 0
      %1287 = vmatprep.subr.bf16.mxu0 0
      %1288 = vmatpush1.bf16.msra.mxu0 0
      %1289 = vmatprep.subr.bf16.mxu0 0
      %1290 = vmatpush1.bf16.msra.mxu0 0
      %1291 = vmatprep.subr.bf16.mxu0 0
      %1292 = vmatpush1.bf16.msra.mxu0 0
      %1293 = vmatprep.subr.bf16.mxu0 0
      %1294 = vmatpush1.bf16.msra.mxu0 0
      %1295 = vmatprep.subr.bf16.mxu0 0
      %1296 = vmatpush1.bf16.msra.mxu0 0
      %1297 = vmatprep.subr.bf16.mxu0 0
      %1298 = vmatpush1.bf16.msra.mxu0 0
      %1299 = vmatprep.subr.bf16.mxu0 0
      %1300 = vmatpush1.bf16.msra.mxu0 0
      %1301 = vmatprep.subr.bf16.mxu0 0
      %1302 = vmatpush1.bf16.msra.mxu0 0
      %1303 = vmatprep.subr.bf16.mxu0 0
      %1304 = vmatpush1.bf16.msra.mxu0 0
      %1305 = vmatprep.subr.bf16.mxu0 0
      %1306 = vmatpush1.bf16.msra.mxu0 0
      %1307 = vmatprep.subr.bf16.mxu0 0
      %1308 = vmatpush1.bf16.msra.mxu0 0
      %1309 = vmatprep.mubr.bf16.mxu0 0
      %1310 = vmatmul.mubr.bf16.gmra.mrb[0].mxu0 %v1266
      %v1311 = vpop.f32.mrb[0].mxu0
      %v1312 = vadd.f32 0.0, %v1311
      %v1313 = vpop.f32.mrb[0].mxu0
      %v1314 = vadd.f32 0.0, %v1313
      %v1315 = vpop.f32.mrb[0].mxu0
      %v1316 = vadd.f32 0.0, %v1315
      %v1317 = vpop.f32.mrb[0].mxu0
      %v1318 = vadd.f32 0.0, %v1317
      %1319 = vdwg.mxu0
      %1320 = vmatprep.subr.bf16.mxu0 0
      %1321 = vmatpush1.bf16.msra.mxu0 %v1275
      %1322 = vmatprep.subr.bf16.mxu0 0
      %1323 = vmatpush1.bf16.msra.mxu0 0
      %1324 = vmatprep.subr.bf16.mxu0 0
      %1325 = vmatpush1.bf16.msra.mxu0 0
      %1326 = vmatprep.subr.bf16.mxu0 0
      %1327 = vmatpush1.bf16.msra.mxu0 0
      %1328 = vmatprep.subr.bf16.mxu0 0
      %1329 = vmatpush1.bf16.msra.mxu0 0
      %1330 = vmatprep.subr.bf16.mxu0 0
      %1331 = vmatpush1.bf16.msra.mxu0 0
      %1332 = vmatprep.subr.bf16.mxu0 0
      %1333 = vmatpush1.bf16.msra.mxu0 0
      %1334 = vmatprep.subr.bf16.mxu0 0
      %1335 = vmatpush1.bf16.msra.mxu0 0
      %1336 = vmatprep.subr.bf16.mxu0 0
      %1337 = vmatpush1.bf16.msra.mxu0 0
      %1338 = vmatprep.subr.bf16.mxu0 0
      %1339 = vmatpush1.bf16.msra.mxu0 0
      %1340 = vmatprep.subr.bf16.mxu0 0
      %1341 = vmatpush1.bf16.msra.mxu0 0
      %1342 = vmatprep.subr.bf16.mxu0 0
      %1343 = vmatpush1.bf16.msra.mxu0 0
      %1344 = vmatprep.subr.bf16.mxu0 0
      %1345 = vmatpush1.bf16.msra.mxu0 0
      %1346 = vmatprep.subr.bf16.mxu0 0
      %1347 = vmatpush1.bf16.msra.mxu0 0
      %1348 = vmatprep.subr.bf16.mxu0 0
      %1349 = vmatpush1.bf16.msra.mxu0 0
      %1350 = vmatprep.subr.bf16.mxu0 0
      %1351 = vmatpush1.bf16.msra.mxu0 0
      %1352 = vmatprep.mubr.bf16.mxu0 0
      %1353 = vmatmul.mubr.bf16.gmra.mrb[0].mxu0 %v1266
      %v1354 = vpop.f32.mrb[0].mxu0
      %v1355 = vadd.f32 0.0, %v1354
      %v1356 = vpop.f32.mrb[0].mxu0
      %v1357 = vpop.f32.mrb[0].mxu0
      %v1358 = vadd.f32 0.0, %v1357
      %v1359 = vpop.f32.mrb[0].mxu0
      %1360 = vdwg.mxu0
      %v1361 = vadd.f32 %v1224, %v1312
      %v1362 = vadd.f32 %v1225, %v1314
      %v1363 = vadd.f32 %v1226, %v1355
      %v1364 = vadd.f32 %v1227, %v1316
      %v1365 = vadd.f32 %v1228, %v1318
      %v1366 = vadd.f32 %v1229, %v1358
      %v1367 = vld [vmem:[%s2] sm:$0xff]
      %v1368 = vld [vmem:[%s2 + $0x8] sm:$0xff]
      %1370 = vset.pattern.permute.xlu0 0
      %1371 = vperm.xlu0 %1370, %v1367
      %v1372 = vpop.permute.xlu0 %1371
      %1375 = vset.pattern.permute.xlu0 0
      %1376 = vperm.xlu0 %1375, %v1368
      %v1377 = vpop.permute.xlu0 %1376
      %v1379 = vmul.f32 %v1361, %v1372
      %v1380 = vmul.f32 %v1362, %v1372
      %v1381 = vmul.f32 %v1363, %v1372
      %v1382 = vmul.f32 %v1364, %v1377
      %v1383 = vmul.f32 %v1365, %v1377
      %v1384 = vmul.f32 %v1366, %v1377
      %1385 = vset.pattern.permute.xlu0 1
      %1386 = vperm.xlu0 %1385, %v1367
      %v1387 = vpop.permute.xlu0 %1386
      %1389 = vset.pattern.permute.xlu0 1
      %1390 = vperm.xlu0 %1389, %v1368
      %v1391 = vpop.permute.xlu0 %1390
      %v1393 = vadd.f32 %v1379, %v1387
      %v1394 = vadd.f32 %v1380, %v1387
      %v1395 = vadd.f32 %v1381, %v1387
      %v1396 = vadd.f32 %v1382, %v1391
      %v1397 = vadd.f32 %v1383, %v1391
      %v1398 = vadd.f32 %v1384, %v1391
      %1399 = vst [vmem:[%s170] sm:$0xff] %v1393
      %1400 = vst [vmem:[%s170 + $0x8] sm:$0xff] %v1394
      %vm1401 = vcmask 261120
      %1402 = vst.msk [vmem:[%s170 + $0x10] sm:$0xff] %vm1401, %v1395
      %1403 = vst [vmem:[%s170 + $0x18] sm:$0xff] %v1396
      %1404 = vst [vmem:[%s170 + $0x20] sm:$0xff] %v1397
      %1405 = vst.msk [vmem:[%s170 + $0x28] sm:$0xff] %vm1401, %v1398
      %p1406 = scmp.lt.s32.totalorder %s14, 1
      %s1407 = scalar_select %p1406, %s14, 1
      %s1408 = smul.addr %s1407, 6
      %s1409 = smul.addr %s1408, 8
      %s1410 = scalar_lea.vmem %s3, %s1409
      // Predicated region
      $region33: #{repeat_conv_pallas.3} parent=31 // pred_check
        %p1411 = pneg %p100
      $region34: #{repeat_conv_pallas.3} parent=31 // pred_check_branch
        %1413 = sbr.rel (%p1411) target = $region36
      $region35: #{repeat_conv_pallas.3} parent=31 // pred_region
        _
      $region36: #{repeat_conv_pallas.3} parent=31 // pred_fallthru
        _
    $region32: #{repeat_conv_pallas.3} parent=5 // pred_fallthru
      _
    %p1414 = scmp.le.s32.totalorder 2, %s9
    // Predicated region
    $region37: #{repeat_conv_pallas.3} parent=5 // pred_check
      %p1415 = pneg %p1414
    $region38: #{repeat_conv_pallas.3} parent=5 // pred_check_branch
      %1417 = sbr.rel (%p1415) target = $region40
    $region39: #{repeat_conv_pallas.3} parent=5 // pred_region
      %s1418 = ssub.s32 %s9, 2
      // Predicated region
      $region41: #{repeat_conv_pallas.3} parent=39 // pred_check
        %p1419 = pneg %p106
      $region42: #{repeat_conv_pallas.3} parent=39 // pred_check_branch
        %1421 = sbr.rel (%p1419) target = $region44
      $region43: #{repeat_conv_pallas.3} parent=39 // pred_region
        %p1422 = scmp.lt.s32.totalorder %s15, 1
        %s1423 = scalar_select %p1422, %s15, 1
        %s1424 = smul.addr %s1423, 6
        %s1425 = smul.addr %s1424, 8
        %s1426 = scalar_lea.vmem %s3, %s1425
      $region44: #{repeat_conv_pallas.3} parent=39 // pred_fallthru
        _
    $region40: #{repeat_conv_pallas.3} parent=5 // pred_fallthru
      _
  $region6: #{repeat_conv_pallas.3} parent=0 // loop_footer
    %s13 = sadd.s32 1, %s9
  $region7: #{repeat_conv_pallas.3} parent=0 // loop_footer_branch
    %8 = sbr.rel target = $region3
  $region8: #{repeat_conv_pallas.3} parent=0 // loop_exit
    _

</llo_original>
